<compile_context>
chip_gen: v7x
topology: tpu7x:2x2x1
jax: 0.10.0
libtpu: 0.0.40
codegen_flags: <defaults>
</compile_context>

<pallas_src>
from functools import partial

import numpy as np
import jax
import jax.numpy as jnp
from jax.experimental import pallas as pl
from jax.experimental.pallas import tpu as pltpu

H, W = 5, 4                  # micro-chess board
HW = H * W                   # 20
C1, C2 = 32, 64              # conv channels
N1, N2 = C1 * HW, C2 * HW    # 640, 1280 flattened conv widths
FC1, FC2 = 128, 64           # fc widths
NUM_OUTPUTS = 40             # synthetic action-space size for the policy head
EPS = 1e-5                   # nn.BatchNorm2d default eps


def _round_up(x, m):
    return (x + m - 1) // m * m


HEAD_N = _round_up(NUM_OUTPUTS + 1, 128)   # fused policy+value head width (128)


# ---------------------------------------------------------------------------
# Chip-dependent static configuration (resolved once at import).
# ---------------------------------------------------------------------------
def _device_kind():
    try:
        return jax.devices()[0].device_kind.lower()
    except Exception:
        return ""


_KIND = _device_kind()
IS_V6 = "v6" in _KIND
IS_V7 = "v7" in _KIND

# Spill the pre-BN2 conv2 activation from stats2 to HBM so apply skips the
# dominant matmul.  MXU win on v5e/v7x; ~neutral/negative on v6e -> recompute.
SPILL_H2 = not IS_V6
# bf16 VALU exists on v6e/v7x only; keep the BN affine / ReLU in f32 on v5e.
AFFINE_BF16 = IS_V6 or IS_V7
# v7x has only 64 MiB VMEM per TensorCore -> keep tiles <= 512 rows there.
TB_MAX = 512 if IS_V7 else 1024
# Default scoped-VMEM limit (16 MiB on v5e) is too small for tb=1024 tiles.
VMEM_LIMIT = None if IS_V7 else ((40 << 20) if IS_V6 else (32 << 20))


def _probe_const_pipeline():
    """Probe pl.Buffered(1) support (single-buffer the never-changing weights)."""
    try:
        mode = pl.Buffered(1)

        def k(x_ref, o_ref):
            o_ref[...] = x_ref[...] + 1.0

        f = pl.pallas_call(
            k, grid=(2,),
            in_specs=[pl.BlockSpec((8, 128), lambda i: (0, 0), pipeline_mode=mode)],
            out_specs=pl.BlockSpec((8, 128), lambda i: (0, 0)),
            out_shape=jax.ShapeDtypeStruct((8, 128), jnp.float32))
        jax.block_until_ready(f(jnp.zeros((8, 128), jnp.float32)))
        return mode
    except Exception:
        return None


_CONST_PIPELINE = _probe_const_pipeline()


def _cparams(semantics):
    kw = dict(dimension_semantics=semantics)
    if VMEM_LIMIT is not None:
        kw["vmem_limit_bytes"] = VMEM_LIMIT
    return pltpu.CompilerParams(**kw)


def _choose_tile(batch):
    """Batch tile (multiple of 16 rows for bf16 sublane packing) and padded B."""
    bp = _round_up(max(batch, 1), 16)
    if IS_V7 and bp > 32:
        # At least 2 tiles so the "parallel" grid axis spans both TensorCores.
        tb = min(TB_MAX, _round_up((bp + 1) // 2, 16))
    else:
        tb = min(TB_MAX, bp)
    return tb, _round_up(bp, tb)


# ---------------------------------------------------------------------------
# Kernels
# ---------------------------------------------------------------------------
def _affine_relu_bf16(h, sc_ref, sh_ref, affine_dtype):
    """relu(h * scale + shift) in affine_dtype, returned as bf16 MXU operand."""
    a = jnp.maximum(h.astype(affine_dtype) * sc_ref[...] + sh_ref[...], 0.0)
    return a.astype(jnp.bfloat16)


def _row_sums(h):
    """[sum(h); sum(h*h)] over batch rows -> (1, 2, cols) f32 partial block."""
    s = jnp.sum(h, axis=0, keepdims=True)
    ss = jnp.sum(h * h, axis=0, keepdims=True)
    return jnp.concatenate([s, ss], axis=0)[None]


def _stats1_kernel(x_ref, m1_ref, out_ref):
    # conv1 bias is omitted everywhere: train-mode BN subtracts the batch mean,
    # so a per-channel additive bias cancels exactly (mean/var shift-invariant).
    # Zero-padded batch rows therefore contribute exact zeros -> no mask needed.
    h1 = jnp.dot(x_ref[...], m1_ref[...], preferred_element_type=jnp.float32)
    out_ref[...] = _row_sums(h1)


def _stats2_kernel(x_ref, m1_ref, sc1_ref, sh1_ref, m2_ref, stats_ref, *h2_out,
                   tb, batch, need_mask, affine_dtype):
    h1 = jnp.dot(x_ref[...], m1_ref[...], preferred_element_type=jnp.float32)
    a1 = _affine_relu_bf16(h1, sc1_ref, sh1_ref, affine_dtype)
    h2 = jnp.dot(a1, m2_ref[...], preferred_element_type=jnp.float32)
    hs = h2
    if need_mask:   # padded rows have a1 = relu(sh1) != 0 -> mask their stats
        row = (jax.lax.broadcasted_iota(jnp.int32, (tb, 1), 0)
               + pl.program_id(0) * tb)
        hs = jnp.where(row < batch, h2, 0.0)
    stats_ref[...] = _row_sums(hs)
    if h2_out:      # spill pre-BN2 conv2 activation so apply skips that matmul
        h2_out[0][...] = h2.astype(jnp.bfloat16)


def _mlp_head(a2, wf1_ref, bf1_ref, wf2_ref, bf2_ref, wh_ref, bh_ref, out_ref):
    f32 = jnp.float32
    z1 = jnp.maximum(jnp.dot(a2, wf1_ref[...], preferred_element_type=f32)
                     + bf1_ref[...], 0.0).astype(jnp.bfloat16)
    z2 = jnp.maximum(jnp.dot(z1, wf2_ref[...], preferred_element_type=f32)
                     + bf2_ref[...], 0.0).astype(jnp.bfloat16)
    # Fused policy+value head: one matmul, one lane-dense (tb, 128) store.
    out_ref[...] = jnp.dot(z2, wh_ref[...], preferred_element_type=f32) + bh_ref[...]


def _apply_from_h2_kernel(h2_ref, sc2_ref, sh2_ref, wf1_ref, bf1_ref,
                          wf2_ref, bf2_ref, wh_ref, bh_ref, out_ref,
                          *, affine_dtype):
    a2 = _affine_relu_bf16(h2_ref[...], sc2_ref, sh2_ref, affine_dtype)
    _mlp_head(a2, wf1_ref, bf1_ref, wf2_ref, bf2_ref, wh_ref, bh_ref, out_ref)


def _apply_full_kernel(x_ref, m1_ref, sc1_ref, sh1_ref, m2_ref, sc2_ref, sh2_ref,
                       wf1_ref, bf1_ref, wf2_ref, bf2_ref, wh_ref, bh_ref, out_ref,
                       *, affine_dtype):
    h1 = jnp.dot(x_ref[...], m1_ref[...], preferred_element_type=jnp.float32)
    a1 = _affine_relu_bf16(h1, sc1_ref, sh1_ref, affine_dtype)
    h2 = jnp.dot(a1, m2_ref[...], preferred_element_type=jnp.float32)
    a2 = _affine_relu_bf16(h2, sc2_ref, sh2_ref, affine_dtype)
    _mlp_head(a2, wf1_ref, bf1_ref, wf2_ref, bf2_ref, wh_ref, bh_ref, out_ref)


# ---------------------------------------------------------------------------
# Host-side operator construction (done once, outside the hot path)
# ---------------------------------------------------------------------------
def _patch_selector():
    """sel[t, p, q] = 1 iff input pixel q is the t-th 3x3 tap of output pixel p."""
    sel = np.zeros((9, HW, HW), np.float32)
    for ky in range(3):
        for kx in range(3):
            t = ky * 3 + kx
            for h in range(H):
                for w in range(W):
                    hh, ww = h + ky - 1, w + kx - 1
                    if 0 <= hh < H and 0 <= ww < W:
                        sel[t, h * W + w, hh * W + ww] = 1.0
    return sel


def prepare_operators(params):
    """Build device-ready bf16 matmul operators + f32 bias rows once."""
    sel = _patch_selector()
    w1 = np.asarray(params["conv1_w"], np.float32)
    w2 = np.asarray(params["conv2_w"], np.float32)

    m1 = np.einsum("ct,tpq->qcp", w1.reshape(C1, 9), sel).reshape(HW, N1)
    m2 = np.einsum("oit,tpq->iqop", w2.reshape(C2, C1, 9), sel).reshape(N1, N2)

    def row(v):
        return np.asarray(v, np.float32).reshape(1, -1)

    # Fused policy+value head, zero-padded to a lane-dense width of 128.
    wh = np.zeros((FC2, HEAD_N), np.float32)
    wh[:, :NUM_OUTPUTS] = np.asarray(params["policy_w"], np.float32).T
    wh[:, NUM_OUTPUTS:NUM_OUTPUTS + 1] = np.asarray(params["value_w"], np.float32).T
    bh = np.zeros((1, HEAD_N), np.float32)
    bh[0, :NUM_OUTPUTS] = np.asarray(params["policy_b"], np.float32)
    bh[0, NUM_OUTPUTS] = np.asarray(params["value_b"], np.float32)[0]

    # NOTE: conv1_b / conv2_b are intentionally NOT used — training-mode BN
    # cancels per-channel additive biases exactly.
    return {
        "m1": jnp.asarray(m1, jnp.bfloat16),
        "g1": jnp.asarray(params["bn1_g"], jnp.float32),
        "beta1": jnp.asarray(params["bn1_b"], jnp.float32),
        "m2": jnp.asarray(m2, jnp.bfloat16),
        "g2": jnp.asarray(params["bn2_g"], jnp.float32),
        "beta2": jnp.asarray(params["bn2_b"], jnp.float32),
        "wf1": jnp.asarray(np.asarray(params["fc1_w"], np.float32).T, jnp.bfloat16),
        "bf1": jnp.asarray(row(params["fc1_b"]), jnp.float32),
        "wf2": jnp.asarray(np.asarray(params["fc2_w"], np.float32).T, jnp.bfloat16),
        "bf2": jnp.asarray(row(params["fc2_b"]), jnp.float32),
        "wh": jnp.asarray(wh, jnp.bfloat16),
        "bh": jnp.asarray(bh, jnp.float32),
    }


# ---------------------------------------------------------------------------
# Jitted forward wrapper
# ---------------------------------------------------------------------------
def _bn_scale_shift(stats, gamma, beta, batch, row_dtype):
    """Per-column BN scale/shift rows from per-tile [sum(h), sum(h^2)] partials."""
    c = gamma.shape[0]
    tot = jnp.sum(stats, axis=0)                                  # (2, C*HW)
    s = tot.reshape(2, c, HW).sum(axis=2) / float(batch * HW)     # (2, C)
    mean, ex2 = s[0], s[1]
    var = jnp.maximum(ex2 - mean * mean, 0.0)   # biased var, torch BN train mode
    scale = gamma * jax.lax.rsqrt(var + EPS)
    shift = beta - mean * scale
    return (jnp.repeat(scale, HW)[None, :].astype(row_dtype),
            jnp.repeat(shift, HW)[None, :].astype(row_dtype))


@jax.jit
def micro_chess_forward(obs, ops):
    """obs: (B, 5, 4). Returns (policy_logits (B, NUM_OUTPUTS), value (B,))."""
    f32 = jnp.float32
    B = obs.shape[0]
    tb, Bp = _choose_tile(B)
    T = Bp // tb
    need_mask = Bp != B
    row_dt = jnp.bfloat16 if AFFINE_BF16 else f32

    x = jnp.asarray(obs, f32).reshape(B, HW)
    x_pad = jnp.pad(x, ((0, Bp - B), (0, 0))).astype(jnp.bfloat16)

    x_spec = pl.BlockSpec((tb, HW), lambda t: (t, 0))

    def const(shape):
        idx = lambda t: (0,) * len(shape)
        if _CONST_PIPELINE is not None:     # single-buffer never-changing weights
            return pl.BlockSpec(shape, idx, pipeline_mode=_CONST_PIPELINE)
        return pl.BlockSpec(shape, idx)

    cp = _cparams(("parallel",))   # every pass is batch-tile parallel (megacore)

    # --- pass 1: BN1 batch statistics (per-tile partial sums) ----------------
    stats1 = pl.pallas_call(
        _stats1_kernel,
        grid=(T,),
        in_specs=[x_spec, const((HW, N1))],
        out_specs=pl.BlockSpec((1, 2, N1), lambda t: (t, 0, 0)),
        out_shape=jax.ShapeDtypeStruct((T, 2, N1), f32),
        compiler_params=cp,
    )(x_pad, ops["m1"])
    sc1, sh1 = _bn_scale_shift(stats1, ops["g1"], ops["beta1"], B, row_dt)

    # --- pass 2: BN2 batch statistics (+ optional bf16 h2 spill) -------------
    stats2_kernel = partial(_stats2_kernel, tb=tb, batch=B, need_mask=need_mask,
                            affine_dtype=row_dt)
    s2_in = [x_spec, const((HW, N1)), const((1, N1)), const((1, N1)),
             const((N1, N2))]
    if SPILL_H2:
        stats2, h2 = pl.pallas_call(
            stats2_kernel,
            grid=(T,),
            in_specs=s2_in,
            out_specs=(pl.BlockSpec((1, 2, N2), lambda t: (t, 0, 0)),
                       pl.BlockSpec((tb, N2), lambda t: (t, 0))),
            out_shape=(jax.ShapeDtypeStruct((T, 2, N2), f32),
                       jax.ShapeDtypeStruct((Bp, N2), jnp.bfloat16)),
            compiler_params=cp,
        )(x_pad, ops["m1"], sc1, sh1, ops["m2"])
    else:
        stats2 = pl.pallas_call(
            stats2_kernel,
            grid=(T,),
            in_specs=s2_in,
            out_specs=pl.BlockSpec((1, 2, N2), lambda t: (t, 0, 0)),
            out_shape=jax.ShapeDtypeStruct((T, 2, N2), f32),
            compiler_params=cp,
        )(x_pad, ops["m1"], sc1, sh1, ops["m2"])
    sc2, sh2 = _bn_scale_shift(stats2, ops["g2"], ops["beta2"], B, row_dt)

    # --- pass 3: BN2 affine + MLP head (conv recompute only on v6e) ----------
    out_spec = pl.BlockSpec((tb, HEAD_N), lambda t: (t, 0))
    out_shape = jax.ShapeDtypeStruct((Bp, HEAD_N), f32)
    tail_specs = [const((N2, FC1)), const((1, FC1)), const((FC1, FC2)),
                  const((1, FC2)), const((FC2, HEAD_N)), const((1, HEAD_N))]
    tail_args = (ops["wf1"], ops["bf1"], ops["wf2"], ops["bf2"],
                 ops["wh"], ops["bh"])

    if SPILL_H2:
        head = pl.pallas_call(
            partial(_apply_from_h2_kernel, affine_dtype=row_dt),
            grid=(T,),
            in_specs=[pl.BlockSpec((tb, N2), lambda t: (t, 0)),
                      const((1, N2)), const((1, N2))] + tail_specs,
            out_specs=out_spec, out_shape=out_shape, compiler_params=cp,
        )(h2, sc2, sh2, *tail_args)
    else:
        head = pl.pallas_call(
            partial(_apply_full_kernel, affine_dtype=row_dt),
            grid=(T,),
            in_specs=[x_spec, const((HW, N1)), const((1, N1)), const((1, N1)),
                      const((N1, N2)), const((1, N2)), const((1, N2))] + tail_specs,
            out_specs=out_spec, out_shape=out_shape, compiler_params=cp,
        )(x_pad, ops["m1"], sc1, sh1, ops["m2"], sc2, sh2, *tail_args)

    logits = head[:B, :NUM_OUTPUTS]
    value = head[:B, NUM_OUTPUTS]
    return logits, value


# ---------------------------------------------------------------------------
# Deterministic synthetic parameters (shapes from MicroChessModel.__init__)
# ---------------------------------------------------------------------------
def init_params(key):
    ks = jax.random.split(key, 12)
    return {
        "conv1_w": jax.random.normal(ks[0], (C1, 1, 3, 3), jnp.float32) * 0.2,
        "conv1_b": jax.random.normal(ks[1], (C1,), jnp.float32) * 0.1,
        "bn1_g": jnp.ones((C1,), jnp.float32),
        "bn1_b": jnp.zeros((C1,), jnp.float32),
        "conv2_w": jax.random.normal(ks[2], (C2, C1, 3, 3), jnp.float32) * 0.05,
        "conv2_b": jax.random.normal(ks[3], (C2,), jnp.float32) * 0.1,
        "bn2_g": jnp.ones((C2,), jnp.float32),
        "bn2_b": jnp.zeros((C2,), jnp.float32),
        "fc1_w": jax.random.normal(ks[4], (FC1, C2 * HW), jnp.float32) * 0.02,
        "fc1_b": jax.random.normal(ks[5], (FC1,), jnp.float32) * 0.05,
        "fc2_w": jax.random.normal(ks[6], (FC2, FC1), jnp.float32) * 0.05,
        "fc2_b": jax.random.normal(ks[7], (FC2,), jnp.float32) * 0.05,
        "policy_w": jax.random.normal(ks[8], (NUM_OUTPUTS, FC2), jnp.float32) * 0.05,
        "policy_b": jax.random.normal(ks[9], (NUM_OUTPUTS,), jnp.float32) * 0.05,
        "value_w": jax.random.normal(ks[10], (1, FC2), jnp.float32) * 0.05,
        "value_b": jax.random.normal(ks[11], (1,), jnp.float32) * 0.05,
    }


# ---------------------------------------------------------------------------
# Pure-JAX reference (mirrors the PyTorch forward, BN in training mode).
# mm_dtype lets us mirror the kernel's bf16 matmul operands for a tight check.
# ---------------------------------------------------------------------------
def reference_forward(obs, p, mm_dtype=jnp.float32):
    f32 = jnp.float32
    x = jnp.asarray(obs, f32)[:, None, :, :]          # NCHW (B,1,5,4)

    def conv(x, w, b):
        y = jax.lax.conv_general_dilated(
            x.astype(mm_dtype), jnp.asarray(w, f32).astype(mm_dtype),
            (1, 1), "SAME", dimension_numbers=("NCHW", "OIHW", "NCHW"),
            preferred_element_type=f32)
        return y + jnp.asarray(b, f32)[None, :, None, None]

    def bn(x, g, be):
        mean = jnp.mean(x, axis=(0, 2, 3), keepdims=True)
        var = jnp.var(x, axis=(0, 2, 3), keepdims=True)
        return ((x - mean) * jax.lax.rsqrt(var + EPS) * g[None, :, None, None]
                + be[None, :, None, None])

    def lin(h, w, b):
        return (jnp.dot(h.astype(mm_dtype), jnp.asarray(w, f32).T.astype(mm_dtype),
                        preferred_element_type=f32)
                + jnp.asarray(b, f32)[None, :])

    h = jax.nn.relu(bn(conv(x, p["conv1_w"], p["conv1_b"]), p["bn1_g"], p["bn1_b"]))
    h = jax.nn.relu(bn(conv(h, p["conv2_w"], p["conv2_b"]), p["bn2_g"], p["bn2_b"]))
    h = h.reshape(h.shape[0], -1)
    h = jax.nn.relu(lin(h, p["fc1_w"], p["fc1_b"]))
    h = jax.nn.relu(lin(h, p["fc2_w"], p["fc2_b"]))
    logits = lin(h, p["policy_w"], p["policy_b"])
    value = lin(h, p["value_w"], p["value_b"])[:, 0]
    return logits, value


if __name__ == "__main__":
    key = jax.random.PRNGKey(0)
    k_obs, k_par = jax.random.split(key)

    B = 2
    # board of piece ids in [-6, 6], then .float() as in the torch forward
    obs = jax.random.randint(k_obs, (B, H, W), -6, 7).astype(jnp.float32)
    params = init_params(k_par)
    ops = prepare_operators(params)          # built once, outside the hot path

    logits, value = micro_chess_forward(obs, ops)
    logits = jax.block_until_ready(logits)
    value = jax.block_until_ready(value)
    assert logits.shape == (B, NUM_OUTPUTS) and value.shape == (B,)

    # Tight check vs a reference mirroring the kernel's bf16 matmul operands
    # (verifies conv-as-matmul / BN-fold / layout plumbing; slack covers the
    # bf16 BN-affine and bf16 h2-spill approximations on bf16-VPU chips).
    rl_bf, rv_bf = reference_forward(obs, params, mm_dtype=jnp.bfloat16)
    assert np.allclose(np.asarray(logits), np.asarray(rl_bf), atol=2e-2, rtol=2e-2), \
        "policy mismatch (bf16-mirrored ref)"
    assert np.allclose(np.asarray(value), np.asarray(rv_bf), atol=2e-2, rtol=2e-2), \
        "value mismatch (bf16-mirrored ref)"

    # Looser check vs the pure-f32 module semantics; slack is the accepted
    # bf16-operand approximation.
    rl, rv = reference_forward(obs, params, mm_dtype=jnp.float32)
    assert np.allclose(np.asarray(logits), np.asarray(rl), atol=1e-1, rtol=1e-1), \
        "policy mismatch (f32 ref)"
    assert np.allclose(np.asarray(value), np.asarray(rv), atol=1e-1, rtol=1e-1), \
        "value mismatch (f32 ref)"

    print("KERNEL_OK")
</pallas_src>

<mosaic_0001>
module attributes {stable_mosaic.version = 11 : i64} {
  func.func @k(%arg0: i32, %arg1: memref<8x128xf32, #tpu.memory_space<vmem>>, %arg2: memref<8x128xf32, #tpu.memory_space<vmem>>) attributes {dimension_semantics = [#tpu.dimension_semantics<arbitrary>], iteration_bounds = array<i64: 2>, scalar_prefetch = 0 : i64, scratch_operands = 0 : i64, tpu.core_type = #tpu.core_type<tc>, window_params = [{pipeline_mode = #tpu.pipeline_mode<synchronous>, transform_indices = @transform_0, window_bounds = array<i64: 8, 128>}, {pipeline_mode = #tpu.pipeline_mode<synchronous>, transform_indices = @transform_1, window_bounds = array<i64: 8, 128>}]} {
    %c0 = arith.constant 0 : index
    %c0_0 = arith.constant 0 : index
    %0 = vector.load %arg1[%c0, %c0_0] : memref<8x128xf32, #tpu.memory_space<vmem>>, vector<8x128xf32>
    %cst = arith.constant 1.000000e+00 : f32
    %1 = vector.broadcast %cst : f32 to vector<8x128xf32>
    %2 = arith.addf %0, %1 : vector<8x128xf32>
    %c0_1 = arith.constant 0 : index
    %c0_2 = arith.constant 0 : index
    %3 = vector.load %arg2[%c0_1, %c0_2] : memref<8x128xf32, #tpu.memory_space<vmem>>, vector<8x128xf32>
    tpu.vector_store %arg2[%c0_1, %c0_2], %2 {strides = array<i32>} : memref<8x128xf32, #tpu.memory_space<vmem>>, vector<8x128xf32>,
    return
  }
  func.func @transform_0(%arg0: i32) -> (i32, i32) {
    %c0_i32 = arith.constant 0 : i32
    %c0_i32_0 = arith.constant 0 : i32
    %c0_i32_1 = arith.constant 0 : i32
    return %c0_i32, %c0_i32_0 : i32, i32
  }
  func.func @transform_1(%arg0: i32) -> (i32, i32) {
    %c0_i32 = arith.constant 0 : i32
    %c0_i32_0 = arith.constant 0 : i32
    %c0_i32_1 = arith.constant 0 : i32
    return %c0_i32, %c0_i32_0 : i32, i32
  }
}

module attributes {stable_mosaic.version = 11 : i64} {
  func.func @_stats1_kernel(%arg0: i32, %arg1: memref<16x20xbf16, #tpu.memory_space<vmem>>, %arg2: memref<20x640xbf16, #tpu.memory_space<vmem>>, %arg3: memref<1x2x640xf32, #tpu.memory_space<vmem>>) attributes {dimension_semantics = [#tpu.dimension_semantics<parallel>], iteration_bounds = array<i64: 1>, scalar_prefetch = 0 : i64, scratch_operands = 0 : i64, tpu.core_type = #tpu.core_type<tc>, window_params = [{transform_indices = @transform_0, window_bounds = array<i64: 16, 20>}, {pipeline_mode = #tpu.pipeline_mode<synchronous>, transform_indices = @transform_1, window_bounds = array<i64: 20, 640>}, {transform_indices = @transform_2, window_bounds = array<i64: 1, 2, 640>}]} {
    %c0 = arith.constant 0 : index
    %c0_0 = arith.constant 0 : index
    %0 = vector.load %arg1[%c0, %c0_0] : memref<16x20xbf16, #tpu.memory_space<vmem>>, vector<16x20xbf16>
    %c0_1 = arith.constant 0 : index
    %c0_2 = arith.constant 0 : index
    %1 = vector.load %arg2[%c0_1, %c0_2] : memref<20x640xbf16, #tpu.memory_space<vmem>>, vector<20x640xbf16>
    %cst = arith.constant dense<0.000000e+00> : vector<16x640xf32>
    %2 = tpu.matmul %0, %1, %cst {dimension_numbers = #tpu.dot_dimension_numbers<[1], [0], [0], [1], [0, 0, 1, 1], [], []>} : vector<16x20xbf16>, vector<20x640xbf16>, vector<16x640xf32> -> vector<16x640xf32>
    %cst_3 = arith.constant dense<0.000000e+00> : vector<640xf32>
    %3 = vector.multi_reduction <add>, %2, %cst_3 [0] : vector<16x640xf32> to vector<640xf32>
    %4 = vector.shape_cast %3 : vector<640xf32> to vector<1x640xf32>
    %5 = arith.mulf %2, %2 : vector<16x640xf32>
    %cst_4 = arith.constant dense<0.000000e+00> : vector<640xf32>
    %6 = vector.multi_reduction <add>, %5, %cst_4 [0] : vector<16x640xf32> to vector<640xf32>
    %7 = vector.shape_cast %6 : vector<640xf32> to vector<1x640xf32>
    %8 = tpu.concatenate %4, %7 in 0 : vector<1x640xf32>, vector<1x640xf32> -> vector<2x640xf32>
    %9 = vector.shape_cast %8 : vector<2x640xf32> to vector<1x2x640xf32>
    %c0_5 = arith.constant 0 : index
    %c0_6 = arith.constant 0 : index
    %c0_7 = arith.constant 0 : index
    %10 = vector.load %arg3[%c0_5, %c0_6, %c0_7] : memref<1x2x640xf32, #tpu.memory_space<vmem>>, vector<1x2x640xf32>
    tpu.vector_store %arg3[%c0_5, %c0_6, %c0_7], %9 {strides = array<i32>} : memref<1x2x640xf32, #tpu.memory_space<vmem>>, vector<1x2x640xf32>,
    return
  }
  func.func @transform_0(%arg0: i32) -> (i32, i32) {
    %c0_i32 = arith.constant 0 : i32
    %c0_i32_0 = arith.constant 0 : i32
    return %arg0, %c0_i32 : i32, i32
  }
  func.func @transform_1(%arg0: i32) -> (i32, i32) {
    %c0_i32 = arith.constant 0 : i32
    %c0_i32_0 = arith.constant 0 : i32
    %c0_i32_1 = arith.constant 0 : i32
    return %c0_i32, %c0_i32_0 : i32, i32
  }
  func.func @transform_2(%arg0: i32) -> (i32, i32, i32) {
    %c0_i32 = arith.constant 0 : i32
    %c0_i32_0 = arith.constant 0 : i32
    %c0_i32_1 = arith.constant 0 : i32
    return %arg0, %c0_i32, %c0_i32_0 : i32, i32, i32
  }
}

module attributes {stable_mosaic.version = 11 : i64} {
  func.func @_stats2_kernel(%arg0: i32, %arg1: memref<16x20xbf16, #tpu.memory_space<vmem>>, %arg2: memref<20x640xbf16, #tpu.memory_space<vmem>>, %arg3: memref<1x640xf32, #tpu.memory_space<vmem>>, %arg4: memref<1x640xf32, #tpu.memory_space<vmem>>, %arg5: memref<640x1280xbf16, #tpu.memory_space<vmem>>, %arg6: memref<1x2x1280xf32, #tpu.memory_space<vmem>>, %arg7: memref<16x1280xbf16, #tpu.memory_space<vmem>>) attributes {dimension_semantics = [#tpu.dimension_semantics<parallel>], iteration_bounds = array<i64: 1>, scalar_prefetch = 0 : i64, scratch_operands = 0 : i64, tpu.core_type = #tpu.core_type<tc>, window_params = [{transform_indices = @transform_0, window_bounds = array<i64: 16, 20>}, {pipeline_mode = #tpu.pipeline_mode<synchronous>, transform_indices = @transform_1, window_bounds = array<i64: 20, 640>}, {pipeline_mode = #tpu.pipeline_mode<synchronous>, transform_indices = @transform_2, window_bounds = array<i64: 1, 640>}, {pipeline_mode = #tpu.pipeline_mode<synchronous>, transform_indices = @transform_3, window_bounds = array<i64: 1, 640>}, {pipeline_mode = #tpu.pipeline_mode<synchronous>, transform_indices = @transform_4, window_bounds = array<i64: 640, 1280>}, {transform_indices = @transform_5, window_bounds = array<i64: 1, 2, 1280>}, {transform_indices = @transform_6, window_bounds = array<i64: 16, 1280>}]} {
    %c0 = arith.constant 0 : index
    %c0_0 = arith.constant 0 : index
    %0 = vector.load %arg1[%c0, %c0_0] : memref<16x20xbf16, #tpu.memory_space<vmem>>, vector<16x20xbf16>
    %c0_1 = arith.constant 0 : index
    %c0_2 = arith.constant 0 : index
    %1 = vector.load %arg2[%c0_1, %c0_2] : memref<20x640xbf16, #tpu.memory_space<vmem>>, vector<20x640xbf16>
    %cst = arith.constant dense<0.000000e+00> : vector<16x640xf32>
    %2 = tpu.matmul %0, %1, %cst {dimension_numbers = #tpu.dot_dimension_numbers<[1], [0], [0], [1], [0, 0, 1, 1], [], []>} : vector<16x20xbf16>, vector<20x640xbf16>, vector<16x640xf32> -> vector<16x640xf32>
    %c0_3 = arith.constant 0 : index
    %c0_4 = arith.constant 0 : index
    %3 = vector.load %arg3[%c0_3, %c0_4] : memref<1x640xf32, #tpu.memory_space<vmem>>, vector<1x640xf32>
    %4 = vector.broadcast %3 : vector<1x640xf32> to vector<16x640xf32>
    %5 = arith.mulf %2, %4 : vector<16x640xf32>
    %c0_5 = arith.constant 0 : index
    %c0_6 = arith.constant 0 : index
    %6 = vector.load %arg4[%c0_5, %c0_6] : memref<1x640xf32, #tpu.memory_space<vmem>>, vector<1x640xf32>
    %7 = vector.broadcast %6 : vector<1x640xf32> to vector<16x640xf32>
    %8 = arith.addf %5, %7 : vector<16x640xf32>
    %cst_7 = arith.constant 0.000000e+00 : f32
    %9 = vector.broadcast %cst_7 : f32 to vector<16x640xf32>
    %10 = arith.maximumf %8, %9 : vector<16x640xf32>
    %11 = arith.truncf %10 : vector<16x640xf32> to vector<16x640xbf16>
    %c0_8 = arith.constant 0 : index
    %c0_9 = arith.constant 0 : index
    %12 = vector.load %arg5[%c0_8, %c0_9] : memref<640x1280xbf16, #tpu.memory_space<vmem>>, vector<640x1280xbf16>
    %cst_10 = arith.constant dense<0.000000e+00> : vector<16x1280xf32>
    %13 = tpu.matmul %11, %12, %cst_10 {dimension_numbers = #tpu.dot_dimension_numbers<[1], [0], [0], [1], [0, 0, 1, 1], [], []>} : vector<16x640xbf16>, vector<640x1280xbf16>, vector<16x1280xf32> -> vector<16x1280xf32>
    %14 = tpu.iota {dimensions = array<i32: 0>} : vector<16x1xi32>
    %c16_i32 = arith.constant 16 : i32
    %15 = arith.muli %arg0, %c16_i32 : i32
    %16 = vector.broadcast %15 : i32 to vector<16x1xi32>
    %17 = arith.addi %14, %16 : vector<16x1xi32>
    %c2_i32 = arith.constant 2 : i32
    %18 = vector.broadcast %c2_i32 : i32 to vector<16x1xi32>
    %19 = arith.cmpi slt, %17, %18 : vector<16x1xi32>
    %cst_11 = arith.constant 0.000000e+00 : f32
    %20 = vector.shape_cast %19 : vector<16x1xi1> to vector<16x1xi1>
    %21 = vector.broadcast %20 : vector<16x1xi1> to vector<16x1280xi1>
    %22 = vector.broadcast %cst_11 : f32 to vector<16x1280xf32>
    %23 = arith.select %21, %13, %22 : vector<16x1280xi1>, vector<16x1280xf32>
    %cst_12 = arith.constant dense<0.000000e+00> : vector<1280xf32>
    %24 = vector.multi_reduction <add>, %23, %cst_12 [0] : vector<16x1280xf32> to vector<1280xf32>
    %25 = vector.shape_cast %24 : vector<1280xf32> to vector<1x1280xf32>
    %26 = arith.mulf %23, %23 : vector<16x1280xf32>
    %cst_13 = arith.constant dense<0.000000e+00> : vector<1280xf32>
    %27 = vector.multi_reduction <add>, %26, %cst_13 [0] : vector<16x1280xf32> to vector<1280xf32>
    %28 = vector.shape_cast %27 : vector<1280xf32> to vector<1x1280xf32>
    %29 = tpu.concatenate %25, %28 in 0 : vector<1x1280xf32>, vector<1x1280xf32> -> vector<2x1280xf32>
    %30 = vector.shape_cast %29 : vector<2x1280xf32> to vector<1x2x1280xf32>
    %c0_14 = arith.constant 0 : index
    %c0_15 = arith.constant 0 : index
    %c0_16 = arith.constant 0 : index
    %31 = vector.load %arg6[%c0_14, %c0_15, %c0_16] : memref<1x2x1280xf32, #tpu.memory_space<vmem>>, vector<1x2x1280xf32>
    tpu.vector_store %arg6[%c0_14, %c0_15, %c0_16], %30 {strides = array<i32>} : memref<1x2x1280xf32, #tpu.memory_space<vmem>>, vector<1x2x1280xf32>,
    %32 = arith.truncf %13 : vector<16x1280xf32> to vector<16x1280xbf16>
    %c0_17 = arith.constant 0 : index
    %c0_18 = arith.constant 0 : index
    %33 = vector.load %arg7[%c0_17, %c0_18] : memref<16x1280xbf16, #tpu.memory_space<vmem>>, vector<16x1280xbf16>
    tpu.vector_store %arg7[%c0_17, %c0_18], %32 {strides = array<i32>} : memref<16x1280xbf16, #tpu.memory_space<vmem>>, vector<16x1280xbf16>,
    return
  }
  func.func @transform_0(%arg0: i32) -> (i32, i32) {
    %c0_i32 = arith.constant 0 : i32
    %c0_i32_0 = arith.constant 0 : i32
    return %arg0, %c0_i32 : i32, i32
  }
  func.func @transform_1(%arg0: i32) -> (i32, i32) {
    %c0_i32 = arith.constant 0 : i32
    %c0_i32_0 = arith.constant 0 : i32
    %c0_i32_1 = arith.constant 0 : i32
    return %c0_i32, %c0_i32_0 : i32, i32
  }
  func.func @transform_2(%arg0: i32) -> (i32, i32) {
    %c0_i32 = arith.constant 0 : i32
    %c0_i32_0 = arith.constant 0 : i32
    %c0_i32_1 = arith.constant 0 : i32
    return %c0_i32, %c0_i32_0 : i32, i32
  }
  func.func @transform_3(%arg0: i32) -> (i32, i32) {
    %c0_i32 = arith.constant 0 : i32
    %c0_i32_0 = arith.constant 0 : i32
    %c0_i32_1 = arith.constant 0 : i32
    return %c0_i32, %c0_i32_0 : i32, i32
  }
  func.func @transform_4(%arg0: i32) -> (i32, i32) {
    %c0_i32 = arith.constant 0 : i32
    %c0_i32_0 = arith.constant 0 : i32
    %c0_i32_1 = arith.constant 0 : i32
    return %c0_i32, %c0_i32_0 : i32, i32
  }
  func.func @transform_5(%arg0: i32) -> (i32, i32, i32) {
    %c0_i32 = arith.constant 0 : i32
    %c0_i32_0 = arith.constant 0 : i32
    %c0_i32_1 = arith.constant 0 : i32
    return %arg0, %c0_i32, %c0_i32_0 : i32, i32, i32
  }
  func.func @transform_6(%arg0: i32) -> (i32, i32) {
    %c0_i32 = arith.constant 0 : i32
    %c0_i32_0 = arith.constant 0 : i32
    return %arg0, %c0_i32 : i32, i32
  }
}

module attributes {stable_mosaic.version = 11 : i64} {
  func.func @_apply_from_h2_kernel(%arg0: i32, %arg1: memref<16x1280xbf16, #tpu.memory_space<vmem>>, %arg2: memref<1x1280xf32, #tpu.memory_space<vmem>>, %arg3: memref<1x1280xf32, #tpu.memory_space<vmem>>, %arg4: memref<1280x128xbf16, #tpu.memory_space<vmem>>, %arg5: memref<1x128xf32, #tpu.memory_space<vmem>>, %arg6: memref<128x64xbf16, #tpu.memory_space<vmem>>, %arg7: memref<1x64xf32, #tpu.memory_space<vmem>>, %arg8: memref<64x128xbf16, #tpu.memory_space<vmem>>, %arg9: memref<1x128xf32, #tpu.memory_space<vmem>>, %arg10: memref<16x128xf32, #tpu.memory_space<vmem>>) attributes {dimension_semantics = [#tpu.dimension_semantics<parallel>], iteration_bounds = array<i64: 1>, scalar_prefetch = 0 : i64, scratch_operands = 0 : i64, tpu.core_type = #tpu.core_type<tc>, window_params = [{transform_indices = @transform_0, window_bounds = array<i64: 16, 1280>}, {pipeline_mode = #tpu.pipeline_mode<synchronous>, transform_indices = @transform_1, window_bounds = array<i64: 1, 1280>}, {pipeline_mode = #tpu.pipeline_mode<synchronous>, transform_indices = @transform_2, window_bounds = array<i64: 1, 1280>}, {pipeline_mode = #tpu.pipeline_mode<synchronous>, transform_indices = @transform_3, window_bounds = array<i64: 1280, 128>}, {pipeline_mode = #tpu.pipeline_mode<synchronous>, transform_indices = @transform_4, window_bounds = array<i64: 1, 128>}, {pipeline_mode = #tpu.pipeline_mode<synchronous>, transform_indices = @transform_5, window_bounds = array<i64: 128, 64>}, {pipeline_mode = #tpu.pipeline_mode<synchronous>, transform_indices = @transform_6, window_bounds = array<i64: 1, 64>}, {pipeline_mode = #tpu.pipeline_mode<synchronous>, transform_indices = @transform_7, window_bounds = array<i64: 64, 128>}, {pipeline_mode = #tpu.pipeline_mode<synchronous>, transform_indices = @transform_8, window_bounds = array<i64: 1, 128>}, {transform_indices = @transform_9, window_bounds = array<i64: 16, 128>}]} {
    %c0 = arith.constant 0 : index
    %c0_0 = arith.constant 0 : index
    %0 = vector.load %arg1[%c0, %c0_0] : memref<16x1280xbf16, #tpu.memory_space<vmem>>, vector<16x1280xbf16>
    %1 = arith.extf %0 : vector<16x1280xbf16> to vector<16x1280xf32>
    %c0_1 = arith.constant 0 : index
    %c0_2 = arith.constant 0 : index
    %2 = vector.load %arg2[%c0_1, %c0_2] : memref<1x1280xf32, #tpu.memory_space<vmem>>, vector<1x1280xf32>
    %3 = vector.broadcast %2 : vector<1x1280xf32> to vector<16x1280xf32>
    %4 = arith.mulf %1, %3 : vector<16x1280xf32>
    %c0_3 = arith.constant 0 : index
    %c0_4 = arith.constant 0 : index
    %5 = vector.load %arg3[%c0_3, %c0_4] : memref<1x1280xf32, #tpu.memory_space<vmem>>, vector<1x1280xf32>
    %6 = vector.broadcast %5 : vector<1x1280xf32> to vector<16x1280xf32>
    %7 = arith.addf %4, %6 : vector<16x1280xf32>
    %cst = arith.constant 0.000000e+00 : f32
    %8 = vector.broadcast %cst : f32 to vector<16x1280xf32>
    %9 = arith.maximumf %7, %8 : vector<16x1280xf32>
    %10 = arith.truncf %9 : vector<16x1280xf32> to vector<16x1280xbf16>
    %c0_5 = arith.constant 0 : index
    %c0_6 = arith.constant 0 : index
    %11 = vector.load %arg4[%c0_5, %c0_6] : memref<1280x128xbf16, #tpu.memory_space<vmem>>, vector<1280x128xbf16>
    %cst_7 = arith.constant dense<0.000000e+00> : vector<16x128xf32>
    %12 = tpu.matmul %10, %11, %cst_7 {dimension_numbers = #tpu.dot_dimension_numbers<[1], [0], [0], [1], [0, 0, 1, 1], [], []>} : vector<16x1280xbf16>, vector<1280x128xbf16>, vector<16x128xf32> -> vector<16x128xf32>
    %c0_8 = arith.constant 0 : index
    %c0_9 = arith.constant 0 : index
    %13 = vector.load %arg5[%c0_8, %c0_9] : memref<1x128xf32, #tpu.memory_space<vmem>>, vector<1x128xf32>
    %14 = vector.broadcast %13 : vector<1x128xf32> to vector<16x128xf32>
    %15 = arith.addf %12, %14 : vector<16x128xf32>
    %cst_10 = arith.constant 0.000000e+00 : f32
    %16 = vector.broadcast %cst_10 : f32 to vector<16x128xf32>
    %17 = arith.maximumf %15, %16 : vector<16x128xf32>
    %18 = arith.truncf %17 : vector<16x128xf32> to vector<16x128xbf16>
    %c0_11 = arith.constant 0 : index
    %c0_12 = arith.constant 0 : index
    %19 = vector.load %arg6[%c0_11, %c0_12] : memref<128x64xbf16, #tpu.memory_space<vmem>>, vector<128x64xbf16>
    %cst_13 = arith.constant dense<0.000000e+00> : vector<16x64xf32>
    %20 = tpu.matmul %18, %19, %cst_13 {dimension_numbers = #tpu.dot_dimension_numbers<[1], [0], [0], [1], [0, 0, 1, 1], [], []>} : vector<16x128xbf16>, vector<128x64xbf16>, vector<16x64xf32> -> vector<16x64xf32>
    %c0_14 = arith.constant 0 : index
    %c0_15 = arith.constant 0 : index
    %21 = vector.load %arg7[%c0_14, %c0_15] : memref<1x64xf32, #tpu.memory_space<vmem>>, vector<1x64xf32>
    %22 = vector.broadcast %21 : vector<1x64xf32> to vector<16x64xf32>
    %23 = arith.addf %20, %22 : vector<16x64xf32>
    %cst_16 = arith.constant 0.000000e+00 : f32
    %24 = vector.broadcast %cst_16 : f32 to vector<16x64xf32>
    %25 = arith.maximumf %23, %24 : vector<16x64xf32>
    %26 = arith.truncf %25 : vector<16x64xf32> to vector<16x64xbf16>
    %c0_17 = arith.constant 0 : index
    %c0_18 = arith.constant 0 : index
    %27 = vector.load %arg8[%c0_17, %c0_18] : memref<64x128xbf16, #tpu.memory_space<vmem>>, vector<64x128xbf16>
    %cst_19 = arith.constant dense<0.000000e+00> : vector<16x128xf32>
    %28 = tpu.matmul %26, %27, %cst_19 {dimension_numbers = #tpu.dot_dimension_numbers<[1], [0], [0], [1], [0, 0, 1, 1], [], []>} : vector<16x64xbf16>, vector<64x128xbf16>, vector<16x128xf32> -> vector<16x128xf32>
    %c0_20 = arith.constant 0 : index
    %c0_21 = arith.constant 0 : index
    %29 = vector.load %arg9[%c0_20, %c0_21] : memref<1x128xf32, #tpu.memory_space<vmem>>, vector<1x128xf32>
    %30 = vector.broadcast %29 : vector<1x128xf32> to vector<16x128xf32>
    %31 = arith.addf %28, %30 : vector<16x128xf32>
    %c0_22 = arith.constant 0 : index
    %c0_23 = arith.constant 0 : index
    %32 = vector.load %arg10[%c0_22, %c0_23] : memref<16x128xf32, #tpu.memory_space<vmem>>, vector<16x128xf32>
    tpu.vector_store %arg10[%c0_22, %c0_23], %31 {strides = array<i32>} : memref<16x128xf32, #tpu.memory_space<vmem>>, vector<16x128xf32>,
    return
  }
  func.func @transform_0(%arg0: i32) -> (i32, i32) {
    %c0_i32 = arith.constant 0 : i32
    %c0_i32_0 = arith.constant 0 : i32
    return %arg0, %c0_i32 : i32, i32
  }
  func.func @transform_1(%arg0: i32) -> (i32, i32) {
    %c0_i32 = arith.constant 0 : i32
    %c0_i32_0 = arith.constant 0 : i32
    %c0_i32_1 = arith.constant 0 : i32
    return %c0_i32, %c0_i32_0 : i32, i32
  }
  func.func @transform_2(%arg0: i32) -> (i32, i32) {
    %c0_i32 = arith.constant 0 : i32
    %c0_i32_0 = arith.constant 0 : i32
    %c0_i32_1 = arith.constant 0 : i32
    return %c0_i32, %c0_i32_0 : i32, i32
  }
  func.func @transform_3(%arg0: i32) -> (i32, i32) {
    %c0_i32 = arith.constant 0 : i32
    %c0_i32_0 = arith.constant 0 : i32
    %c0_i32_1 = arith.constant 0 : i32
    return %c0_i32, %c0_i32_0 : i32, i32
  }
  func.func @transform_4(%arg0: i32) -> (i32, i32) {
    %c0_i32 = arith.constant 0 : i32
    %c0_i32_0 = arith.constant 0 : i32
    %c0_i32_1 = arith.constant 0 : i32
    return %c0_i32, %c0_i32_0 : i32, i32
  }
  func.func @transform_5(%arg0: i32) -> (i32, i32) {
    %c0_i32 = arith.constant 0 : i32
    %c0_i32_0 = arith.constant 0 : i32
    %c0_i32_1 = arith.constant 0 : i32
    return %c0_i32, %c0_i32_0 : i32, i32
  }
  func.func @transform_6(%arg0: i32) -> (i32, i32) {
    %c0_i32 = arith.constant 0 : i32
    %c0_i32_0 = arith.constant 0 : i32
    %c0_i32_1 = arith.constant 0 : i32
    return %c0_i32, %c0_i32_0 : i32, i32
  }
  func.func @transform_7(%arg0: i32) -> (i32, i32) {
    %c0_i32 = arith.constant 0 : i32
    %c0_i32_0 = arith.constant 0 : i32
    %c0_i32_1 = arith.constant 0 : i32
    return %c0_i32, %c0_i32_0 : i32, i32
  }
  func.func @transform_8(%arg0: i32) -> (i32, i32) {
    %c0_i32 = arith.constant 0 : i32
    %c0_i32_0 = arith.constant 0 : i32
    %c0_i32_1 = arith.constant 0 : i32
    return %c0_i32, %c0_i32_0 : i32, i32
  }
  func.func @transform_9(%arg0: i32) -> (i32, i32) {
    %c0_i32 = arith.constant 0 : i32
    %c0_i32_0 = arith.constant 0 : i32
    return %arg0, %c0_i32 : i32, i32
  }
}

</mosaic_0001>

<llo_original>
// kernel: tpu_custom_call.1
$region0: #{tpu_custom_call.1}
  #allocation0 [shape = 'u32[]', space=smem, size = 0x4, offset = 0x4, fixed_abs, tag = 'smem constant byte address 0x4 - core index']
  #allocation1 [shape = 'u32[144,128]{1,0:T(1,128)}', space=vmem, size = 0x12000, scoped, tag = 'internal scratch']
  %s0 = inlined_call_operand.hbm [shape: f32[8,128], index: 0, kind: input, shape index: {}]
  %s1 = inlined_call_operand.hbm [shape: f32[8,128], index: 1, kind: output, shape index: {}]
  %s2 = sld [smem:[#allocation0]]
  $region41: #{tpu_custom_call.1} parent=0
    _
  %s4 = ssub.s32 1, %s2
  %s5 = scalar_select 0, %s4, %s2
  $region1: #{tpu_custom_call.1} parent=0
    #allocation2 [shape = 'u8[4096]{0}', space=vmem, size = 0x1000, scoped, tag = 'input window, operand 0, single buffered']
    #allocation3 [shape = 's32[2]{0}', space=sflag, size = 0x8, scoped, tag = 'scoped memory for tpu_custom_call.1']
    #allocation4 [shape = 's32[2]{0}', space=sflag, size = 0x8, scoped, tag = 'scoped memory for tpu_custom_call.1']
    #allocation5 [shape = 'u8[4096]{0}', space=vmem, size = 0x1000, scoped, tag = 'output window, operand 0, single buffered']
    %6 = vsyncpa [#allocation3], 0
    %7 = vsyncpa [#allocation4], 0
    loop: start=0, step=1, limit=4
    $region2: #{tpu_custom_call.1} parent=1 // loop_pre_header
      _
    $region3: #{tpu_custom_call.1} parent=1 // loop_header
      %s9 = sphi 0, %s13
      %p10 = scmp.ge.s32.totalorder %s9, 4
      %s17 = sphi 0, %s17
      %s19 = sphi 0, %s17
      %s20 = sphi 0, %s19
      %s34 = sphi 0, %s20
      %s38 = sphi 0, %s38
      %s40 = sphi 0, %s38
      %s41 = sphi 0, %s40
      %s55 = sphi 0, %s41
    $region4: #{tpu_custom_call.1} parent=1 // loop_header_branch
      %12 = sbr.rel (%p10) target = $region8
    $region5: #{tpu_custom_call.1} parent=1 // loop_body
      %s14 = ssub.s32 %s9, 1
      %s15 = ssub.s32 %s9, 2
      %s16 = sadd.s32 %s9, 1
      %s18 = sadd.s32 %s17, 1
      %p21 = scmp.eq.s32.totalorder %s9, 1
      %p22 = scmp.ne.s32.totalorder %s17, %s19
      %p23 = scmp.eq.s32.totalorder %s9, 0
      %p24 = por %p22, %p23
      %p25 = scmp.ne.s32.totalorder %s17, %s19
      %p26 = scmp.eq.s32.totalorder %s14, 1
      %p27 = por %p25, %p26
      %p28 = scmp.ne.s32.totalorder %s19, %s20
      %p29 = scmp.eq.s32.totalorder %s14, 0
      %p30 = por %p28, %p29
      %p31 = scmp.ne.s32.totalorder %s19, %s20
      %p32 = scmp.eq.s32.totalorder %s15, 1
      %p33 = por %p31, %p32
      %p35 = scmp.ne.s32.totalorder %s20, %s34
      %p36 = scmp.eq.s32.totalorder %s15, 0
      %p37 = por %p35, %p36
      %s39 = sadd.s32 %s38, 1
      %p42 = scmp.eq.s32.totalorder %s9, 1
      %p43 = scmp.ne.s32.totalorder %s38, %s40
      %p44 = scmp.eq.s32.totalorder %s9, 0
      %p45 = por %p43, %p44
      %p46 = scmp.ne.s32.totalorder %s38, %s40
      %p47 = scmp.eq.s32.totalorder %s14, 1
      %p48 = por %p46, %p47
      %p49 = scmp.ne.s32.totalorder %s40, %s41
      %p50 = scmp.eq.s32.totalorder %s14, 0
      %p51 = por %p49, %p50
      %p52 = scmp.ne.s32.totalorder %s40, %s41
      %p53 = scmp.eq.s32.totalorder %s15, 1
      %p54 = por %p52, %p53
      %p56 = scmp.ne.s32.totalorder %s41, %s55
      %p57 = scmp.eq.s32.totalorder %s15, 0
      %p58 = por %p56, %p57
      %p59 = scmp.le.s32.totalorder 1, %s9
      %p60 = scmp.lt.s32.totalorder %s9, 3
      %p61 = pnand %p59, %p60
      %p62 = pneg %p61
      // Predicated region
      $region9: #{tpu_custom_call.1} parent=5 // pred_check
        _
      $region10: #{tpu_custom_call.1} parent=5 // pred_check_branch
        %64 = sbr.rel (%p61) target = $region12
      $region11: #{tpu_custom_call.1} parent=5 // pred_region
        %s65 = ssub.s32 %s9, 1
        // Predicated region
        $region13: #{tpu_custom_call.1} parent=11 // pred_check
          %p66 = pneg %p30
        $region14: #{tpu_custom_call.1} parent=11 // pred_check_branch
          %68 = sbr.rel (%p66) target = $region16
        $region15: #{tpu_custom_call.1} parent=11 // pred_region
          %s70 = ssub.s32 128, 128
          %71 = vsyncadd [#allocation3], %s70
          %s73 = sshll.u32 [#allocation2], 4
          %s74 = int_to_ptr.vmem [resolvable:$true] %s73
          %76 = dma.hbm_to_vmem [thread:$0]  %s0, 128, %s74, [#allocation3]
        $region16: #{tpu_custom_call.1} parent=11 // pred_fallthru
          _
      $region12: #{tpu_custom_call.1} parent=5 // pred_fallthru
        _
      %p77 = scmp.lt.s32.totalorder %s9, 2
      // Predicated region
      $region17: #{tpu_custom_call.1} parent=5 // pred_check
        %p78 = pneg %p77
      $region18: #{tpu_custom_call.1} parent=5 // pred_check_branch
        %80 = sbr.rel (%p78) target = $region20
      $region19: #{tpu_custom_call.1} parent=5 // pred_region
        _
      $region20: #{tpu_custom_call.1} parent=5 // pred_fallthru
        _
      %p81 = scmp.le.s32.totalorder 1, %s9
      %p82 = scmp.lt.s32.totalorder %s9, 3
      %p83 = pnand %p81, %p82
      %p84 = pneg %p83
      // Predicated region
      $region21: #{tpu_custom_call.1} parent=5 // pred_check
        _
      $region22: #{tpu_custom_call.1} parent=5 // pred_check_branch
        %86 = sbr.rel (%p83) target = $region24
      $region23: #{tpu_custom_call.1} parent=5 // pred_region
        %s87 = ssub.s32 %s9, 1
        // Predicated region
        $region25: #{tpu_custom_call.1} parent=23 // pred_check
          %p88 = pneg %p30
        $region26: #{tpu_custom_call.1} parent=23 // pred_check_branch
          %90 = sbr.rel (%p88) target = $region28
        $region27: #{tpu_custom_call.1} parent=23 // pred_region
          %91 = dma.done [#allocation3], 128
        $region28: #{tpu_custom_call.1} parent=23 // pred_fallthru
          _
        %p92 = pneg %p30
        %p93 = pneg %p27
        %p94 = pneg %p51
        %p95 = pneg %p48
        %v96 = vld [vmem:[#allocation2] sm:$0xff]
        %v97 = vadd.f32 %v96, 1.0
        %98 = vst [vmem:[#allocation5] sm:$0xff] %v97
        // Predicated region
        $region29: #{tpu_custom_call.1} parent=23 // pred_check
          %p99 = pneg %p48
        $region30: #{tpu_custom_call.1} parent=23 // pred_check_branch
          %101 = sbr.rel (%p99) target = $region32
        $region31: #{tpu_custom_call.1} parent=23 // pred_region
          %s103 = ssub.s32 128, 128
          %104 = vsyncadd [#allocation4], %s103
          %s106 = sshll.u32 [#allocation5], 4
          %s107 = int_to_ptr.vmem [resolvable:$true] %s106
          %109 = dma.vmem_to_hbm [thread:$0]  %s107, 128, %s1, [#allocation4]
        $region32: #{tpu_custom_call.1} parent=23 // pred_fallthru
          _
        // Predicated region
        $region33: #{tpu_custom_call.1} parent=23 // pred_check
          %p110 = pneg %p48
        $region34: #{tpu_custom_call.1} parent=23 // pred_check_branch
          %112 = sbr.rel (%p110) target = $region36
        $region35: #{tpu_custom_call.1} parent=23 // pred_region
          %113 = dma.done [#allocation4], 128
        $region36: #{tpu_custom_call.1} parent=23 // pred_fallthru
          _
      $region24: #{tpu_custom_call.1} parent=5 // pred_fallthru
        _
      %p114 = scmp.le.s32.totalorder 2, %s9
      // Predicated region
      $region37: #{tpu_custom_call.1} parent=5 // pred_check
        %p115 = pneg %p114
      $region38: #{tpu_custom_call.1} parent=5 // pred_check_branch
        %117 = sbr.rel (%p115) target = $region40
      $region39: #{tpu_custom_call.1} parent=5 // pred_region
        %s118 = ssub.s32 %s9, 2
      $region40: #{tpu_custom_call.1} parent=5 // pred_fallthru
        _
    $region6: #{tpu_custom_call.1} parent=1 // loop_footer
      %s13 = sadd.s32 1, %s9
    $region7: #{tpu_custom_call.1} parent=1 // loop_footer_branch
      %8 = sbr.rel target = $region3
    $region8: #{tpu_custom_call.1} parent=1 // loop_exit
      _
    %119 = vsyncpa [#allocation3], 1
    %s120 = scalar_lea.sflag [#allocation3], 1
    %121 = vsyncpa %s120, 1
    %122 = vsyncpa [#allocation4], 1
    %s123 = scalar_lea.sflag [#allocation4], 1
    %124 = vsyncpa %s123, 1

// kernel: micro_chess_forward.3
$region0: #{micro_chess_forward.3}
  #allocation0 [shape = 'u32[]', space=smem, size = 0x4, offset = 0x4, fixed_abs, tag = 'smem constant byte address 0x4 - core index']
  #allocation1 [shape = 'u32[144,128]{1,0:T(1,128)}', space=vmem, size = 0x12000, scoped, tag = 'internal scratch']
  %s0 = inlined_call_operand.vmem [shape: bf16[16,20], index: 0, kind: input, shape index: {}]
  %s1 = inlined_call_operand.hbm [shape: bf16[20,640], index: 1, kind: input, shape index: {}]
  %s2 = inlined_call_operand.vmem [shape: f32[1,2,640], index: 2, kind: output, shape index: {}]
  %s3 = sld [smem:[#allocation0]]
  $region22: #{micro_chess_forward.3} parent=0
    _
  %s5 = ssub.s32 1, %s3
  %s6 = scalar_select 0, %s5, %s3
  $region1: #{micro_chess_forward.3} parent=0
    #allocation2 [shape = 'u8[30720]{0}', space=vmem, size = 0x7800, scoped, tag = 'input window, operand 1, single buffered']
    #allocation3 [shape = 's32[1]{0}', space=sflag, size = 0x4, scoped, tag = 'scoped memory for micro_chess_forward.3']
    %7 = vsyncpa [#allocation3], 0
    // Predicated region
    $region2: #{micro_chess_forward.3} parent=1 // pred_check
      _
    $region3: #{micro_chess_forward.3} parent=1 // pred_check_branch
      %9 = sbr.rel (0) target = $region5
    $region4: #{micro_chess_forward.3} parent=1 // pred_region
      _
    $region5: #{micro_chess_forward.3} parent=1 // pred_fallthru
      _
    // Predicated region
    $region6: #{micro_chess_forward.3} parent=1 // pred_check
      _
    $region7: #{micro_chess_forward.3} parent=1 // pred_check_branch
      %11 = sbr.rel (0) target = $region9
    $region8: #{micro_chess_forward.3} parent=1 // pred_region
      %s13 = ssub.s32 960, 960
      %14 = vsyncadd [#allocation3], %s13
      %s15 = sshll.u32 [#allocation2], 4
      %s16 = int_to_ptr.vmem [resolvable:$true] %s15
      %21 = dma.hbm_to_vmem [thread:$0]  %s1, 960, %s16, [#allocation3], 320, 320, 20
    $region9: #{micro_chess_forward.3} parent=1 // pred_fallthru
      _
    // Predicated region
    $region10: #{micro_chess_forward.3} parent=1 // pred_check
      _
    $region11: #{micro_chess_forward.3} parent=1 // pred_check_branch
      %23 = sbr.rel (0) target = $region13
    $region12: #{micro_chess_forward.3} parent=1 // pred_region
      %24 = dma.done [#allocation3], 960
    $region13: #{micro_chess_forward.3} parent=1 // pred_fallthru
      _
    %v26 = vld [vmem:[%s0] sm:$0xf]
    %v27 = vld [vmem:[%s0 + $0x4] sm:$0xf]
    %v28 = vld [vmem:[#allocation2] sm:$0xff]
    %v29 = vld [vmem:[#allocation2 + $0x8] sm:$0xff]
    %v30 = vld [vmem:[#allocation2 + $0x10] sm:$0xf]
    %v31 = vld [vmem:[#allocation2 + $0x14] sm:$0xff]
    %v32 = vld [vmem:[#allocation2 + $0x1c] sm:$0xff]
    %v33 = vld [vmem:[#allocation2 + $0x24] sm:$0xf]
    %v34 = vld [vmem:[#allocation2 + $0x28] sm:$0x33]
    %v35 = vld [vmem:[#allocation2 + $0x30] sm:$0x33]
    %v36 = vld [vmem:[#allocation2 + $0x38] sm:$0x3]
    %v39 = vunpack.c.l.b16 %v26
    %v40 = vunpack.c.l.b16 %v27
    %v41 = vpack.c.b16 %v40, %v39
    %v51 = vunpack.c.l.b16 %v28
    %v52 = vunpack.c.h.b16 %v28
    %v53 = vunpack.c.l.b16 %v29
    %v54 = vunpack.c.h.b16 %v29
    %v55 = vunpack.c.l.b16 %v30
    %v56 = vunpack.c.l.b16 %v31
    %v57 = vunpack.c.h.b16 %v31
    %v58 = vunpack.c.l.b16 %v32
    %v59 = vunpack.c.h.b16 %v32
    %v60 = vunpack.c.l.b16 %v33
    %v61 = vunpack.c.l.b16 %v34
    %v62 = vunpack.c.h.b16 %v34
    %v63 = vunpack.c.l.b16 %v35
    %v64 = vunpack.c.h.b16 %v35
    %v65 = vunpack.c.l.b16 %v36
    %v66 = vpack.c.b16 %v56, %v51
    %v67 = vpack.c.b16 %v57, %v52
    %v68 = vpack.c.b16 %v58, %v53
    %v69 = vpack.c.b16 %v59, %v54
    %v70 = vpack.c.b16 %v60, %v55
    %v71 = vpack.c.b16 %v61, %v61
    %v72 = vpack.c.b16 %v62, %v62
    %v73 = vpack.c.b16 %v63, %v63
    %v74 = vpack.c.b16 %v64, %v64
    %v75 = vpack.c.b16 %v65, %v65
    %vm81 = vcmask 162816
    %v83 = vsel %vm81, %v41, 0
    %vm85 = vcmask 1041408
    %v87 = vsel %vm85, %v71, 0
    %v90 = vsel %vm85, %v72, 0
    %v93 = vsel %vm85, %v73, 0
    %v96 = vsel %vm85, %v74, 0
    %v99 = vsel %vm85, %v75, 0
    %101 = vmatprep.subr.bf16.mxu0 %v67
    %102 = vmatpush1.bf16.msra.mxu0 %v66
    %103 = vmatprep.subr.bf16.mxu0 %v90
    %104 = vmatpush1.bf16.msra.mxu0 %v87
    %105 = vmatprep.subr.bf16.mxu0 0
    %106 = vmatpush1.bf16.msra.mxu0 0
    %107 = vmatprep.subr.bf16.mxu0 0
    %108 = vmatpush1.bf16.msra.mxu0 0
    %109 = vmatprep.subr.bf16.mxu0 0
    %110 = vmatpush1.bf16.msra.mxu0 0
    %111 = vmatprep.subr.bf16.mxu0 0
    %112 = vmatpush1.bf16.msra.mxu0 0
    %113 = vmatprep.subr.bf16.mxu0 0
    %114 = vmatpush1.bf16.msra.mxu0 0
    %115 = vmatprep.subr.bf16.mxu0 0
    %116 = vmatpush1.bf16.msra.mxu0 0
    %117 = vmatprep.subr.bf16.mxu0 0
    %118 = vmatpush1.bf16.msra.mxu0 0
    %119 = vmatprep.subr.bf16.mxu0 0
    %120 = vmatpush1.bf16.msra.mxu0 0
    %121 = vmatprep.subr.bf16.mxu0 0
    %122 = vmatpush1.bf16.msra.mxu0 0
    %123 = vmatprep.subr.bf16.mxu0 0
    %124 = vmatpush1.bf16.msra.mxu0 0
    %125 = vmatprep.subr.bf16.mxu0 0
    %126 = vmatpush1.bf16.msra.mxu0 0
    %127 = vmatprep.subr.bf16.mxu0 0
    %128 = vmatpush1.bf16.msra.mxu0 0
    %129 = vmatprep.subr.bf16.mxu0 0
    %130 = vmatpush1.bf16.msra.mxu0 0
    %131 = vmatprep.subr.bf16.mxu0 0
    %132 = vmatpush1.bf16.msra.mxu0 0
    %133 = vmatprep.mubr.bf16.mxu0 0
    %134 = vmatmul.mubr.bf16.gmra.mrb[0].mxu0 %v83
    %v135 = vpop.f32.mrb[0].mxu0
    %v136 = vadd.f32 0.0, %v135
    %v137 = vpop.f32.mrb[0].mxu0
    %v138 = vadd.f32 0.0, %v137
    %v139 = vpop.f32.mrb[0].mxu0
    %v140 = vadd.f32 0.0, %v139
    %v141 = vpop.f32.mrb[0].mxu0
    %v142 = vadd.f32 0.0, %v141
    %143 = vdwg.mxu0
    %144 = vmatprep.subr.bf16.mxu0 %v69
    %145 = vmatpush1.bf16.msra.mxu0 %v68
    %146 = vmatprep.subr.bf16.mxu0 %v96
    %147 = vmatpush1.bf16.msra.mxu0 %v93
    %148 = vmatprep.subr.bf16.mxu0 0
    %149 = vmatpush1.bf16.msra.mxu0 0
    %150 = vmatprep.subr.bf16.mxu0 0
    %151 = vmatpush1.bf16.msra.mxu0 0
    %152 = vmatprep.subr.bf16.mxu0 0
    %153 = vmatpush1.bf16.msra.mxu0 0
    %154 = vmatprep.subr.bf16.mxu0 0
    %155 = vmatpush1.bf16.msra.mxu0 0
    %156 = vmatprep.subr.bf16.mxu0 0
    %157 = vmatpush1.bf16.msra.mxu0 0
    %158 = vmatprep.subr.bf16.mxu0 0
    %159 = vmatpush1.bf16.msra.mxu0 0
    %160 = vmatprep.subr.bf16.mxu0 0
    %161 = vmatpush1.bf16.msra.mxu0 0
    %162 = vmatprep.subr.bf16.mxu0 0
    %163 = vmatpush1.bf16.msra.mxu0 0
    %164 = vmatprep.subr.bf16.mxu0 0
    %165 = vmatpush1.bf16.msra.mxu0 0
    %166 = vmatprep.subr.bf16.mxu0 0
    %167 = vmatpush1.bf16.msra.mxu0 0
    %168 = vmatprep.subr.bf16.mxu0 0
    %169 = vmatpush1.bf16.msra.mxu0 0
    %170 = vmatprep.subr.bf16.mxu0 0
    %171 = vmatpush1.bf16.msra.mxu0 0
    %172 = vmatprep.subr.bf16.mxu0 0
    %173 = vmatpush1.bf16.msra.mxu0 0
    %174 = vmatprep.subr.bf16.mxu0 0
    %175 = vmatpush1.bf16.msra.mxu0 0
    %176 = vmatprep.mubr.bf16.mxu0 0
    %177 = vmatmul.mubr.bf16.gmra.mrb[0].mxu0 %v83
    %v178 = vpop.f32.mrb[0].mxu0
    %v179 = vadd.f32 0.0, %v178
    %v180 = vpop.f32.mrb[0].mxu0
    %v181 = vadd.f32 0.0, %v180
    %v182 = vpop.f32.mrb[0].mxu0
    %v183 = vadd.f32 0.0, %v182
    %v184 = vpop.f32.mrb[0].mxu0
    %v185 = vadd.f32 0.0, %v184
    %186 = vdwg.mxu0
    %187 = vmatprep.subr.bf16.mxu0 0
    %188 = vmatpush1.bf16.msra.mxu0 %v70
    %189 = vmatprep.subr.bf16.mxu0 0
    %190 = vmatpush1.bf16.msra.mxu0 %v99
    %191 = vmatprep.subr.bf16.mxu0 0
    %192 = vmatpush1.bf16.msra.mxu0 0
    %193 = vmatprep.subr.bf16.mxu0 0
    %194 = vmatpush1.bf16.msra.mxu0 0
    %195 = vmatprep.subr.bf16.mxu0 0
    %196 = vmatpush1.bf16.msra.mxu0 0
    %197 = vmatprep.subr.bf16.mxu0 0
    %198 = vmatpush1.bf16.msra.mxu0 0
    %199 = vmatprep.subr.bf16.mxu0 0
    %200 = vmatpush1.bf16.msra.mxu0 0
    %201 = vmatprep.subr.bf16.mxu0 0
    %202 = vmatpush1.bf16.msra.mxu0 0
    %203 = vmatprep.subr.bf16.mxu0 0
    %204 = vmatpush1.bf16.msra.mxu0 0
    %205 = vmatprep.subr.bf16.mxu0 0
    %206 = vmatpush1.bf16.msra.mxu0 0
    %207 = vmatprep.subr.bf16.mxu0 0
    %208 = vmatpush1.bf16.msra.mxu0 0
    %209 = vmatprep.subr.bf16.mxu0 0
    %210 = vmatpush1.bf16.msra.mxu0 0
    %211 = vmatprep.subr.bf16.mxu0 0
    %212 = vmatpush1.bf16.msra.mxu0 0
    %213 = vmatprep.subr.bf16.mxu0 0
    %214 = vmatpush1.bf16.msra.mxu0 0
    %215 = vmatprep.subr.bf16.mxu0 0
    %216 = vmatpush1.bf16.msra.mxu0 0
    %217 = vmatprep.subr.bf16.mxu0 0
    %218 = vmatpush1.bf16.msra.mxu0 0
    %219 = vmatprep.mubr.bf16.mxu0 0
    %220 = vmatmul.mubr.bf16.gmra.mrb[0].mxu0 %v83
    %v221 = vpop.f32.mrb[0].mxu0
    %v222 = vadd.f32 0.0, %v221
    %v223 = vpop.f32.mrb[0].mxu0
    %v224 = vpop.f32.mrb[0].mxu0
    %v225 = vadd.f32 0.0, %v224
    %v226 = vpop.f32.mrb[0].mxu0
    %227 = vdwg.mxu0
    %v228 = vadd.f32 %v136, %v140
    %v229 = vrot.slane %v228, 4
    %v230 = vadd.f32 %v228, %v229
    %v231 = vrot.slane %v230, 2
    %v232 = vadd.f32 %v230, %v231
    %v233 = vrot.slane %v232, 1
    %v234 = vadd.f32 %v232, %v233
    %v235 = vadd.f32 %v138, %v142
    %v236 = vrot.slane %v235, 4
    %v237 = vadd.f32 %v235, %v236
    %v238 = vrot.slane %v237, 2
    %v239 = vadd.f32 %v237, %v238
    %v240 = vrot.slane %v239, 1
    %v241 = vadd.f32 %v239, %v240
    %v242 = vadd.f32 %v179, %v183
    %v243 = vrot.slane %v242, 4
    %v244 = vadd.f32 %v242, %v243
    %v245 = vrot.slane %v244, 2
    %v246 = vadd.f32 %v244, %v245
    %v247 = vrot.slane %v246, 1
    %v248 = vadd.f32 %v246, %v247
    %v249 = vadd.f32 %v181, %v185
    %v250 = vrot.slane %v249, 4
    %v251 = vadd.f32 %v249, %v250
    %v252 = vrot.slane %v251, 2
    %v253 = vadd.f32 %v251, %v252
    %v254 = vrot.slane %v253, 1
    %v255 = vadd.f32 %v253, %v254
    %v256 = vadd.f32 %v222, %v225
    %v257 = vrot.slane %v256, 4
    %v258 = vadd.f32 %v256, %v257
    %v259 = vrot.slane %v258, 2
    %v260 = vadd.f32 %v258, %v259
    %v261 = vrot.slane %v260, 1
    %v262 = vadd.f32 %v260, %v261
    %v263 = vmul.f32 %v136, %v136
    %v264 = vmul.f32 %v138, %v138
    %v265 = vmul.f32 %v179, %v179
    %v266 = vmul.f32 %v181, %v181
    %v267 = vmul.f32 %v222, %v222
    %v268 = vmul.f32 %v140, %v140
    %v269 = vmul.f32 %v142, %v142
    %v270 = vmul.f32 %v183, %v183
    %v271 = vmul.f32 %v185, %v185
    %v272 = vmul.f32 %v225, %v225
    %v273 = vadd.f32 %v263, %v268
    %v274 = vrot.slane %v273, 4
    %v275 = vadd.f32 %v273, %v274
    %v276 = vrot.slane %v275, 2
    %v277 = vadd.f32 %v275, %v276
    %v278 = vrot.slane %v277, 1
    %v279 = vadd.f32 %v277, %v278
    %v280 = vadd.f32 %v264, %v269
    %v281 = vrot.slane %v280, 4
    %v282 = vadd.f32 %v280, %v281
    %v283 = vrot.slane %v282, 2
    %v284 = vadd.f32 %v282, %v283
    %v285 = vrot.slane %v284, 1
    %v286 = vadd.f32 %v284, %v285
    %v287 = vadd.f32 %v265, %v270
    %v288 = vrot.slane %v287, 4
    %v289 = vadd.f32 %v287, %v288
    %v290 = vrot.slane %v289, 2
    %v291 = vadd.f32 %v289, %v290
    %v292 = vrot.slane %v291, 1
    %v293 = vadd.f32 %v291, %v292
    %v294 = vadd.f32 %v266, %v271
    %v295 = vrot.slane %v294, 4
    %v296 = vadd.f32 %v294, %v295
    %v297 = vrot.slane %v296, 2
    %v298 = vadd.f32 %v296, %v297
    %v299 = vrot.slane %v298, 1
    %v300 = vadd.f32 %v298, %v299
    %v301 = vadd.f32 %v267, %v272
    %v302 = vrot.slane %v301, 4
    %v303 = vadd.f32 %v301, %v302
    %v304 = vrot.slane %v303, 2
    %v305 = vadd.f32 %v303, %v304
    %v306 = vrot.slane %v305, 1
    %v307 = vadd.f32 %v305, %v306
    %vm308 = vcmask 1040384
    %v309 = vsel %vm308, %v234, %v279
    %v310 = vsel %vm308, %v241, %v286
    %v311 = vsel %vm308, %v248, %v293
    %v312 = vsel %vm308, %v255, %v300
    %v313 = vsel %vm308, %v262, %v307
    %v319 = vcombine.low %v309, %v310
    %v320 = vcombine.low %v311, %v312
    %v322 = vunpack.c.l.s4 1983009808
    %v323 = vunpack.c.0.s8 %v322
    %v324 = vlaneseq
    %v325 = vshrl.u32 %v324, 7
    %v326 = vsub.s32 %v323, %v325
    %v327 = vrot.slane %v319, %v326
    %v329 = vunpack.c.l.s4 1983009808
    %v330 = vunpack.c.0.s8 %v329
    %v331 = vlaneseq
    %v332 = vshrl.u32 %v331, 7
    %v333 = vsub.s32 %v330, %v332
    %v334 = vrot.slane %v320, %v333
    %v335 = vcombine.low %v327, %v334
    %v337 = vunpack.c.l.s4 1983009808
    %v338 = vunpack.c.0.s8 %v337
    %v339 = vlaneseq
    %v340 = vshrl.u32 %v339, 7
    %v341 = vsub.s32 %v338, %v340
    %v342 = vrot.slane %v313, %v341
    %345 = vst [vmem:[%s2] sm:$0xff] %v335
    %346 = vst [vmem:[%s2 + $0x8] sm:$0x3] %v342
    // Predicated region
    $region14: #{micro_chess_forward.3} parent=1 // pred_check
      _
    $region15: #{micro_chess_forward.3} parent=1 // pred_check_branch
      %348 = sbr.rel (0) target = $region17
    $region16: #{micro_chess_forward.3} parent=1 // pred_region
      _
    $region17: #{micro_chess_forward.3} parent=1 // pred_fallthru
      _
    // Predicated region
    $region18: #{micro_chess_forward.3} parent=1 // pred_check
      _
    $region19: #{micro_chess_forward.3} parent=1 // pred_check_branch
      %350 = sbr.rel (0) target = $region21
    $region20: #{micro_chess_forward.3} parent=1 // pred_region
      _
    $region21: #{micro_chess_forward.3} parent=1 // pred_fallthru
      _
    %351 = vsyncpa [#allocation3], 1

// kernel: micro_chess_forward.5
$region0: #{micro_chess_forward.5}
  #allocation0 [shape = 'u32[]', space=smem, size = 0x4, offset = 0x4, fixed_abs, tag = 'smem constant byte address 0x4 - core index']
  #allocation1 [shape = 'u32[144,128]{1,0:T(1,128)}', space=vmem, size = 0x12000, scoped, tag = 'internal scratch']
  %s0 = inlined_call_operand.vmem [shape: bf16[16,1280], index: 0, kind: input, shape index: {}]
  %s1 = inlined_call_operand.vmem [shape: f32[1,1280], index: 1, kind: input, shape index: {}]
  %s2 = inlined_call_operand.vmem [shape: f32[1,1280], index: 2, kind: input, shape index: {}]
  %s3 = inlined_call_operand.vmem [shape: bf16[1280,128], index: 3, kind: input, shape index: {}]
  %s4 = inlined_call_operand.vmem [shape: f32[1,128], index: 4, kind: input, shape index: {}]
  %s5 = inlined_call_operand.vmem [shape: bf16[128,64], index: 5, kind: input, shape index: {}]
  %s6 = inlined_call_operand.vmem [shape: f32[1,64], index: 6, kind: input, shape index: {}]
  %s7 = inlined_call_operand.vmem [shape: bf16[64,128], index: 7, kind: input, shape index: {}]
  %s8 = inlined_call_operand.vmem [shape: f32[1,128], index: 8, kind: input, shape index: {}]
  %s9 = inlined_call_operand.vmem [shape: f32[16,128], index: 9, kind: output, shape index: {}]
  %s10 = sld [smem:[#allocation0]]
  $region46: #{micro_chess_forward.5} parent=0
    _
  %s12 = ssub.s32 1, %s10
  %s13 = scalar_select 0, %s12, %s10
  // Predicated region
  $region2: #{micro_chess_forward.5} parent=0 // pred_check
    _
  $region3: #{micro_chess_forward.5} parent=0 // pred_check_branch
    %15 = sbr.rel (0) target = $region5
  $region4: #{micro_chess_forward.5} parent=0 // pred_region
    _
  $region5: #{micro_chess_forward.5} parent=0 // pred_fallthru
    _
  // Predicated region
  $region6: #{micro_chess_forward.5} parent=0 // pred_check
    _
  $region7: #{micro_chess_forward.5} parent=0 // pred_check_branch
    %17 = sbr.rel (0) target = $region9
  $region8: #{micro_chess_forward.5} parent=0 // pred_region
    _
  $region9: #{micro_chess_forward.5} parent=0 // pred_fallthru
    _
  // Predicated region
  $region10: #{micro_chess_forward.5} parent=0 // pred_check
    _
  $region11: #{micro_chess_forward.5} parent=0 // pred_check_branch
    %19 = sbr.rel (0) target = $region13
  $region12: #{micro_chess_forward.5} parent=0 // pred_region
    _
  $region13: #{micro_chess_forward.5} parent=0 // pred_fallthru
    _
  // Predicated region
  $region14: #{micro_chess_forward.5} parent=0 // pred_check
    _
  $region15: #{micro_chess_forward.5} parent=0 // pred_check_branch
    %21 = sbr.rel (0) target = $region17
  $region16: #{micro_chess_forward.5} parent=0 // pred_region
    _
  $region17: #{micro_chess_forward.5} parent=0 // pred_fallthru
    _
  // Predicated region
  $region18: #{micro_chess_forward.5} parent=0 // pred_check
    _
  $region19: #{micro_chess_forward.5} parent=0 // pred_check_branch
    %23 = sbr.rel (0) target = $region21
  $region20: #{micro_chess_forward.5} parent=0 // pred_region
    _
  $region21: #{micro_chess_forward.5} parent=0 // pred_fallthru
    _
  // Predicated region
  $region22: #{micro_chess_forward.5} parent=0 // pred_check
    _
  $region23: #{micro_chess_forward.5} parent=0 // pred_check_branch
    %25 = sbr.rel (0) target = $region25
  $region24: #{micro_chess_forward.5} parent=0 // pred_region
    _
  $region25: #{micro_chess_forward.5} parent=0 // pred_fallthru
    _
  // Predicated region
  $region26: #{micro_chess_forward.5} parent=0 // pred_check
    _
  $region27: #{micro_chess_forward.5} parent=0 // pred_check_branch
    %27 = sbr.rel (0) target = $region29
  $region28: #{micro_chess_forward.5} parent=0 // pred_region
    _
  $region29: #{micro_chess_forward.5} parent=0 // pred_fallthru
    _
  // Predicated region
  $region30: #{micro_chess_forward.5} parent=0 // pred_check
    _
  $region31: #{micro_chess_forward.5} parent=0 // pred_check_branch
    %29 = sbr.rel (0) target = $region33
  $region32: #{micro_chess_forward.5} parent=0 // pred_region
    _
  $region33: #{micro_chess_forward.5} parent=0 // pred_fallthru
    _
  // Predicated region
  $region34: #{micro_chess_forward.5} parent=0 // pred_check
    _
  $region35: #{micro_chess_forward.5} parent=0 // pred_check_branch
    %31 = sbr.rel (0) target = $region37
  $region36: #{micro_chess_forward.5} parent=0 // pred_region
    _
  $region37: #{micro_chess_forward.5} parent=0 // pred_fallthru
    _
  %v33 = vld [vmem:[%s0] sm:$0xff]
  %v34 = vld [vmem:[%s0 + $0x8] sm:$0xff]
  %v35 = vld [vmem:[%s0 + $0x10] sm:$0xff]
  %v36 = vld [vmem:[%s0 + $0x18] sm:$0xff]
  %v37 = vld [vmem:[%s0 + $0x20] sm:$0xff]
  %v38 = vld [vmem:[%s0 + $0x28] sm:$0xff]
  %v39 = vld [vmem:[%s0 + $0x30] sm:$0xff]
  %v40 = vld [vmem:[%s0 + $0x38] sm:$0xff]
  %v41 = vld [vmem:[%s0 + $0x40] sm:$0xff]
  %v42 = vld [vmem:[%s0 + $0x48] sm:$0xff]
  %v43 = vunpack.c.l.bf16 %v33
  %v44 = vunpack.c.h.bf16 %v33
  %v45 = vunpack.c.l.bf16 %v34
  %v46 = vunpack.c.h.bf16 %v34
  %v47 = vunpack.c.l.bf16 %v35
  %v48 = vunpack.c.h.bf16 %v35
  %v49 = vunpack.c.l.bf16 %v36
  %v50 = vunpack.c.h.bf16 %v36
  %v51 = vunpack.c.l.bf16 %v37
  %v52 = vunpack.c.h.bf16 %v37
  %v53 = vunpack.c.l.bf16 %v38
  %v54 = vunpack.c.h.bf16 %v38
  %v55 = vunpack.c.l.bf16 %v39
  %v56 = vunpack.c.h.bf16 %v39
  %v57 = vunpack.c.l.bf16 %v40
  %v58 = vunpack.c.h.bf16 %v40
  %v59 = vunpack.c.l.bf16 %v41
  %v60 = vunpack.c.h.bf16 %v41
  %v61 = vunpack.c.l.bf16 %v42
  %v62 = vunpack.c.h.bf16 %v42
  %v63 = vld [vmem:[%s1] sm:$0xff]
  %v64 = vld [vmem:[%s1 + $0x8] sm:$0x3]
  %v67 = vlaneseq
  %v68 = vshrl.u32 %v67, 7
  %v69 = vsub.s32 0, %v68
  %v70 = vrot.slane %v63, %v69
  %v71 = vlaneseq
  %v72 = vshrl.u32 %v71, 7
  %v73 = vsub.s32 1, %v72
  %v74 = vrot.slane %v63, %v73
  %v75 = vlaneseq
  %v76 = vshrl.u32 %v75, 7
  %v77 = vsub.s32 2, %v76
  %v78 = vrot.slane %v63, %v77
  %v79 = vlaneseq
  %v80 = vshrl.u32 %v79, 7
  %v81 = vsub.s32 3, %v80
  %v82 = vrot.slane %v63, %v81
  %v83 = vlaneseq
  %v84 = vshrl.u32 %v83, 7
  %v85 = vsub.s32 4, %v84
  %v86 = vrot.slane %v63, %v85
  %v87 = vlaneseq
  %v88 = vshrl.u32 %v87, 7
  %v89 = vsub.s32 5, %v88
  %v90 = vrot.slane %v63, %v89
  %v91 = vlaneseq
  %v92 = vshrl.u32 %v91, 7
  %v93 = vsub.s32 6, %v92
  %v94 = vrot.slane %v63, %v93
  %v95 = vlaneseq
  %v96 = vshrl.u32 %v95, 7
  %v97 = vsub.s32 7, %v96
  %v98 = vrot.slane %v63, %v97
  %v99 = vlaneseq
  %v100 = vshrl.u32 %v99, 7
  %v101 = vsub.s32 0, %v100
  %v102 = vrot.slane %v64, %v101
  %v103 = vlaneseq
  %v104 = vshrl.u32 %v103, 7
  %v105 = vsub.s32 1, %v104
  %v106 = vrot.slane %v64, %v105
  %v117 = vmul.f32 %v43, %v70
  %v118 = vmul.f32 %v44, %v74
  %v119 = vmul.f32 %v45, %v78
  %v120 = vmul.f32 %v46, %v82
  %v121 = vmul.f32 %v47, %v86
  %v122 = vmul.f32 %v48, %v90
  %v123 = vmul.f32 %v49, %v94
  %v124 = vmul.f32 %v50, %v98
  %v125 = vmul.f32 %v51, %v102
  %v126 = vmul.f32 %v52, %v106
  %v127 = vmul.f32 %v53, %v70
  %v128 = vmul.f32 %v54, %v74
  %v129 = vmul.f32 %v55, %v78
  %v130 = vmul.f32 %v56, %v82
  %v131 = vmul.f32 %v57, %v86
  %v132 = vmul.f32 %v58, %v90
  %v133 = vmul.f32 %v59, %v94
  %v134 = vmul.f32 %v60, %v98
  %v135 = vmul.f32 %v61, %v102
  %v136 = vmul.f32 %v62, %v106
  %v137 = vld [vmem:[%s2] sm:$0xff]
  %v138 = vld [vmem:[%s2 + $0x8] sm:$0x3]
  %v141 = vlaneseq
  %v142 = vshrl.u32 %v141, 7
  %v143 = vsub.s32 0, %v142
  %v144 = vrot.slane %v137, %v143
  %v145 = vlaneseq
  %v146 = vshrl.u32 %v145, 7
  %v147 = vsub.s32 1, %v146
  %v148 = vrot.slane %v137, %v147
  %v149 = vlaneseq
  %v150 = vshrl.u32 %v149, 7
  %v151 = vsub.s32 2, %v150
  %v152 = vrot.slane %v137, %v151
  %v153 = vlaneseq
  %v154 = vshrl.u32 %v153, 7
  %v155 = vsub.s32 3, %v154
  %v156 = vrot.slane %v137, %v155
  %v157 = vlaneseq
  %v158 = vshrl.u32 %v157, 7
  %v159 = vsub.s32 4, %v158
  %v160 = vrot.slane %v137, %v159
  %v161 = vlaneseq
  %v162 = vshrl.u32 %v161, 7
  %v163 = vsub.s32 5, %v162
  %v164 = vrot.slane %v137, %v163
  %v165 = vlaneseq
  %v166 = vshrl.u32 %v165, 7
  %v167 = vsub.s32 6, %v166
  %v168 = vrot.slane %v137, %v167
  %v169 = vlaneseq
  %v170 = vshrl.u32 %v169, 7
  %v171 = vsub.s32 7, %v170
  %v172 = vrot.slane %v137, %v171
  %v173 = vlaneseq
  %v174 = vshrl.u32 %v173, 7
  %v175 = vsub.s32 0, %v174
  %v176 = vrot.slane %v138, %v175
  %v177 = vlaneseq
  %v178 = vshrl.u32 %v177, 7
  %v179 = vsub.s32 1, %v178
  %v180 = vrot.slane %v138, %v179
  %v191 = vadd.f32 %v117, %v144
  %v192 = vadd.f32 %v118, %v148
  %v193 = vadd.f32 %v119, %v152
  %v194 = vadd.f32 %v120, %v156
  %v195 = vadd.f32 %v121, %v160
  %v196 = vadd.f32 %v122, %v164
  %v197 = vadd.f32 %v123, %v168
  %v198 = vadd.f32 %v124, %v172
  %v199 = vadd.f32 %v125, %v176
  %v200 = vadd.f32 %v126, %v180
  %v201 = vadd.f32 %v127, %v144
  %v202 = vadd.f32 %v128, %v148
  %v203 = vadd.f32 %v129, %v152
  %v204 = vadd.f32 %v130, %v156
  %v205 = vadd.f32 %v131, %v160
  %v206 = vadd.f32 %v132, %v164
  %v207 = vadd.f32 %v133, %v168
  %v208 = vadd.f32 %v134, %v172
  %v209 = vadd.f32 %v135, %v176
  %v210 = vadd.f32 %v136, %v180
  %v211 = vmax.f32 %v191, 0.0
  %v212 = vmax.f32 %v192, 0.0
  %v213 = vmax.f32 %v193, 0.0
  %v214 = vmax.f32 %v194, 0.0
  %v215 = vmax.f32 %v195, 0.0
  %v216 = vmax.f32 %v196, 0.0
  %v217 = vmax.f32 %v197, 0.0
  %v218 = vmax.f32 %v198, 0.0
  %v219 = vmax.f32 %v199, 0.0
  %v220 = vmax.f32 %v200, 0.0
  %v221 = vmax.f32 %v201, 0.0
  %v222 = vmax.f32 %v202, 0.0
  %v223 = vmax.f32 %v203, 0.0
  %v224 = vmax.f32 %v204, 0.0
  %v225 = vmax.f32 %v205, 0.0
  %v226 = vmax.f32 %v206, 0.0
  %v227 = vmax.f32 %v207, 0.0
  %v228 = vmax.f32 %v208, 0.0
  %v229 = vmax.f32 %v209, 0.0
  %v230 = vmax.f32 %v210, 0.0
  %v231 = vpack.c.bf16 %v221, %v211
  %v232 = vpack.c.bf16 %v222, %v212
  %v233 = vpack.c.bf16 %v223, %v213
  %v234 = vpack.c.bf16 %v224, %v214
  %v235 = vpack.c.bf16 %v225, %v215
  %v236 = vpack.c.bf16 %v226, %v216
  %v237 = vpack.c.bf16 %v227, %v217
  %v238 = vpack.c.bf16 %v228, %v218
  %v239 = vpack.c.bf16 %v229, %v219
  %v240 = vpack.c.bf16 %v230, %v220
  %v241 = vld [vmem:[%s3] sm:$0xf]
  %v242 = vld [vmem:[%s3 + $0x4] sm:$0xf]
  %v243 = vld [vmem:[%s3 + $0x8] sm:$0xf]
  %v244 = vld [vmem:[%s3 + $0xc] sm:$0xf]
  %v245 = vld [vmem:[%s3 + $0x10] sm:$0xf]
  %v246 = vld [vmem:[%s3 + $0x14] sm:$0xf]
  %v247 = vld [vmem:[%s3 + $0x18] sm:$0xf]
  %v248 = vld [vmem:[%s3 + $0x1c] sm:$0xf]
  %v249 = vld [vmem:[%s3 + $0x20] sm:$0xf]
  %v250 = vld [vmem:[%s3 + $0x24] sm:$0xf]
  %v251 = vld [vmem:[%s3 + $0x28] sm:$0xf]
  %v252 = vld [vmem:[%s3 + $0x2c] sm:$0xf]
  %v253 = vld [vmem:[%s3 + $0x30] sm:$0xf]
  %v254 = vld [vmem:[%s3 + $0x34] sm:$0xf]
  %v255 = vld [vmem:[%s3 + $0x38] sm:$0xf]
  %v256 = vld [vmem:[%s3 + $0x3c] sm:$0xf]
  %v257 = vld [vmem:[%s3 + $0x40] sm:$0xf]
  %v258 = vld [vmem:[%s3 + $0x44] sm:$0xf]
  %v259 = vld [vmem:[%s3 + $0x48] sm:$0xf]
  %v260 = vld [vmem:[%s3 + $0x4c] sm:$0xf]
  %v261 = vld [vmem:[%s3 + $0x50] sm:$0xf]
  %v262 = vld [vmem:[%s3 + $0x54] sm:$0xf]
  %v263 = vld [vmem:[%s3 + $0x58] sm:$0xf]
  %v264 = vld [vmem:[%s3 + $0x5c] sm:$0xf]
  %v265 = vld [vmem:[%s3 + $0x60] sm:$0xf]
  %v266 = vld [vmem:[%s3 + $0x64] sm:$0xf]
  %v267 = vld [vmem:[%s3 + $0x68] sm:$0xf]
  %v268 = vld [vmem:[%s3 + $0x6c] sm:$0xf]
  %v269 = vld [vmem:[%s3 + $0x70] sm:$0xf]
  %v270 = vld [vmem:[%s3 + $0x74] sm:$0xf]
  %v271 = vld [vmem:[%s3 + $0x78] sm:$0xf]
  %v272 = vld [vmem:[%s3 + $0x7c] sm:$0xf]
  %v273 = vld [vmem:[%s3 + $0x80] sm:$0xf]
  %v274 = vld [vmem:[%s3 + $0x84] sm:$0xf]
  %v275 = vld [vmem:[%s3 + $0x88] sm:$0xf]
  %v276 = vld [vmem:[%s3 + $0x8c] sm:$0xf]
  %v277 = vld [vmem:[%s3 + $0x90] sm:$0xf]
  %v278 = vld [vmem:[%s3 + $0x94] sm:$0xf]
  %v279 = vld [vmem:[%s3 + $0x98] sm:$0xf]
  %v280 = vld [vmem:[%s3 + $0x9c] sm:$0xf]
  %v281 = vld [vmem:[%s3 + $0xa0] sm:$0xf]
  %v282 = vld [vmem:[%s3 + $0xa4] sm:$0xf]
  %v283 = vld [vmem:[%s3 + $0xa8] sm:$0xf]
  %v284 = vld [vmem:[%s3 + $0xac] sm:$0xf]
  %v285 = vld [vmem:[%s3 + $0xb0] sm:$0xf]
  %v286 = vld [vmem:[%s3 + $0xb4] sm:$0xf]
  %v287 = vld [vmem:[%s3 + $0xb8] sm:$0xf]
  %v288 = vld [vmem:[%s3 + $0xbc] sm:$0xf]
  %v289 = vld [vmem:[%s3 + $0xc0] sm:$0xf]
  %v290 = vld [vmem:[%s3 + $0xc4] sm:$0xf]
  %v291 = vld [vmem:[%s3 + $0xc8] sm:$0xf]
  %v292 = vld [vmem:[%s3 + $0xcc] sm:$0xf]
  %v293 = vld [vmem:[%s3 + $0xd0] sm:$0xf]
  %v294 = vld [vmem:[%s3 + $0xd4] sm:$0xf]
  %v295 = vld [vmem:[%s3 + $0xd8] sm:$0xf]
  %v296 = vld [vmem:[%s3 + $0xdc] sm:$0xf]
  %v297 = vld [vmem:[%s3 + $0xe0] sm:$0xf]
  %v298 = vld [vmem:[%s3 + $0xe4] sm:$0xf]
  %v299 = vld [vmem:[%s3 + $0xe8] sm:$0xf]
  %v300 = vld [vmem:[%s3 + $0xec] sm:$0xf]
  %v301 = vld [vmem:[%s3 + $0xf0] sm:$0xf]
  %v302 = vld [vmem:[%s3 + $0xf4] sm:$0xf]
  %v303 = vld [vmem:[%s3 + $0xf8] sm:$0xf]
  %v304 = vld [vmem:[%s3 + $0xfc] sm:$0xf]
  %v305 = vld [vmem:[%s3 + $0x100] sm:$0xf]
  %v306 = vld [vmem:[%s3 + $0x104] sm:$0xf]
  %v307 = vld [vmem:[%s3 + $0x108] sm:$0xf]
  %v308 = vld [vmem:[%s3 + $0x10c] sm:$0xf]
  %v309 = vld [vmem:[%s3 + $0x110] sm:$0xf]
  %v310 = vld [vmem:[%s3 + $0x114] sm:$0xf]
  %v311 = vld [vmem:[%s3 + $0x118] sm:$0xf]
  %v312 = vld [vmem:[%s3 + $0x11c] sm:$0xf]
  %v313 = vld [vmem:[%s3 + $0x120] sm:$0xf]
  %v314 = vld [vmem:[%s3 + $0x124] sm:$0xf]
  %v315 = vld [vmem:[%s3 + $0x128] sm:$0xf]
  %v316 = vld [vmem:[%s3 + $0x12c] sm:$0xf]
  %v317 = vld [vmem:[%s3 + $0x130] sm:$0xf]
  %v318 = vld [vmem:[%s3 + $0x134] sm:$0xf]
  %v319 = vld [vmem:[%s3 + $0x138] sm:$0xf]
  %v320 = vld [vmem:[%s3 + $0x13c] sm:$0xf]
  %v321 = vld [vmem:[%s3 + $0x140] sm:$0xf]
  %v322 = vld [vmem:[%s3 + $0x144] sm:$0xf]
  %v323 = vld [vmem:[%s3 + $0x148] sm:$0xf]
  %v324 = vld [vmem:[%s3 + $0x14c] sm:$0xf]
  %v325 = vld [vmem:[%s3 + $0x150] sm:$0xf]
  %v326 = vld [vmem:[%s3 + $0x154] sm:$0xf]
  %v327 = vld [vmem:[%s3 + $0x158] sm:$0xf]
  %v328 = vld [vmem:[%s3 + $0x15c] sm:$0xf]
  %v329 = vld [vmem:[%s3 + $0x160] sm:$0xf]
  %v330 = vld [vmem:[%s3 + $0x164] sm:$0xf]
  %v331 = vld [vmem:[%s3 + $0x168] sm:$0xf]
  %v332 = vld [vmem:[%s3 + $0x16c] sm:$0xf]
  %v333 = vld [vmem:[%s3 + $0x170] sm:$0xf]
  %v334 = vld [vmem:[%s3 + $0x174] sm:$0xf]
  %v335 = vld [vmem:[%s3 + $0x178] sm:$0xf]
  %v336 = vld [vmem:[%s3 + $0x17c] sm:$0xf]
  %v337 = vld [vmem:[%s3 + $0x180] sm:$0xf]
  %v338 = vld [vmem:[%s3 + $0x184] sm:$0xf]
  %v339 = vld [vmem:[%s3 + $0x188] sm:$0xf]
  %v340 = vld [vmem:[%s3 + $0x18c] sm:$0xf]
  %v341 = vld [vmem:[%s3 + $0x190] sm:$0xf]
  %v342 = vld [vmem:[%s3 + $0x194] sm:$0xf]
  %v343 = vld [vmem:[%s3 + $0x198] sm:$0xf]
  %v344 = vld [vmem:[%s3 + $0x19c] sm:$0xf]
  %v345 = vld [vmem:[%s3 + $0x1a0] sm:$0xf]
  %v346 = vld [vmem:[%s3 + $0x1a4] sm:$0xf]
  %v347 = vld [vmem:[%s3 + $0x1a8] sm:$0xf]
  %v348 = vld [vmem:[%s3 + $0x1ac] sm:$0xf]
  %v349 = vld [vmem:[%s3 + $0x1b0] sm:$0xf]
  %v350 = vld [vmem:[%s3 + $0x1b4] sm:$0xf]
  %v351 = vld [vmem:[%s3 + $0x1b8] sm:$0xf]
  %v352 = vld [vmem:[%s3 + $0x1bc] sm:$0xf]
  %v353 = vld [vmem:[%s3 + $0x1c0] sm:$0xf]
  %v354 = vld [vmem:[%s3 + $0x1c4] sm:$0xf]
  %v355 = vld [vmem:[%s3 + $0x1c8] sm:$0xf]
  %v356 = vld [vmem:[%s3 + $0x1cc] sm:$0xf]
  %v357 = vld [vmem:[%s3 + $0x1d0] sm:$0xf]
  %v358 = vld [vmem:[%s3 + $0x1d4] sm:$0xf]
  %v359 = vld [vmem:[%s3 + $0x1d8] sm:$0xf]
  %v360 = vld [vmem:[%s3 + $0x1dc] sm:$0xf]
  %v361 = vld [vmem:[%s3 + $0x1e0] sm:$0xf]
  %v362 = vld [vmem:[%s3 + $0x1e4] sm:$0xf]
  %v363 = vld [vmem:[%s3 + $0x1e8] sm:$0xf]
  %v364 = vld [vmem:[%s3 + $0x1ec] sm:$0xf]
  %v365 = vld [vmem:[%s3 + $0x1f0] sm:$0xf]
  %v366 = vld [vmem:[%s3 + $0x1f4] sm:$0xf]
  %v367 = vld [vmem:[%s3 + $0x1f8] sm:$0xf]
  %v368 = vld [vmem:[%s3 + $0x1fc] sm:$0xf]
  %v369 = vld [vmem:[%s3 + $0x200] sm:$0xf]
  %v370 = vld [vmem:[%s3 + $0x204] sm:$0xf]
  %v371 = vld [vmem:[%s3 + $0x208] sm:$0xf]
  %v372 = vld [vmem:[%s3 + $0x20c] sm:$0xf]
  %v373 = vld [vmem:[%s3 + $0x210] sm:$0xf]
  %v374 = vld [vmem:[%s3 + $0x214] sm:$0xf]
  %v375 = vld [vmem:[%s3 + $0x218] sm:$0xf]
  %v376 = vld [vmem:[%s3 + $0x21c] sm:$0xf]
  %v377 = vld [vmem:[%s3 + $0x220] sm:$0xf]
  %v378 = vld [vmem:[%s3 + $0x224] sm:$0xf]
  %v379 = vld [vmem:[%s3 + $0x228] sm:$0xf]
  %v380 = vld [vmem:[%s3 + $0x22c] sm:$0xf]
  %v381 = vld [vmem:[%s3 + $0x230] sm:$0xf]
  %v382 = vld [vmem:[%s3 + $0x234] sm:$0xf]
  %v383 = vld [vmem:[%s3 + $0x238] sm:$0xf]
  %v384 = vld [vmem:[%s3 + $0x23c] sm:$0xf]
  %v385 = vld [vmem:[%s3 + $0x240] sm:$0xf]
  %v386 = vld [vmem:[%s3 + $0x244] sm:$0xf]
  %v387 = vld [vmem:[%s3 + $0x248] sm:$0xf]
  %v388 = vld [vmem:[%s3 + $0x24c] sm:$0xf]
  %v389 = vld [vmem:[%s3 + $0x250] sm:$0xf]
  %v390 = vld [vmem:[%s3 + $0x254] sm:$0xf]
  %v391 = vld [vmem:[%s3 + $0x258] sm:$0xf]
  %v392 = vld [vmem:[%s3 + $0x25c] sm:$0xf]
  %v393 = vld [vmem:[%s3 + $0x260] sm:$0xf]
  %v394 = vld [vmem:[%s3 + $0x264] sm:$0xf]
  %v395 = vld [vmem:[%s3 + $0x268] sm:$0xf]
  %v396 = vld [vmem:[%s3 + $0x26c] sm:$0xf]
  %v397 = vld [vmem:[%s3 + $0x270] sm:$0xf]
  %v398 = vld [vmem:[%s3 + $0x274] sm:$0xf]
  %v399 = vld [vmem:[%s3 + $0x278] sm:$0xf]
  %v400 = vld [vmem:[%s3 + $0x27c] sm:$0xf]
  %v401 = vld [vmem:[%s4] sm:$0x1]
  %v403 = vlaneseq
  %v404 = vshrl.u32 %v403, 7
  %v405 = vsub.s32 0, %v404
  %v406 = vrot.slane %v401, %v405
  %v568 = vunpack.c.l.b16 %v241
  %v569 = vunpack.c.l.b16 %v242
  %v570 = vunpack.c.l.b16 %v243
  %v571 = vunpack.c.l.b16 %v244
  %v572 = vunpack.c.l.b16 %v245
  %v573 = vunpack.c.l.b16 %v246
  %v574 = vunpack.c.l.b16 %v247
  %v575 = vunpack.c.l.b16 %v248
  %v576 = vunpack.c.l.b16 %v249
  %v577 = vunpack.c.l.b16 %v250
  %v578 = vunpack.c.l.b16 %v251
  %v579 = vunpack.c.l.b16 %v252
  %v580 = vunpack.c.l.b16 %v253
  %v581 = vunpack.c.l.b16 %v254
  %v582 = vunpack.c.l.b16 %v255
  %v583 = vunpack.c.l.b16 %v256
  %v584 = vunpack.c.l.b16 %v257
  %v585 = vunpack.c.l.b16 %v258
  %v586 = vunpack.c.l.b16 %v259
  %v587 = vunpack.c.l.b16 %v260
  %v588 = vunpack.c.l.b16 %v261
  %v589 = vunpack.c.l.b16 %v262
  %v590 = vunpack.c.l.b16 %v263
  %v591 = vunpack.c.l.b16 %v264
  %v592 = vunpack.c.l.b16 %v265
  %v593 = vunpack.c.l.b16 %v266
  %v594 = vunpack.c.l.b16 %v267
  %v595 = vunpack.c.l.b16 %v268
  %v596 = vunpack.c.l.b16 %v269
  %v597 = vunpack.c.l.b16 %v270
  %v598 = vunpack.c.l.b16 %v271
  %v599 = vunpack.c.l.b16 %v272
  %v600 = vunpack.c.l.b16 %v273
  %v601 = vunpack.c.l.b16 %v274
  %v602 = vunpack.c.l.b16 %v275
  %v603 = vunpack.c.l.b16 %v276
  %v604 = vunpack.c.l.b16 %v277
  %v605 = vunpack.c.l.b16 %v278
  %v606 = vunpack.c.l.b16 %v279
  %v607 = vunpack.c.l.b16 %v280
  %v608 = vunpack.c.l.b16 %v281
  %v609 = vunpack.c.l.b16 %v282
  %v610 = vunpack.c.l.b16 %v283
  %v611 = vunpack.c.l.b16 %v284
  %v612 = vunpack.c.l.b16 %v285
  %v613 = vunpack.c.l.b16 %v286
  %v614 = vunpack.c.l.b16 %v287
  %v615 = vunpack.c.l.b16 %v288
  %v616 = vunpack.c.l.b16 %v289
  %v617 = vunpack.c.l.b16 %v290
  %v618 = vunpack.c.l.b16 %v291
  %v619 = vunpack.c.l.b16 %v292
  %v620 = vunpack.c.l.b16 %v293
  %v621 = vunpack.c.l.b16 %v294
  %v622 = vunpack.c.l.b16 %v295
  %v623 = vunpack.c.l.b16 %v296
  %v624 = vunpack.c.l.b16 %v297
  %v625 = vunpack.c.l.b16 %v298
  %v626 = vunpack.c.l.b16 %v299
  %v627 = vunpack.c.l.b16 %v300
  %v628 = vunpack.c.l.b16 %v301
  %v629 = vunpack.c.l.b16 %v302
  %v630 = vunpack.c.l.b16 %v303
  %v631 = vunpack.c.l.b16 %v304
  %v632 = vunpack.c.l.b16 %v305
  %v633 = vunpack.c.l.b16 %v306
  %v634 = vunpack.c.l.b16 %v307
  %v635 = vunpack.c.l.b16 %v308
  %v636 = vunpack.c.l.b16 %v309
  %v637 = vunpack.c.l.b16 %v310
  %v638 = vunpack.c.l.b16 %v311
  %v639 = vunpack.c.l.b16 %v312
  %v640 = vunpack.c.l.b16 %v313
  %v641 = vunpack.c.l.b16 %v314
  %v642 = vunpack.c.l.b16 %v315
  %v643 = vunpack.c.l.b16 %v316
  %v644 = vunpack.c.l.b16 %v317
  %v645 = vunpack.c.l.b16 %v318
  %v646 = vunpack.c.l.b16 %v319
  %v647 = vunpack.c.l.b16 %v320
  %v648 = vunpack.c.l.b16 %v321
  %v649 = vunpack.c.l.b16 %v322
  %v650 = vunpack.c.l.b16 %v323
  %v651 = vunpack.c.l.b16 %v324
  %v652 = vunpack.c.l.b16 %v325
  %v653 = vunpack.c.l.b16 %v326
  %v654 = vunpack.c.l.b16 %v327
  %v655 = vunpack.c.l.b16 %v328
  %v656 = vunpack.c.l.b16 %v329
  %v657 = vunpack.c.l.b16 %v330
  %v658 = vunpack.c.l.b16 %v331
  %v659 = vunpack.c.l.b16 %v332
  %v660 = vunpack.c.l.b16 %v333
  %v661 = vunpack.c.l.b16 %v334
  %v662 = vunpack.c.l.b16 %v335
  %v663 = vunpack.c.l.b16 %v336
  %v664 = vunpack.c.l.b16 %v337
  %v665 = vunpack.c.l.b16 %v338
  %v666 = vunpack.c.l.b16 %v339
  %v667 = vunpack.c.l.b16 %v340
  %v668 = vunpack.c.l.b16 %v341
  %v669 = vunpack.c.l.b16 %v342
  %v670 = vunpack.c.l.b16 %v343
  %v671 = vunpack.c.l.b16 %v344
  %v672 = vunpack.c.l.b16 %v345
  %v673 = vunpack.c.l.b16 %v346
  %v674 = vunpack.c.l.b16 %v347
  %v675 = vunpack.c.l.b16 %v348
  %v676 = vunpack.c.l.b16 %v349
  %v677 = vunpack.c.l.b16 %v350
  %v678 = vunpack.c.l.b16 %v351
  %v679 = vunpack.c.l.b16 %v352
  %v680 = vunpack.c.l.b16 %v353
  %v681 = vunpack.c.l.b16 %v354
  %v682 = vunpack.c.l.b16 %v355
  %v683 = vunpack.c.l.b16 %v356
  %v684 = vunpack.c.l.b16 %v357
  %v685 = vunpack.c.l.b16 %v358
  %v686 = vunpack.c.l.b16 %v359
  %v687 = vunpack.c.l.b16 %v360
  %v688 = vunpack.c.l.b16 %v361
  %v689 = vunpack.c.l.b16 %v362
  %v690 = vunpack.c.l.b16 %v363
  %v691 = vunpack.c.l.b16 %v364
  %v692 = vunpack.c.l.b16 %v365
  %v693 = vunpack.c.l.b16 %v366
  %v694 = vunpack.c.l.b16 %v367
  %v695 = vunpack.c.l.b16 %v368
  %v696 = vunpack.c.l.b16 %v369
  %v697 = vunpack.c.l.b16 %v370
  %v698 = vunpack.c.l.b16 %v371
  %v699 = vunpack.c.l.b16 %v372
  %v700 = vunpack.c.l.b16 %v373
  %v701 = vunpack.c.l.b16 %v374
  %v702 = vunpack.c.l.b16 %v375
  %v703 = vunpack.c.l.b16 %v376
  %v704 = vunpack.c.l.b16 %v377
  %v705 = vunpack.c.l.b16 %v378
  %v706 = vunpack.c.l.b16 %v379
  %v707 = vunpack.c.l.b16 %v380
  %v708 = vunpack.c.l.b16 %v381
  %v709 = vunpack.c.l.b16 %v382
  %v710 = vunpack.c.l.b16 %v383
  %v711 = vunpack.c.l.b16 %v384
  %v712 = vunpack.c.l.b16 %v385
  %v713 = vunpack.c.l.b16 %v386
  %v714 = vunpack.c.l.b16 %v387
  %v715 = vunpack.c.l.b16 %v388
  %v716 = vunpack.c.l.b16 %v389
  %v717 = vunpack.c.l.b16 %v390
  %v718 = vunpack.c.l.b16 %v391
  %v719 = vunpack.c.l.b16 %v392
  %v720 = vunpack.c.l.b16 %v393
  %v721 = vunpack.c.l.b16 %v394
  %v722 = vunpack.c.l.b16 %v395
  %v723 = vunpack.c.l.b16 %v396
  %v724 = vunpack.c.l.b16 %v397
  %v725 = vunpack.c.l.b16 %v398
  %v726 = vunpack.c.l.b16 %v399
  %v727 = vunpack.c.l.b16 %v400
  %v728 = vpack.c.b16 %v569, %v568
  %v729 = vpack.c.b16 %v571, %v570
  %v730 = vpack.c.b16 %v573, %v572
  %v731 = vpack.c.b16 %v575, %v574
  %v732 = vpack.c.b16 %v577, %v576
  %v733 = vpack.c.b16 %v579, %v578
  %v734 = vpack.c.b16 %v581, %v580
  %v735 = vpack.c.b16 %v583, %v582
  %v736 = vpack.c.b16 %v585, %v584
  %v737 = vpack.c.b16 %v587, %v586
  %v738 = vpack.c.b16 %v589, %v588
  %v739 = vpack.c.b16 %v591, %v590
  %v740 = vpack.c.b16 %v593, %v592
  %v741 = vpack.c.b16 %v595, %v594
  %v742 = vpack.c.b16 %v597, %v596
  %v743 = vpack.c.b16 %v599, %v598
  %v744 = vpack.c.b16 %v601, %v600
  %v745 = vpack.c.b16 %v603, %v602
  %v746 = vpack.c.b16 %v605, %v604
  %v747 = vpack.c.b16 %v607, %v606
  %v748 = vpack.c.b16 %v609, %v608
  %v749 = vpack.c.b16 %v611, %v610
  %v750 = vpack.c.b16 %v613, %v612
  %v751 = vpack.c.b16 %v615, %v614
  %v752 = vpack.c.b16 %v617, %v616
  %v753 = vpack.c.b16 %v619, %v618
  %v754 = vpack.c.b16 %v621, %v620
  %v755 = vpack.c.b16 %v623, %v622
  %v756 = vpack.c.b16 %v625, %v624
  %v757 = vpack.c.b16 %v627, %v626
  %v758 = vpack.c.b16 %v629, %v628
  %v759 = vpack.c.b16 %v631, %v630
  %v760 = vpack.c.b16 %v633, %v632
  %v761 = vpack.c.b16 %v635, %v634
  %v762 = vpack.c.b16 %v637, %v636
  %v763 = vpack.c.b16 %v639, %v638
  %v764 = vpack.c.b16 %v641, %v640
  %v765 = vpack.c.b16 %v643, %v642
  %v766 = vpack.c.b16 %v645, %v644
  %v767 = vpack.c.b16 %v647, %v646
  %v768 = vpack.c.b16 %v649, %v648
  %v769 = vpack.c.b16 %v651, %v650
  %v770 = vpack.c.b16 %v653, %v652
  %v771 = vpack.c.b16 %v655, %v654
  %v772 = vpack.c.b16 %v657, %v656
  %v773 = vpack.c.b16 %v659, %v658
  %v774 = vpack.c.b16 %v661, %v660
  %v775 = vpack.c.b16 %v663, %v662
  %v776 = vpack.c.b16 %v665, %v664
  %v777 = vpack.c.b16 %v667, %v666
  %v778 = vpack.c.b16 %v669, %v668
  %v779 = vpack.c.b16 %v671, %v670
  %v780 = vpack.c.b16 %v673, %v672
  %v781 = vpack.c.b16 %v675, %v674
  %v782 = vpack.c.b16 %v677, %v676
  %v783 = vpack.c.b16 %v679, %v678
  %v784 = vpack.c.b16 %v681, %v680
  %v785 = vpack.c.b16 %v683, %v682
  %v786 = vpack.c.b16 %v685, %v684
  %v787 = vpack.c.b16 %v687, %v686
  %v788 = vpack.c.b16 %v689, %v688
  %v789 = vpack.c.b16 %v691, %v690
  %v790 = vpack.c.b16 %v693, %v692
  %v791 = vpack.c.b16 %v695, %v694
  %v792 = vpack.c.b16 %v697, %v696
  %v793 = vpack.c.b16 %v699, %v698
  %v794 = vpack.c.b16 %v701, %v700
  %v795 = vpack.c.b16 %v703, %v702
  %v796 = vpack.c.b16 %v705, %v704
  %v797 = vpack.c.b16 %v707, %v706
  %v798 = vpack.c.b16 %v709, %v708
  %v799 = vpack.c.b16 %v711, %v710
  %v800 = vpack.c.b16 %v713, %v712
  %v801 = vpack.c.b16 %v715, %v714
  %v802 = vpack.c.b16 %v717, %v716
  %v803 = vpack.c.b16 %v719, %v718
  %v804 = vpack.c.b16 %v721, %v720
  %v805 = vpack.c.b16 %v723, %v722
  %v806 = vpack.c.b16 %v725, %v724
  %v807 = vpack.c.b16 %v727, %v726
  %888 = vmatprep.subr.bf16.mxu0 0
  %889 = vmatpush1.bf16.msra.mxu0 %v728
  %890 = vmatprep.subr.bf16.mxu0 0
  %891 = vmatpush1.bf16.msra.mxu0 %v729
  %892 = vmatprep.subr.bf16.mxu0 0
  %893 = vmatpush1.bf16.msra.mxu0 %v730
  %894 = vmatprep.subr.bf16.mxu0 0
  %895 = vmatpush1.bf16.msra.mxu0 %v731
  %896 = vmatprep.subr.bf16.mxu0 0
  %897 = vmatpush1.bf16.msra.mxu0 %v732
  %898 = vmatprep.subr.bf16.mxu0 0
  %899 = vmatpush1.bf16.msra.mxu0 %v733
  %900 = vmatprep.subr.bf16.mxu0 0
  %901 = vmatpush1.bf16.msra.mxu0 %v734
  %902 = vmatprep.subr.bf16.mxu0 0
  %903 = vmatpush1.bf16.msra.mxu0 %v735
  %904 = vmatprep.subr.bf16.mxu0 0
  %905 = vmatpush1.bf16.msra.mxu0 %v736
  %906 = vmatprep.subr.bf16.mxu0 0
  %907 = vmatpush1.bf16.msra.mxu0 %v737
  %908 = vmatprep.subr.bf16.mxu0 0
  %909 = vmatpush1.bf16.msra.mxu0 %v738
  %910 = vmatprep.subr.bf16.mxu0 0
  %911 = vmatpush1.bf16.msra.mxu0 %v739
  %912 = vmatprep.subr.bf16.mxu0 0
  %913 = vmatpush1.bf16.msra.mxu0 %v740
  %914 = vmatprep.subr.bf16.mxu0 0
  %915 = vmatpush1.bf16.msra.mxu0 %v741
  %916 = vmatprep.subr.bf16.mxu0 0
  %917 = vmatpush1.bf16.msra.mxu0 %v742
  %918 = vmatprep.subr.bf16.mxu0 0
  %919 = vmatpush1.bf16.msra.mxu0 %v743
  %920 = vmatprep.mubr.bf16.mxu0 %v232
  %921 = vmatmul.mubr.bf16.gmra.mrb[0].mxu0 %v231
  %v922 = vpop.f32.mrb[0].mxu0
  %v923 = vadd.f32 %v406, %v922
  %v924 = vpop.f32.mrb[0].mxu0
  %v925 = vpop.f32.mrb[0].mxu0
  %v926 = vadd.f32 %v406, %v925
  %v927 = vpop.f32.mrb[0].mxu0
  %928 = vdwg.mxu0
  %929 = vmatprep.subr.bf16.mxu0 0
  %930 = vmatpush1.bf16.msra.mxu0 %v744
  %931 = vmatprep.subr.bf16.mxu0 0
  %932 = vmatpush1.bf16.msra.mxu0 %v745
  %933 = vmatprep.subr.bf16.mxu0 0
  %934 = vmatpush1.bf16.msra.mxu0 %v746
  %935 = vmatprep.subr.bf16.mxu0 0
  %936 = vmatpush1.bf16.msra.mxu0 %v747
  %937 = vmatprep.subr.bf16.mxu0 0
  %938 = vmatpush1.bf16.msra.mxu0 %v748
  %939 = vmatprep.subr.bf16.mxu0 0
  %940 = vmatpush1.bf16.msra.mxu0 %v749
  %941 = vmatprep.subr.bf16.mxu0 0
  %942 = vmatpush1.bf16.msra.mxu0 %v750
  %943 = vmatprep.subr.bf16.mxu0 0
  %944 = vmatpush1.bf16.msra.mxu0 %v751
  %945 = vmatprep.subr.bf16.mxu0 0
  %946 = vmatpush1.bf16.msra.mxu0 %v752
  %947 = vmatprep.subr.bf16.mxu0 0
  %948 = vmatpush1.bf16.msra.mxu0 %v753
  %949 = vmatprep.subr.bf16.mxu0 0
  %950 = vmatpush1.bf16.msra.mxu0 %v754
  %951 = vmatprep.subr.bf16.mxu0 0
  %952 = vmatpush1.bf16.msra.mxu0 %v755
  %953 = vmatprep.subr.bf16.mxu0 0
  %954 = vmatpush1.bf16.msra.mxu0 %v756
  %955 = vmatprep.subr.bf16.mxu0 0
  %956 = vmatpush1.bf16.msra.mxu0 %v757
  %957 = vmatprep.subr.bf16.mxu0 0
  %958 = vmatpush1.bf16.msra.mxu0 %v758
  %959 = vmatprep.subr.bf16.mxu0 0
  %960 = vmatpush1.bf16.msra.mxu0 %v759
  %961 = vmatprep.mubr.bf16.mxu0 %v234
  %962 = vmatmul.mubr.bf16.gmra.mrb[0].mxu0 %v233
  %v963 = vpop.f32.mrb[0].mxu0
  %v964 = vadd.f32 %v923, %v963
  %v965 = vpop.f32.mrb[0].mxu0
  %v966 = vpop.f32.mrb[0].mxu0
  %v967 = vadd.f32 %v926, %v966
  %v968 = vpop.f32.mrb[0].mxu0
  %969 = vdwg.mxu0
  %970 = vmatprep.subr.bf16.mxu0 0
  %971 = vmatpush1.bf16.msra.mxu0 %v760
  %972 = vmatprep.subr.bf16.mxu0 0
  %973 = vmatpush1.bf16.msra.mxu0 %v761
  %974 = vmatprep.subr.bf16.mxu0 0
  %975 = vmatpush1.bf16.msra.mxu0 %v762
  %976 = vmatprep.subr.bf16.mxu0 0
  %977 = vmatpush1.bf16.msra.mxu0 %v763
  %978 = vmatprep.subr.bf16.mxu0 0
  %979 = vmatpush1.bf16.msra.mxu0 %v764
  %980 = vmatprep.subr.bf16.mxu0 0
  %981 = vmatpush1.bf16.msra.mxu0 %v765
  %982 = vmatprep.subr.bf16.mxu0 0
  %983 = vmatpush1.bf16.msra.mxu0 %v766
  %984 = vmatprep.subr.bf16.mxu0 0
  %985 = vmatpush1.bf16.msra.mxu0 %v767
  %986 = vmatprep.subr.bf16.mxu0 0
  %987 = vmatpush1.bf16.msra.mxu0 %v768
  %988 = vmatprep.subr.bf16.mxu0 0
  %989 = vmatpush1.bf16.msra.mxu0 %v769
  %990 = vmatprep.subr.bf16.mxu0 0
  %991 = vmatpush1.bf16.msra.mxu0 %v770
  %992 = vmatprep.subr.bf16.mxu0 0
  %993 = vmatpush1.bf16.msra.mxu0 %v771
  %994 = vmatprep.subr.bf16.mxu0 0
  %995 = vmatpush1.bf16.msra.mxu0 %v772
  %996 = vmatprep.subr.bf16.mxu0 0
  %997 = vmatpush1.bf16.msra.mxu0 %v773
  %998 = vmatprep.subr.bf16.mxu0 0
  %999 = vmatpush1.bf16.msra.mxu0 %v774
  %1000 = vmatprep.subr.bf16.mxu0 0
  %1001 = vmatpush1.bf16.msra.mxu0 %v775
  %1002 = vmatprep.mubr.bf16.mxu0 %v236
  %1003 = vmatmul.mubr.bf16.gmra.mrb[0].mxu0 %v235
  %v1004 = vpop.f32.mrb[0].mxu0
  %v1005 = vadd.f32 %v964, %v1004
  %v1006 = vpop.f32.mrb[0].mxu0
  %v1007 = vpop.f32.mrb[0].mxu0
  %v1008 = vadd.f32 %v967, %v1007
  %v1009 = vpop.f32.mrb[0].mxu0
  %1010 = vdwg.mxu0
  %1011 = vmatprep.subr.bf16.mxu0 0
  %1012 = vmatpush1.bf16.msra.mxu0 %v776
  %1013 = vmatprep.subr.bf16.mxu0 0
  %1014 = vmatpush1.bf16.msra.mxu0 %v777
  %1015 = vmatprep.subr.bf16.mxu0 0
  %1016 = vmatpush1.bf16.msra.mxu0 %v778
  %1017 = vmatprep.subr.bf16.mxu0 0
  %1018 = vmatpush1.bf16.msra.mxu0 %v779
  %1019 = vmatprep.subr.bf16.mxu0 0
  %1020 = vmatpush1.bf16.msra.mxu0 %v780
  %1021 = vmatprep.subr.bf16.mxu0 0
  %1022 = vmatpush1.bf16.msra.mxu0 %v781
  %1023 = vmatprep.subr.bf16.mxu0 0
  %1024 = vmatpush1.bf16.msra.mxu0 %v782
  %1025 = vmatprep.subr.bf16.mxu0 0
  %1026 = vmatpush1.bf16.msra.mxu0 %v783
  %1027 = vmatprep.subr.bf16.mxu0 0
  %1028 = vmatpush1.bf16.msra.mxu0 %v784
  %1029 = vmatprep.subr.bf16.mxu0 0
  %1030 = vmatpush1.bf16.msra.mxu0 %v785
  %1031 = vmatprep.subr.bf16.mxu0 0
  %1032 = vmatpush1.bf16.msra.mxu0 %v786
  %1033 = vmatprep.subr.bf16.mxu0 0
  %1034 = vmatpush1.bf16.msra.mxu0 %v787
  %1035 = vmatprep.subr.bf16.mxu0 0
  %1036 = vmatpush1.bf16.msra.mxu0 %v788
  %1037 = vmatprep.subr.bf16.mxu0 0
  %1038 = vmatpush1.bf16.msra.mxu0 %v789
  %1039 = vmatprep.subr.bf16.mxu0 0
  %1040 = vmatpush1.bf16.msra.mxu0 %v790
  %1041 = vmatprep.subr.bf16.mxu0 0
  %1042 = vmatpush1.bf16.msra.mxu0 %v791
  %1043 = vmatprep.mubr.bf16.mxu0 %v238
  %1044 = vmatmul.mubr.bf16.gmra.mrb[0].mxu0 %v237
  %v1045 = vpop.f32.mrb[0].mxu0
  %v1046 = vadd.f32 %v1005, %v1045
  %v1047 = vpop.f32.mrb[0].mxu0
  %v1048 = vpop.f32.mrb[0].mxu0
  %v1049 = vadd.f32 %v1008, %v1048
  %v1050 = vpop.f32.mrb[0].mxu0
  %1051 = vdwg.mxu0
  %1052 = vmatprep.subr.bf16.mxu0 0
  %1053 = vmatpush1.bf16.msra.mxu0 %v792
  %1054 = vmatprep.subr.bf16.mxu0 0
  %1055 = vmatpush1.bf16.msra.mxu0 %v793
  %1056 = vmatprep.subr.bf16.mxu0 0
  %1057 = vmatpush1.bf16.msra.mxu0 %v794
  %1058 = vmatprep.subr.bf16.mxu0 0
  %1059 = vmatpush1.bf16.msra.mxu0 %v795
  %1060 = vmatprep.subr.bf16.mxu0 0
  %1061 = vmatpush1.bf16.msra.mxu0 %v796
  %1062 = vmatprep.subr.bf16.mxu0 0
  %1063 = vmatpush1.bf16.msra.mxu0 %v797
  %1064 = vmatprep.subr.bf16.mxu0 0
  %1065 = vmatpush1.bf16.msra.mxu0 %v798
  %1066 = vmatprep.subr.bf16.mxu0 0
  %1067 = vmatpush1.bf16.msra.mxu0 %v799
  %1068 = vmatprep.subr.bf16.mxu0 0
  %1069 = vmatpush1.bf16.msra.mxu0 %v800
  %1070 = vmatprep.subr.bf16.mxu0 0
  %1071 = vmatpush1.bf16.msra.mxu0 %v801
  %1072 = vmatprep.subr.bf16.mxu0 0
  %1073 = vmatpush1.bf16.msra.mxu0 %v802
  %1074 = vmatprep.subr.bf16.mxu0 0
  %1075 = vmatpush1.bf16.msra.mxu0 %v803
  %1076 = vmatprep.subr.bf16.mxu0 0
  %1077 = vmatpush1.bf16.msra.mxu0 %v804
  %1078 = vmatprep.subr.bf16.mxu0 0
  %1079 = vmatpush1.bf16.msra.mxu0 %v805
  %1080 = vmatprep.subr.bf16.mxu0 0
  %1081 = vmatpush1.bf16.msra.mxu0 %v806
  %1082 = vmatprep.subr.bf16.mxu0 0
  %1083 = vmatpush1.bf16.msra.mxu0 %v807
  %1084 = vmatprep.mubr.bf16.mxu0 %v240
  %1085 = vmatmul.mubr.bf16.gmra.mrb[0].mxu0 %v239
  %v1086 = vpop.f32.mrb[0].mxu0
  %v1087 = vadd.f32 %v1046, %v1086
  %v1088 = vpop.f32.mrb[0].mxu0
  %v1089 = vpop.f32.mrb[0].mxu0
  %v1090 = vadd.f32 %v1049, %v1089
  %v1091 = vpop.f32.mrb[0].mxu0
  %1092 = vdwg.mxu0
  %v1093 = vmax.f32 %v1087, 0.0
  %v1094 = vmax.f32 %v1090, 0.0
  %v1095 = vpack.c.bf16 %v1094, %v1093
  %v1096 = vld [vmem:[%s5] sm:$0xf]
  %v1097 = vld [vmem:[%s5 + $0x4] sm:$0xf]
  %v1098 = vld [vmem:[%s5 + $0x8] sm:$0xf]
  %v1099 = vld [vmem:[%s5 + $0xc] sm:$0xf]
  %v1100 = vld [vmem:[%s5 + $0x10] sm:$0xf]
  %v1101 = vld [vmem:[%s5 + $0x14] sm:$0xf]
  %v1102 = vld [vmem:[%s5 + $0x18] sm:$0xf]
  %v1103 = vld [vmem:[%s5 + $0x1c] sm:$0xf]
  %v1104 = vld [vmem:[%s5 + $0x20] sm:$0xf]
  %v1105 = vld [vmem:[%s5 + $0x24] sm:$0xf]
  %v1106 = vld [vmem:[%s5 + $0x28] sm:$0xf]
  %v1107 = vld [vmem:[%s5 + $0x2c] sm:$0xf]
  %v1108 = vld [vmem:[%s5 + $0x30] sm:$0xf]
  %v1109 = vld [vmem:[%s5 + $0x34] sm:$0xf]
  %v1110 = vld [vmem:[%s5 + $0x38] sm:$0xf]
  %v1111 = vld [vmem:[%s5 + $0x3c] sm:$0xf]
  %v1112 = vld [vmem:[%s6] sm:$0x1]
  %v1114 = vlaneseq
  %v1115 = vshrl.u32 %v1114, 7
  %v1116 = vsub.s32 0, %v1115
  %v1117 = vrot.slane %v1112, %v1116
  %v1135 = vunpack.c.l.b16 %v1096
  %v1136 = vunpack.c.l.b16 %v1097
  %v1137 = vunpack.c.l.b16 %v1098
  %v1138 = vunpack.c.l.b16 %v1099
  %v1139 = vunpack.c.l.b16 %v1100
  %v1140 = vunpack.c.l.b16 %v1101
  %v1141 = vunpack.c.l.b16 %v1102
  %v1142 = vunpack.c.l.b16 %v1103
  %v1143 = vunpack.c.l.b16 %v1104
  %v1144 = vunpack.c.l.b16 %v1105
  %v1145 = vunpack.c.l.b16 %v1106
  %v1146 = vunpack.c.l.b16 %v1107
  %v1147 = vunpack.c.l.b16 %v1108
  %v1148 = vunpack.c.l.b16 %v1109
  %v1149 = vunpack.c.l.b16 %v1110
  %v1150 = vunpack.c.l.b16 %v1111
  %v1151 = vpack.c.b16 %v1136, %v1135
  %v1152 = vpack.c.b16 %v1138, %v1137
  %v1153 = vpack.c.b16 %v1140, %v1139
  %v1154 = vpack.c.b16 %v1142, %v1141
  %v1155 = vpack.c.b16 %v1144, %v1143
  %v1156 = vpack.c.b16 %v1146, %v1145
  %v1157 = vpack.c.b16 %v1148, %v1147
  %v1158 = vpack.c.b16 %v1150, %v1149
  %1167 = vmatprep.subr.bf16.mxu0 0
  %1168 = vmatpush1.bf16.msra.mxu0 %v1151
  %1169 = vmatprep.subr.bf16.mxu0 0
  %1170 = vmatpush1.bf16.msra.mxu0 %v1152
  %1171 = vmatprep.subr.bf16.mxu0 0
  %1172 = vmatpush1.bf16.msra.mxu0 %v1153
  %1173 = vmatprep.subr.bf16.mxu0 0
  %1174 = vmatpush1.bf16.msra.mxu0 %v1154
  %1175 = vmatprep.subr.bf16.mxu0 0
  %1176 = vmatpush1.bf16.msra.mxu0 %v1155
  %1177 = vmatprep.subr.bf16.mxu0 0
  %1178 = vmatpush1.bf16.msra.mxu0 %v1156
  %1179 = vmatprep.subr.bf16.mxu0 0
  %1180 = vmatpush1.bf16.msra.mxu0 %v1157
  %1181 = vmatprep.subr.bf16.mxu0 0
  %1182 = vmatpush1.bf16.msra.mxu0 %v1158
  %1183 = vmatprep.subr.bf16.mxu0 0
  %1184 = vmatpush1.bf16.msra.mxu0 0
  %1185 = vmatprep.subr.bf16.mxu0 0
  %1186 = vmatpush1.bf16.msra.mxu0 0
  %1187 = vmatprep.subr.bf16.mxu0 0
  %1188 = vmatpush1.bf16.msra.mxu0 0
  %1189 = vmatprep.subr.bf16.mxu0 0
  %1190 = vmatpush1.bf16.msra.mxu0 0
  %1191 = vmatprep.subr.bf16.mxu0 0
  %1192 = vmatpush1.bf16.msra.mxu0 0
  %1193 = vmatprep.subr.bf16.mxu0 0
  %1194 = vmatpush1.bf16.msra.mxu0 0
  %1195 = vmatprep.subr.bf16.mxu0 0
  %1196 = vmatpush1.bf16.msra.mxu0 0
  %1197 = vmatprep.subr.bf16.mxu0 0
  %1198 = vmatpush1.bf16.msra.mxu0 0
  %1199 = vmatprep.mubr.bf16.mxu0 0
  %1200 = vmatmul.mubr.bf16.gmra.mrb[0].mxu0 %v1095
  %v1201 = vpop.f32.mrb[0].mxu0
  %v1202 = vadd.f32 %v1117, %v1201
  %v1203 = vpop.f32.mrb[0].mxu0
  %v1204 = vpop.f32.mrb[0].mxu0
  %v1205 = vadd.f32 %v1117, %v1204
  %v1206 = vpop.f32.mrb[0].mxu0
  %1207 = vdwg.mxu0
  %v1208 = vmax.f32 %v1202, 0.0
  %v1209 = vmax.f32 %v1205, 0.0
  %v1210 = vpack.c.bf16 %v1209, %v1208
  %v1211 = vld [vmem:[%s7] sm:$0xf]
  %v1212 = vld [vmem:[%s7 + $0x4] sm:$0xf]
  %v1213 = vld [vmem:[%s7 + $0x8] sm:$0xf]
  %v1214 = vld [vmem:[%s7 + $0xc] sm:$0xf]
  %v1215 = vld [vmem:[%s7 + $0x10] sm:$0xf]
  %v1216 = vld [vmem:[%s7 + $0x14] sm:$0xf]
  %v1217 = vld [vmem:[%s7 + $0x18] sm:$0xf]
  %v1218 = vld [vmem:[%s7 + $0x1c] sm:$0xf]
  %v1219 = vld [vmem:[%s8] sm:$0x1]
  %v1221 = vlaneseq
  %v1222 = vshrl.u32 %v1221, 7
  %v1223 = vsub.s32 0, %v1222
  %v1224 = vrot.slane %v1219, %v1223
  %v1234 = vunpack.c.l.b16 %v1211
  %v1235 = vunpack.c.l.b16 %v1212
  %v1236 = vunpack.c.l.b16 %v1213
  %v1237 = vunpack.c.l.b16 %v1214
  %v1238 = vunpack.c.l.b16 %v1215
  %v1239 = vunpack.c.l.b16 %v1216
  %v1240 = vunpack.c.l.b16 %v1217
  %v1241 = vunpack.c.l.b16 %v1218
  %v1242 = vpack.c.b16 %v1235, %v1234
  %v1243 = vpack.c.b16 %v1237, %v1236
  %v1244 = vpack.c.b16 %v1239, %v1238
  %v1245 = vpack.c.b16 %v1241, %v1240
  %vm1250 = vcmask 523264
  %v1252 = vsel %vm1250, %v1210, 0
  %1254 = vmatprep.subr.bf16.mxu0 0
  %1255 = vmatpush1.bf16.msra.mxu0 %v1242
  %1256 = vmatprep.subr.bf16.mxu0 0
  %1257 = vmatpush1.bf16.msra.mxu0 %v1243
  %1258 = vmatprep.subr.bf16.mxu0 0
  %1259 = vmatpush1.bf16.msra.mxu0 %v1244
  %1260 = vmatprep.subr.bf16.mxu0 0
  %1261 = vmatpush1.bf16.msra.mxu0 %v1245
  %1262 = vmatprep.subr.bf16.mxu0 0
  %1263 = vmatpush1.bf16.msra.mxu0 0
  %1264 = vmatprep.subr.bf16.mxu0 0
  %1265 = vmatpush1.bf16.msra.mxu0 0
  %1266 = vmatprep.subr.bf16.mxu0 0
  %1267 = vmatpush1.bf16.msra.mxu0 0
  %1268 = vmatprep.subr.bf16.mxu0 0
  %1269 = vmatpush1.bf16.msra.mxu0 0
  %1270 = vmatprep.subr.bf16.mxu0 0
  %1271 = vmatpush1.bf16.msra.mxu0 0
  %1272 = vmatprep.subr.bf16.mxu0 0
  %1273 = vmatpush1.bf16.msra.mxu0 0
  %1274 = vmatprep.subr.bf16.mxu0 0
  %1275 = vmatpush1.bf16.msra.mxu0 0
  %1276 = vmatprep.subr.bf16.mxu0 0
  %1277 = vmatpush1.bf16.msra.mxu0 0
  %1278 = vmatprep.subr.bf16.mxu0 0
  %1279 = vmatpush1.bf16.msra.mxu0 0
  %1280 = vmatprep.subr.bf16.mxu0 0
  %1281 = vmatpush1.bf16.msra.mxu0 0
  %1282 = vmatprep.subr.bf16.mxu0 0
  %1283 = vmatpush1.bf16.msra.mxu0 0
  %1284 = vmatprep.subr.bf16.mxu0 0
  %1285 = vmatpush1.bf16.msra.mxu0 0
  %1286 = vmatprep.mubr.bf16.mxu0 0
  %1287 = vmatmul.mubr.bf16.gmra.mrb[0].mxu0 %v1252
  %v1288 = vpop.f32.mrb[0].mxu0
  %v1289 = vadd.f32 %v1224, %v1288
  %v1290 = vpop.f32.mrb[0].mxu0
  %v1291 = vpop.f32.mrb[0].mxu0
  %v1292 = vadd.f32 %v1224, %v1291
  %v1293 = vpop.f32.mrb[0].mxu0
  %1294 = vdwg.mxu0
  %1295 = vst [vmem:[%s9] sm:$0xff] %v1289
  %1296 = vst [vmem:[%s9 + $0x8] sm:$0xff] %v1292
  // Predicated region
  $region38: #{micro_chess_forward.5} parent=0 // pred_check
    _
  $region39: #{micro_chess_forward.5} parent=0 // pred_check_branch
    %1298 = sbr.rel (0) target = $region41
  $region40: #{micro_chess_forward.5} parent=0 // pred_region
    _
  $region41: #{micro_chess_forward.5} parent=0 // pred_fallthru
    _
  // Predicated region
  $region42: #{micro_chess_forward.5} parent=0 // pred_check
    _
  $region43: #{micro_chess_forward.5} parent=0 // pred_check_branch
    %1300 = sbr.rel (0) target = $region45
  $region44: #{micro_chess_forward.5} parent=0 // pred_region
    _
  $region45: #{micro_chess_forward.5} parent=0 // pred_fallthru
    _

// kernel: micro_chess_forward.4
$region0: #{micro_chess_forward.4}
  #allocation0 [shape = 'u32[]', space=smem, size = 0x4, offset = 0x4, fixed_abs, tag = 'smem constant byte address 0x4 - core index']
  #allocation1 [shape = 'u32[144,128]{1,0:T(1,128)}', space=vmem, size = 0x12000, scoped, tag = 'internal scratch']
  %s0 = inlined_call_operand.vmem [shape: bf16[16,20], index: 0, kind: input, shape index: {}]
  %s1 = inlined_call_operand.hbm [shape: bf16[20,640], index: 1, kind: input, shape index: {}]
  %s2 = inlined_call_operand.vmem [shape: f32[1,640], index: 2, kind: input, shape index: {}]
  %s3 = inlined_call_operand.vmem [shape: f32[1,640], index: 3, kind: input, shape index: {}]
  %s4 = inlined_call_operand.hbm [shape: bf16[640,1280], index: 4, kind: input, shape index: {}]
  %s5 = inlined_call_operand.vmem [shape: f32[1,2,1280], index: 5, kind: output, shape index: {0}]
  %s6 = inlined_call_operand.vmem [shape: bf16[16,1280], index: 6, kind: output, shape index: {1}]
  %7 = xla_tuple %s5, %s6
  %s8 = sld [smem:[#allocation0]]
  $region46: #{micro_chess_forward.4} parent=0
    _
  %s10 = ssub.s32 1, %s8
  %s11 = scalar_select 0, %s10, %s8
  $region1: #{micro_chess_forward.4} parent=0
    #allocation2 [shape = 'u8[30720]{0}', space=vmem, size = 0x7800, scoped, tag = 'input window, operand 1, single buffered']
    #allocation3 [shape = 's32[1]{0}', space=sflag, size = 0x4, scoped, tag = 'scoped memory for micro_chess_forward.4']
    #allocation4 [shape = 'u8[1638400]{0}', space=vmem, size = 0x190000, scoped, tag = 'input window, operand 4, single buffered']
    #allocation5 [shape = 's32[1]{0}', space=sflag, size = 0x4, scoped, tag = 'scoped memory for micro_chess_forward.4']
    %12 = vsyncpa [#allocation3], 0
    %13 = vsyncpa [#allocation5], 0
    // Predicated region
    $region2: #{micro_chess_forward.4} parent=1 // pred_check
      _
    $region3: #{micro_chess_forward.4} parent=1 // pred_check_branch
      %15 = sbr.rel (0) target = $region5
    $region4: #{micro_chess_forward.4} parent=1 // pred_region
      _
    $region5: #{micro_chess_forward.4} parent=1 // pred_fallthru
      _
    // Predicated region
    $region6: #{micro_chess_forward.4} parent=1 // pred_check
      _
    $region7: #{micro_chess_forward.4} parent=1 // pred_check_branch
      %17 = sbr.rel (0) target = $region9
    $region8: #{micro_chess_forward.4} parent=1 // pred_region
      %s19 = ssub.s32 960, 960
      %20 = vsyncadd [#allocation3], %s19
      %s21 = sshll.u32 [#allocation2], 4
      %s22 = int_to_ptr.vmem [resolvable:$true] %s21
      %27 = dma.hbm_to_vmem [thread:$0]  %s1, 960, %s22, [#allocation3], 320, 320, 20
    $region9: #{micro_chess_forward.4} parent=1 // pred_fallthru
      _
    // Predicated region
    $region10: #{micro_chess_forward.4} parent=1 // pred_check
      _
    $region11: #{micro_chess_forward.4} parent=1 // pred_check_branch
      %29 = sbr.rel (0) target = $region13
    $region12: #{micro_chess_forward.4} parent=1 // pred_region
      _
    $region13: #{micro_chess_forward.4} parent=1 // pred_fallthru
      _
    // Predicated region
    $region14: #{micro_chess_forward.4} parent=1 // pred_check
      _
    $region15: #{micro_chess_forward.4} parent=1 // pred_check_branch
      %31 = sbr.rel (0) target = $region17
    $region16: #{micro_chess_forward.4} parent=1 // pred_region
      _
    $region17: #{micro_chess_forward.4} parent=1 // pred_fallthru
      _
    // Predicated region
    $region18: #{micro_chess_forward.4} parent=1 // pred_check
      _
    $region19: #{micro_chess_forward.4} parent=1 // pred_check_branch
      %33 = sbr.rel (0) target = $region21
    $region20: #{micro_chess_forward.4} parent=1 // pred_region
      %s35 = ssub.s32 51200, 51200
      %36 = vsyncadd [#allocation5], %s35
      %s37 = sshll.u32 [#allocation4], 4
      %s38 = int_to_ptr.vmem [resolvable:$true] %s37
      %43 = dma.hbm_to_vmem [thread:$0]  %s4, 51200, %s38, [#allocation5], 640, 640, 40
    $region21: #{micro_chess_forward.4} parent=1 // pred_fallthru
      _
    // Predicated region
    $region22: #{micro_chess_forward.4} parent=1 // pred_check
      _
    $region23: #{micro_chess_forward.4} parent=1 // pred_check_branch
      %45 = sbr.rel (0) target = $region25
    $region24: #{micro_chess_forward.4} parent=1 // pred_region
      %46 = dma.done [#allocation3], 960
    $region25: #{micro_chess_forward.4} parent=1 // pred_fallthru
      _
    // Predicated region
    $region26: #{micro_chess_forward.4} parent=1 // pred_check
      _
    $region27: #{micro_chess_forward.4} parent=1 // pred_check_branch
      %48 = sbr.rel (0) target = $region29
    $region28: #{micro_chess_forward.4} parent=1 // pred_region
      %49 = dma.done [#allocation5], 51200
    $region29: #{micro_chess_forward.4} parent=1 // pred_fallthru
      _
    %v51 = vld [vmem:[%s0] sm:$0xf]
    %v52 = vld [vmem:[%s0 + $0x4] sm:$0xf]
    %v53 = vld [vmem:[#allocation2] sm:$0xff]
    %v54 = vld [vmem:[#allocation2 + $0x8] sm:$0xff]
    %v55 = vld [vmem:[#allocation2 + $0x10] sm:$0xf]
    %v56 = vld [vmem:[#allocation2 + $0x14] sm:$0xff]
    %v57 = vld [vmem:[#allocation2 + $0x1c] sm:$0xff]
    %v58 = vld [vmem:[#allocation2 + $0x24] sm:$0xf]
    %v59 = vld [vmem:[#allocation2 + $0x28] sm:$0x33]
    %v60 = vld [vmem:[#allocation2 + $0x30] sm:$0x33]
    %v61 = vld [vmem:[#allocation2 + $0x38] sm:$0x3]
    %v64 = vunpack.c.l.b16 %v51
    %v65 = vunpack.c.l.b16 %v52
    %v66 = vpack.c.b16 %v65, %v64
    %v76 = vunpack.c.l.b16 %v53
    %v77 = vunpack.c.h.b16 %v53
    %v78 = vunpack.c.l.b16 %v54
    %v79 = vunpack.c.h.b16 %v54
    %v80 = vunpack.c.l.b16 %v55
    %v81 = vunpack.c.l.b16 %v56
    %v82 = vunpack.c.h.b16 %v56
    %v83 = vunpack.c.l.b16 %v57
    %v84 = vunpack.c.h.b16 %v57
    %v85 = vunpack.c.l.b16 %v58
    %v86 = vunpack.c.l.b16 %v59
    %v87 = vunpack.c.h.b16 %v59
    %v88 = vunpack.c.l.b16 %v60
    %v89 = vunpack.c.h.b16 %v60
    %v90 = vunpack.c.l.b16 %v61
    %v91 = vpack.c.b16 %v81, %v76
    %v92 = vpack.c.b16 %v82, %v77
    %v93 = vpack.c.b16 %v83, %v78
    %v94 = vpack.c.b16 %v84, %v79
    %v95 = vpack.c.b16 %v85, %v80
    %v96 = vpack.c.b16 %v86, %v86
    %v97 = vpack.c.b16 %v87, %v87
    %v98 = vpack.c.b16 %v88, %v88
    %v99 = vpack.c.b16 %v89, %v89
    %v100 = vpack.c.b16 %v90, %v90
    %vm106 = vcmask 162816
    %v108 = vsel %vm106, %v66, 0
    %vm110 = vcmask 1041408
    %v112 = vsel %vm110, %v96, 0
    %v115 = vsel %vm110, %v97, 0
    %v118 = vsel %vm110, %v98, 0
    %v121 = vsel %vm110, %v99, 0
    %v124 = vsel %vm110, %v100, 0
    %126 = vmatprep.subr.bf16.mxu0 %v92
    %127 = vmatpush1.bf16.msra.mxu0 %v91
    %128 = vmatprep.subr.bf16.mxu0 %v115
    %129 = vmatpush1.bf16.msra.mxu0 %v112
    %130 = vmatprep.subr.bf16.mxu0 0
    %131 = vmatpush1.bf16.msra.mxu0 0
    %132 = vmatprep.subr.bf16.mxu0 0
    %133 = vmatpush1.bf16.msra.mxu0 0
    %134 = vmatprep.subr.bf16.mxu0 0
    %135 = vmatpush1.bf16.msra.mxu0 0
    %136 = vmatprep.subr.bf16.mxu0 0
    %137 = vmatpush1.bf16.msra.mxu0 0
    %138 = vmatprep.subr.bf16.mxu0 0
    %139 = vmatpush1.bf16.msra.mxu0 0
    %140 = vmatprep.subr.bf16.mxu0 0
    %141 = vmatpush1.bf16.msra.mxu0 0
    %142 = vmatprep.subr.bf16.mxu0 0
    %143 = vmatpush1.bf16.msra.mxu0 0
    %144 = vmatprep.subr.bf16.mxu0 0
    %145 = vmatpush1.bf16.msra.mxu0 0
    %146 = vmatprep.subr.bf16.mxu0 0
    %147 = vmatpush1.bf16.msra.mxu0 0
    %148 = vmatprep.subr.bf16.mxu0 0
    %149 = vmatpush1.bf16.msra.mxu0 0
    %150 = vmatprep.subr.bf16.mxu0 0
    %151 = vmatpush1.bf16.msra.mxu0 0
    %152 = vmatprep.subr.bf16.mxu0 0
    %153 = vmatpush1.bf16.msra.mxu0 0
    %154 = vmatprep.subr.bf16.mxu0 0
    %155 = vmatpush1.bf16.msra.mxu0 0
    %156 = vmatprep.subr.bf16.mxu0 0
    %157 = vmatpush1.bf16.msra.mxu0 0
    %158 = vmatprep.mubr.bf16.mxu0 0
    %159 = vmatmul.mubr.bf16.gmra.mrb[0].mxu0 %v108
    %v160 = vpop.f32.mrb[0].mxu0
    %v161 = vadd.f32 0.0, %v160
    %v162 = vpop.f32.mrb[0].mxu0
    %v163 = vadd.f32 0.0, %v162
    %v164 = vpop.f32.mrb[0].mxu0
    %v165 = vadd.f32 0.0, %v164
    %v166 = vpop.f32.mrb[0].mxu0
    %v167 = vadd.f32 0.0, %v166
    %168 = vdwg.mxu0
    %169 = vmatprep.subr.bf16.mxu0 %v94
    %170 = vmatpush1.bf16.msra.mxu0 %v93
    %171 = vmatprep.subr.bf16.mxu0 %v121
    %172 = vmatpush1.bf16.msra.mxu0 %v118
    %173 = vmatprep.subr.bf16.mxu0 0
    %174 = vmatpush1.bf16.msra.mxu0 0
    %175 = vmatprep.subr.bf16.mxu0 0
    %176 = vmatpush1.bf16.msra.mxu0 0
    %177 = vmatprep.subr.bf16.mxu0 0
    %178 = vmatpush1.bf16.msra.mxu0 0
    %179 = vmatprep.subr.bf16.mxu0 0
    %180 = vmatpush1.bf16.msra.mxu0 0
    %181 = vmatprep.subr.bf16.mxu0 0
    %182 = vmatpush1.bf16.msra.mxu0 0
    %183 = vmatprep.subr.bf16.mxu0 0
    %184 = vmatpush1.bf16.msra.mxu0 0
    %185 = vmatprep.subr.bf16.mxu0 0
    %186 = vmatpush1.bf16.msra.mxu0 0
    %187 = vmatprep.subr.bf16.mxu0 0
    %188 = vmatpush1.bf16.msra.mxu0 0
    %189 = vmatprep.subr.bf16.mxu0 0
    %190 = vmatpush1.bf16.msra.mxu0 0
    %191 = vmatprep.subr.bf16.mxu0 0
    %192 = vmatpush1.bf16.msra.mxu0 0
    %193 = vmatprep.subr.bf16.mxu0 0
    %194 = vmatpush1.bf16.msra.mxu0 0
    %195 = vmatprep.subr.bf16.mxu0 0
    %196 = vmatpush1.bf16.msra.mxu0 0
    %197 = vmatprep.subr.bf16.mxu0 0
    %198 = vmatpush1.bf16.msra.mxu0 0
    %199 = vmatprep.subr.bf16.mxu0 0
    %200 = vmatpush1.bf16.msra.mxu0 0
    %201 = vmatprep.mubr.bf16.mxu0 0
    %202 = vmatmul.mubr.bf16.gmra.mrb[0].mxu0 %v108
    %v203 = vpop.f32.mrb[0].mxu0
    %v204 = vadd.f32 0.0, %v203
    %v205 = vpop.f32.mrb[0].mxu0
    %v206 = vadd.f32 0.0, %v205
    %v207 = vpop.f32.mrb[0].mxu0
    %v208 = vadd.f32 0.0, %v207
    %v209 = vpop.f32.mrb[0].mxu0
    %v210 = vadd.f32 0.0, %v209
    %211 = vdwg.mxu0
    %212 = vmatprep.subr.bf16.mxu0 0
    %213 = vmatpush1.bf16.msra.mxu0 %v95
    %214 = vmatprep.subr.bf16.mxu0 0
    %215 = vmatpush1.bf16.msra.mxu0 %v124
    %216 = vmatprep.subr.bf16.mxu0 0
    %217 = vmatpush1.bf16.msra.mxu0 0
    %218 = vmatprep.subr.bf16.mxu0 0
    %219 = vmatpush1.bf16.msra.mxu0 0
    %220 = vmatprep.subr.bf16.mxu0 0
    %221 = vmatpush1.bf16.msra.mxu0 0
    %222 = vmatprep.subr.bf16.mxu0 0
    %223 = vmatpush1.bf16.msra.mxu0 0
    %224 = vmatprep.subr.bf16.mxu0 0
    %225 = vmatpush1.bf16.msra.mxu0 0
    %226 = vmatprep.subr.bf16.mxu0 0
    %227 = vmatpush1.bf16.msra.mxu0 0
    %228 = vmatprep.subr.bf16.mxu0 0
    %229 = vmatpush1.bf16.msra.mxu0 0
    %230 = vmatprep.subr.bf16.mxu0 0
    %231 = vmatpush1.bf16.msra.mxu0 0
    %232 = vmatprep.subr.bf16.mxu0 0
    %233 = vmatpush1.bf16.msra.mxu0 0
    %234 = vmatprep.subr.bf16.mxu0 0
    %235 = vmatpush1.bf16.msra.mxu0 0
    %236 = vmatprep.subr.bf16.mxu0 0
    %237 = vmatpush1.bf16.msra.mxu0 0
    %238 = vmatprep.subr.bf16.mxu0 0
    %239 = vmatpush1.bf16.msra.mxu0 0
    %240 = vmatprep.subr.bf16.mxu0 0
    %241 = vmatpush1.bf16.msra.mxu0 0
    %242 = vmatprep.subr.bf16.mxu0 0
    %243 = vmatpush1.bf16.msra.mxu0 0
    %244 = vmatprep.mubr.bf16.mxu0 0
    %245 = vmatmul.mubr.bf16.gmra.mrb[0].mxu0 %v108
    %v246 = vpop.f32.mrb[0].mxu0
    %v247 = vadd.f32 0.0, %v246
    %v248 = vpop.f32.mrb[0].mxu0
    %v249 = vpop.f32.mrb[0].mxu0
    %v250 = vadd.f32 0.0, %v249
    %v251 = vpop.f32.mrb[0].mxu0
    %252 = vdwg.mxu0
    %v253 = vld [vmem:[%s2] sm:$0x1f]
    %v255 = vlaneseq
    %v256 = vshrl.u32 %v255, 7
    %v257 = vsub.s32 0, %v256
    %v258 = vrot.slane %v253, %v257
    %v259 = vlaneseq
    %v260 = vshrl.u32 %v259, 7
    %v261 = vsub.s32 1, %v260
    %v262 = vrot.slane %v253, %v261
    %v263 = vlaneseq
    %v264 = vshrl.u32 %v263, 7
    %v265 = vsub.s32 2, %v264
    %v266 = vrot.slane %v253, %v265
    %v267 = vlaneseq
    %v268 = vshrl.u32 %v267, 7
    %v269 = vsub.s32 3, %v268
    %v270 = vrot.slane %v253, %v269
    %v271 = vlaneseq
    %v272 = vshrl.u32 %v271, 7
    %v273 = vsub.s32 4, %v272
    %v274 = vrot.slane %v253, %v273
    %v280 = vmul.f32 %v161, %v258
    %v281 = vmul.f32 %v163, %v262
    %v282 = vmul.f32 %v204, %v266
    %v283 = vmul.f32 %v206, %v270
    %v284 = vmul.f32 %v247, %v274
    %v285 = vmul.f32 %v165, %v258
    %v286 = vmul.f32 %v167, %v262
    %v287 = vmul.f32 %v208, %v266
    %v288 = vmul.f32 %v210, %v270
    %v289 = vmul.f32 %v250, %v274
    %v290 = vld [vmem:[%s3] sm:$0x1f]
    %v292 = vlaneseq
    %v293 = vshrl.u32 %v292, 7
    %v294 = vsub.s32 0, %v293
    %v295 = vrot.slane %v290, %v294
    %v296 = vlaneseq
    %v297 = vshrl.u32 %v296, 7
    %v298 = vsub.s32 1, %v297
    %v299 = vrot.slane %v290, %v298
    %v300 = vlaneseq
    %v301 = vshrl.u32 %v300, 7
    %v302 = vsub.s32 2, %v301
    %v303 = vrot.slane %v290, %v302
    %v304 = vlaneseq
    %v305 = vshrl.u32 %v304, 7
    %v306 = vsub.s32 3, %v305
    %v307 = vrot.slane %v290, %v306
    %v308 = vlaneseq
    %v309 = vshrl.u32 %v308, 7
    %v310 = vsub.s32 4, %v309
    %v311 = vrot.slane %v290, %v310
    %v317 = vadd.f32 %v280, %v295
    %v318 = vadd.f32 %v281, %v299
    %v319 = vadd.f32 %v282, %v303
    %v320 = vadd.f32 %v283, %v307
    %v321 = vadd.f32 %v284, %v311
    %v322 = vadd.f32 %v285, %v295
    %v323 = vadd.f32 %v286, %v299
    %v324 = vadd.f32 %v287, %v303
    %v325 = vadd.f32 %v288, %v307
    %v326 = vadd.f32 %v289, %v311
    %v327 = vmax.f32 %v317, 0.0
    %v328 = vmax.f32 %v318, 0.0
    %v329 = vmax.f32 %v319, 0.0
    %v330 = vmax.f32 %v320, 0.0
    %v331 = vmax.f32 %v321, 0.0
    %v332 = vmax.f32 %v322, 0.0
    %v333 = vmax.f32 %v323, 0.0
    %v334 = vmax.f32 %v324, 0.0
    %v335 = vmax.f32 %v325, 0.0
    %v336 = vmax.f32 %v326, 0.0
    %v337 = vpack.c.bf16 %v332, %v327
    %v338 = vpack.c.bf16 %v333, %v328
    %v339 = vpack.c.bf16 %v334, %v329
    %v340 = vpack.c.bf16 %v335, %v330
    %v341 = vpack.c.bf16 %v336, %v331
    %v342 = vld [vmem:[#allocation4] sm:$0xff]
    %v343 = vld [vmem:[#allocation4 + $0x8] sm:$0xff]
    %v344 = vld [vmem:[#allocation4 + $0x10] sm:$0xff]
    %v345 = vld [vmem:[#allocation4 + $0x18] sm:$0xff]
    %v346 = vld [vmem:[#allocation4 + $0x20] sm:$0xff]
    %v347 = vld [vmem:[#allocation4 + $0x28] sm:$0xff]
    %v348 = vld [vmem:[#allocation4 + $0x30] sm:$0xff]
    %v349 = vld [vmem:[#allocation4 + $0x38] sm:$0xff]
    %v350 = vld [vmem:[#allocation4 + $0x40] sm:$0xff]
    %v351 = vld [vmem:[#allocation4 + $0x48] sm:$0xff]
    %v352 = vld [vmem:[#allocation4 + $0x50] sm:$0xff]
    %v353 = vld [vmem:[#allocation4 + $0x58] sm:$0xff]
    %v354 = vld [vmem:[#allocation4 + $0x60] sm:$0xff]
    %v355 = vld [vmem:[#allocation4 + $0x68] sm:$0xff]
    %v356 = vld [vmem:[#allocation4 + $0x70] sm:$0xff]
    %v357 = vld [vmem:[#allocation4 + $0x78] sm:$0xff]
    %v358 = vld [vmem:[#allocation4 + $0x80] sm:$0xff]
    %v359 = vld [vmem:[#allocation4 + $0x88] sm:$0xff]
    %v360 = vld [vmem:[#allocation4 + $0x90] sm:$0xff]
    %v361 = vld [vmem:[#allocation4 + $0x98] sm:$0xff]
    %v362 = vld [vmem:[#allocation4 + $0xa0] sm:$0xff]
    %v363 = vld [vmem:[#allocation4 + $0xa8] sm:$0xff]
    %v364 = vld [vmem:[#allocation4 + $0xb0] sm:$0xff]
    %v365 = vld [vmem:[#allocation4 + $0xb8] sm:$0xff]
    %v366 = vld [vmem:[#allocation4 + $0xc0] sm:$0xff]
    %v367 = vld [vmem:[#allocation4 + $0xc8] sm:$0xff]
    %v368 = vld [vmem:[#allocation4 + $0xd0] sm:$0xff]
    %v369 = vld [vmem:[#allocation4 + $0xd8] sm:$0xff]
    %v370 = vld [vmem:[#allocation4 + $0xe0] sm:$0xff]
    %v371 = vld [vmem:[#allocation4 + $0xe8] sm:$0xff]
    %v372 = vld [vmem:[#allocation4 + $0xf0] sm:$0xff]
    %v373 = vld [vmem:[#allocation4 + $0xf8] sm:$0xff]
    %v374 = vld [vmem:[#allocation4 + $0x100] sm:$0xff]
    %v375 = vld [vmem:[#allocation4 + $0x108] sm:$0xff]
    %v376 = vld [vmem:[#allocation4 + $0x110] sm:$0xff]
    %v377 = vld [vmem:[#allocation4 + $0x118] sm:$0xff]
    %v378 = vld [vmem:[#allocation4 + $0x120] sm:$0xff]
    %v379 = vld [vmem:[#allocation4 + $0x128] sm:$0xff]
    %v380 = vld [vmem:[#allocation4 + $0x130] sm:$0xff]
    %v381 = vld [vmem:[#allocation4 + $0x138] sm:$0xff]
    %v382 = vld [vmem:[#allocation4 + $0x140] sm:$0xff]
    %v383 = vld [vmem:[#allocation4 + $0x148] sm:$0xff]
    %v384 = vld [vmem:[#allocation4 + $0x150] sm:$0xff]
    %v385 = vld [vmem:[#allocation4 + $0x158] sm:$0xff]
    %v386 = vld [vmem:[#allocation4 + $0x160] sm:$0xff]
    %v387 = vld [vmem:[#allocation4 + $0x168] sm:$0xff]
    %v388 = vld [vmem:[#allocation4 + $0x170] sm:$0xff]
    %v389 = vld [vmem:[#allocation4 + $0x178] sm:$0xff]
    %v390 = vld [vmem:[#allocation4 + $0x180] sm:$0xff]
    %v391 = vld [vmem:[#allocation4 + $0x188] sm:$0xff]
    %v392 = vld [vmem:[#allocation4 + $0x190] sm:$0xff]
    %v393 = vld [vmem:[#allocation4 + $0x198] sm:$0xff]
    %v394 = vld [vmem:[#allocation4 + $0x1a0] sm:$0xff]
    %v395 = vld [vmem:[#allocation4 + $0x1a8] sm:$0xff]
    %v396 = vld [vmem:[#allocation4 + $0x1b0] sm:$0xff]
    %v397 = vld [vmem:[#allocation4 + $0x1b8] sm:$0xff]
    %v398 = vld [vmem:[#allocation4 + $0x1c0] sm:$0xff]
    %v399 = vld [vmem:[#allocation4 + $0x1c8] sm:$0xff]
    %v400 = vld [vmem:[#allocation4 + $0x1d0] sm:$0xff]
    %v401 = vld [vmem:[#allocation4 + $0x1d8] sm:$0xff]
    %v402 = vld [vmem:[#allocation4 + $0x1e0] sm:$0xff]
    %v403 = vld [vmem:[#allocation4 + $0x1e8] sm:$0xff]
    %v404 = vld [vmem:[#allocation4 + $0x1f0] sm:$0xff]
    %v405 = vld [vmem:[#allocation4 + $0x1f8] sm:$0xff]
    %v406 = vld [vmem:[#allocation4 + $0x200] sm:$0xff]
    %v407 = vld [vmem:[#allocation4 + $0x208] sm:$0xff]
    %v408 = vld [vmem:[#allocation4 + $0x210] sm:$0xff]
    %v409 = vld [vmem:[#allocation4 + $0x218] sm:$0xff]
    %v410 = vld [vmem:[#allocation4 + $0x220] sm:$0xff]
    %v411 = vld [vmem:[#allocation4 + $0x228] sm:$0xff]
    %v412 = vld [vmem:[#allocation4 + $0x230] sm:$0xff]
    %v413 = vld [vmem:[#allocation4 + $0x238] sm:$0xff]
    %v414 = vld [vmem:[#allocation4 + $0x240] sm:$0xff]
    %v415 = vld [vmem:[#allocation4 + $0x248] sm:$0xff]
    %v416 = vld [vmem:[#allocation4 + $0x250] sm:$0xff]
    %v417 = vld [vmem:[#allocation4 + $0x258] sm:$0xff]
    %v418 = vld [vmem:[#allocation4 + $0x260] sm:$0xff]
    %v419 = vld [vmem:[#allocation4 + $0x268] sm:$0xff]
    %v420 = vld [vmem:[#allocation4 + $0x270] sm:$0xff]
    %v421 = vld [vmem:[#allocation4 + $0x278] sm:$0xff]
    %v422 = vld [vmem:[#allocation4 + $0x280] sm:$0xff]
    %v423 = vld [vmem:[#allocation4 + $0x288] sm:$0xff]
    %v424 = vld [vmem:[#allocation4 + $0x290] sm:$0xff]
    %v425 = vld [vmem:[#allocation4 + $0x298] sm:$0xff]
    %v426 = vld [vmem:[#allocation4 + $0x2a0] sm:$0xff]
    %v427 = vld [vmem:[#allocation4 + $0x2a8] sm:$0xff]
    %v428 = vld [vmem:[#allocation4 + $0x2b0] sm:$0xff]
    %v429 = vld [vmem:[#allocation4 + $0x2b8] sm:$0xff]
    %v430 = vld [vmem:[#allocation4 + $0x2c0] sm:$0xff]
    %v431 = vld [vmem:[#allocation4 + $0x2c8] sm:$0xff]
    %v432 = vld [vmem:[#allocation4 + $0x2d0] sm:$0xff]
    %v433 = vld [vmem:[#allocation4 + $0x2d8] sm:$0xff]
    %v434 = vld [vmem:[#allocation4 + $0x2e0] sm:$0xff]
    %v435 = vld [vmem:[#allocation4 + $0x2e8] sm:$0xff]
    %v436 = vld [vmem:[#allocation4 + $0x2f0] sm:$0xff]
    %v437 = vld [vmem:[#allocation4 + $0x2f8] sm:$0xff]
    %v438 = vld [vmem:[#allocation4 + $0x300] sm:$0xff]
    %v439 = vld [vmem:[#allocation4 + $0x308] sm:$0xff]
    %v440 = vld [vmem:[#allocation4 + $0x310] sm:$0xff]
    %v441 = vld [vmem:[#allocation4 + $0x318] sm:$0xff]
    %v442 = vld [vmem:[#allocation4 + $0x320] sm:$0xff]
    %v443 = vld [vmem:[#allocation4 + $0x328] sm:$0xff]
    %v444 = vld [vmem:[#allocation4 + $0x330] sm:$0xff]
    %v445 = vld [vmem:[#allocation4 + $0x338] sm:$0xff]
    %v446 = vld [vmem:[#allocation4 + $0x340] sm:$0xff]
    %v447 = vld [vmem:[#allocation4 + $0x348] sm:$0xff]
    %v448 = vld [vmem:[#allocation4 + $0x350] sm:$0xff]
    %v449 = vld [vmem:[#allocation4 + $0x358] sm:$0xff]
    %v450 = vld [vmem:[#allocation4 + $0x360] sm:$0xff]
    %v451 = vld [vmem:[#allocation4 + $0x368] sm:$0xff]
    %v452 = vld [vmem:[#allocation4 + $0x370] sm:$0xff]
    %v453 = vld [vmem:[#allocation4 + $0x378] sm:$0xff]
    %v454 = vld [vmem:[#allocation4 + $0x380] sm:$0xff]
    %v455 = vld [vmem:[#allocation4 + $0x388] sm:$0xff]
    %v456 = vld [vmem:[#allocation4 + $0x390] sm:$0xff]
    %v457 = vld [vmem:[#allocation4 + $0x398] sm:$0xff]
    %v458 = vld [vmem:[#allocation4 + $0x3a0] sm:$0xff]
    %v459 = vld [vmem:[#allocation4 + $0x3a8] sm:$0xff]
    %v460 = vld [vmem:[#allocation4 + $0x3b0] sm:$0xff]
    %v461 = vld [vmem:[#allocation4 + $0x3b8] sm:$0xff]
    %v462 = vld [vmem:[#allocation4 + $0x3c0] sm:$0xff]
    %v463 = vld [vmem:[#allocation4 + $0x3c8] sm:$0xff]
    %v464 = vld [vmem:[#allocation4 + $0x3d0] sm:$0xff]
    %v465 = vld [vmem:[#allocation4 + $0x3d8] sm:$0xff]
    %v466 = vld [vmem:[#allocation4 + $0x3e0] sm:$0xff]
    %v467 = vld [vmem:[#allocation4 + $0x3e8] sm:$0xff]
    %v468 = vld [vmem:[#allocation4 + $0x3f0] sm:$0xff]
    %v469 = vld [vmem:[#allocation4 + $0x3f8] sm:$0xff]
    %v470 = vld [vmem:[#allocation4 + $0x400] sm:$0xff]
    %v471 = vld [vmem:[#allocation4 + $0x408] sm:$0xff]
    %v472 = vld [vmem:[#allocation4 + $0x410] sm:$0xff]
    %v473 = vld [vmem:[#allocation4 + $0x418] sm:$0xff]
    %v474 = vld [vmem:[#allocation4 + $0x420] sm:$0xff]
    %v475 = vld [vmem:[#allocation4 + $0x428] sm:$0xff]
    %v476 = vld [vmem:[#allocation4 + $0x430] sm:$0xff]
    %v477 = vld [vmem:[#allocation4 + $0x438] sm:$0xff]
    %v478 = vld [vmem:[#allocation4 + $0x440] sm:$0xff]
    %v479 = vld [vmem:[#allocation4 + $0x448] sm:$0xff]
    %v480 = vld [vmem:[#allocation4 + $0x450] sm:$0xff]
    %v481 = vld [vmem:[#allocation4 + $0x458] sm:$0xff]
    %v482 = vld [vmem:[#allocation4 + $0x460] sm:$0xff]
    %v483 = vld [vmem:[#allocation4 + $0x468] sm:$0xff]
    %v484 = vld [vmem:[#allocation4 + $0x470] sm:$0xff]
    %v485 = vld [vmem:[#allocation4 + $0x478] sm:$0xff]
    %v486 = vld [vmem:[#allocation4 + $0x480] sm:$0xff]
    %v487 = vld [vmem:[#allocation4 + $0x488] sm:$0xff]
    %v488 = vld [vmem:[#allocation4 + $0x490] sm:$0xff]
    %v489 = vld [vmem:[#allocation4 + $0x498] sm:$0xff]
    %v490 = vld [vmem:[#allocation4 + $0x4a0] sm:$0xff]
    %v491 = vld [vmem:[#allocation4 + $0x4a8] sm:$0xff]
    %v492 = vld [vmem:[#allocation4 + $0x4b0] sm:$0xff]
    %v493 = vld [vmem:[#allocation4 + $0x4b8] sm:$0xff]
    %v494 = vld [vmem:[#allocation4 + $0x4c0] sm:$0xff]
    %v495 = vld [vmem:[#allocation4 + $0x4c8] sm:$0xff]
    %v496 = vld [vmem:[#allocation4 + $0x4d0] sm:$0xff]
    %v497 = vld [vmem:[#allocation4 + $0x4d8] sm:$0xff]
    %v498 = vld [vmem:[#allocation4 + $0x4e0] sm:$0xff]
    %v499 = vld [vmem:[#allocation4 + $0x4e8] sm:$0xff]
    %v500 = vld [vmem:[#allocation4 + $0x4f0] sm:$0xff]
    %v501 = vld [vmem:[#allocation4 + $0x4f8] sm:$0xff]
    %v502 = vld [vmem:[#allocation4 + $0x500] sm:$0xff]
    %v503 = vld [vmem:[#allocation4 + $0x508] sm:$0xff]
    %v504 = vld [vmem:[#allocation4 + $0x510] sm:$0xff]
    %v505 = vld [vmem:[#allocation4 + $0x518] sm:$0xff]
    %v506 = vld [vmem:[#allocation4 + $0x520] sm:$0xff]
    %v507 = vld [vmem:[#allocation4 + $0x528] sm:$0xff]
    %v508 = vld [vmem:[#allocation4 + $0x530] sm:$0xff]
    %v509 = vld [vmem:[#allocation4 + $0x538] sm:$0xff]
    %v510 = vld [vmem:[#allocation4 + $0x540] sm:$0xff]
    %v511 = vld [vmem:[#allocation4 + $0x548] sm:$0xff]
    %v512 = vld [vmem:[#allocation4 + $0x550] sm:$0xff]
    %v513 = vld [vmem:[#allocation4 + $0x558] sm:$0xff]
    %v514 = vld [vmem:[#allocation4 + $0x560] sm:$0xff]
    %v515 = vld [vmem:[#allocation4 + $0x568] sm:$0xff]
    %v516 = vld [vmem:[#allocation4 + $0x570] sm:$0xff]
    %v517 = vld [vmem:[#allocation4 + $0x578] sm:$0xff]
    %v518 = vld [vmem:[#allocation4 + $0x580] sm:$0xff]
    %v519 = vld [vmem:[#allocation4 + $0x588] sm:$0xff]
    %v520 = vld [vmem:[#allocation4 + $0x590] sm:$0xff]
    %v521 = vld [vmem:[#allocation4 + $0x598] sm:$0xff]
    %v522 = vld [vmem:[#allocation4 + $0x5a0] sm:$0xff]
    %v523 = vld [vmem:[#allocation4 + $0x5a8] sm:$0xff]
    %v524 = vld [vmem:[#allocation4 + $0x5b0] sm:$0xff]
    %v525 = vld [vmem:[#allocation4 + $0x5b8] sm:$0xff]
    %v526 = vld [vmem:[#allocation4 + $0x5c0] sm:$0xff]
    %v527 = vld [vmem:[#allocation4 + $0x5c8] sm:$0xff]
    %v528 = vld [vmem:[#allocation4 + $0x5d0] sm:$0xff]
    %v529 = vld [vmem:[#allocation4 + $0x5d8] sm:$0xff]
    %v530 = vld [vmem:[#allocation4 + $0x5e0] sm:$0xff]
    %v531 = vld [vmem:[#allocation4 + $0x5e8] sm:$0xff]
    %v532 = vld [vmem:[#allocation4 + $0x5f0] sm:$0xff]
    %v533 = vld [vmem:[#allocation4 + $0x5f8] sm:$0xff]
    %v534 = vld [vmem:[#allocation4 + $0x600] sm:$0xff]
    %v535 = vld [vmem:[#allocation4 + $0x608] sm:$0xff]
    %v536 = vld [vmem:[#allocation4 + $0x610] sm:$0xff]
    %v537 = vld [vmem:[#allocation4 + $0x618] sm:$0xff]
    %v538 = vld [vmem:[#allocation4 + $0x620] sm:$0xff]
    %v539 = vld [vmem:[#allocation4 + $0x628] sm:$0xff]
    %v540 = vld [vmem:[#allocation4 + $0x630] sm:$0xff]
    %v541 = vld [vmem:[#allocation4 + $0x638] sm:$0xff]
    %v542 = vld [vmem:[#allocation4 + $0x640] sm:$0xff]
    %v543 = vld [vmem:[#allocation4 + $0x648] sm:$0xff]
    %v544 = vld [vmem:[#allocation4 + $0x650] sm:$0xff]
    %v545 = vld [vmem:[#allocation4 + $0x658] sm:$0xff]
    %v546 = vld [vmem:[#allocation4 + $0x660] sm:$0xff]
    %v547 = vld [vmem:[#allocation4 + $0x668] sm:$0xff]
    %v548 = vld [vmem:[#allocation4 + $0x670] sm:$0xff]
    %v549 = vld [vmem:[#allocation4 + $0x678] sm:$0xff]
    %v550 = vld [vmem:[#allocation4 + $0x680] sm:$0xff]
    %v551 = vld [vmem:[#allocation4 + $0x688] sm:$0xff]
    %v552 = vld [vmem:[#allocation4 + $0x690] sm:$0xff]
    %v553 = vld [vmem:[#allocation4 + $0x698] sm:$0xff]
    %v554 = vld [vmem:[#allocation4 + $0x6a0] sm:$0xff]
    %v555 = vld [vmem:[#allocation4 + $0x6a8] sm:$0xff]
    %v556 = vld [vmem:[#allocation4 + $0x6b0] sm:$0xff]
    %v557 = vld [vmem:[#allocation4 + $0x6b8] sm:$0xff]
    %v558 = vld [vmem:[#allocation4 + $0x6c0] sm:$0xff]
    %v559 = vld [vmem:[#allocation4 + $0x6c8] sm:$0xff]
    %v560 = vld [vmem:[#allocation4 + $0x6d0] sm:$0xff]
    %v561 = vld [vmem:[#allocation4 + $0x6d8] sm:$0xff]
    %v562 = vld [vmem:[#allocation4 + $0x6e0] sm:$0xff]
    %v563 = vld [vmem:[#allocation4 + $0x6e8] sm:$0xff]
    %v564 = vld [vmem:[#allocation4 + $0x6f0] sm:$0xff]
    %v565 = vld [vmem:[#allocation4 + $0x6f8] sm:$0xff]
    %v566 = vld [vmem:[#allocation4 + $0x700] sm:$0xff]
    %v567 = vld [vmem:[#allocation4 + $0x708] sm:$0xff]
    %v568 = vld [vmem:[#allocation4 + $0x710] sm:$0xff]
    %v569 = vld [vmem:[#allocation4 + $0x718] sm:$0xff]
    %v570 = vld [vmem:[#allocation4 + $0x720] sm:$0xff]
    %v571 = vld [vmem:[#allocation4 + $0x728] sm:$0xff]
    %v572 = vld [vmem:[#allocation4 + $0x730] sm:$0xff]
    %v573 = vld [vmem:[#allocation4 + $0x738] sm:$0xff]
    %v574 = vld [vmem:[#allocation4 + $0x740] sm:$0xff]
    %v575 = vld [vmem:[#allocation4 + $0x748] sm:$0xff]
    %v576 = vld [vmem:[#allocation4 + $0x750] sm:$0xff]
    %v577 = vld [vmem:[#allocation4 + $0x758] sm:$0xff]
    %v578 = vld [vmem:[#allocation4 + $0x760] sm:$0xff]
    %v579 = vld [vmem:[#allocation4 + $0x768] sm:$0xff]
    %v580 = vld [vmem:[#allocation4 + $0x770] sm:$0xff]
    %v581 = vld [vmem:[#allocation4 + $0x778] sm:$0xff]
    %v582 = vld [vmem:[#allocation4 + $0x780] sm:$0xff]
    %v583 = vld [vmem:[#allocation4 + $0x788] sm:$0xff]
    %v584 = vld [vmem:[#allocation4 + $0x790] sm:$0xff]
    %v585 = vld [vmem:[#allocation4 + $0x798] sm:$0xff]
    %v586 = vld [vmem:[#allocation4 + $0x7a0] sm:$0xff]
    %v587 = vld [vmem:[#allocation4 + $0x7a8] sm:$0xff]
    %v588 = vld [vmem:[#allocation4 + $0x7b0] sm:$0xff]
    %v589 = vld [vmem:[#allocation4 + $0x7b8] sm:$0xff]
    %v590 = vld [vmem:[#allocation4 + $0x7c0] sm:$0xff]
    %v591 = vld [vmem:[#allocation4 + $0x7c8] sm:$0xff]
    %v592 = vld [vmem:[#allocation4 + $0x7d0] sm:$0xff]
    %v593 = vld [vmem:[#allocation4 + $0x7d8] sm:$0xff]
    %v594 = vld [vmem:[#allocation4 + $0x7e0] sm:$0xff]
    %v595 = vld [vmem:[#allocation4 + $0x7e8] sm:$0xff]
    %v596 = vld [vmem:[#allocation4 + $0x7f0] sm:$0xff]
    %v597 = vld [vmem:[#allocation4 + $0x7f8] sm:$0xff]
    %v598 = vld [vmem:[#allocation4 + $0x800] sm:$0xff]
    %v599 = vld [vmem:[#allocation4 + $0x808] sm:$0xff]
    %v600 = vld [vmem:[#allocation4 + $0x810] sm:$0xff]
    %v601 = vld [vmem:[#allocation4 + $0x818] sm:$0xff]
    %v602 = vld [vmem:[#allocation4 + $0x820] sm:$0xff]
    %v603 = vld [vmem:[#allocation4 + $0x828] sm:$0xff]
    %v604 = vld [vmem:[#allocation4 + $0x830] sm:$0xff]
    %v605 = vld [vmem:[#allocation4 + $0x838] sm:$0xff]
    %v606 = vld [vmem:[#allocation4 + $0x840] sm:$0xff]
    %v607 = vld [vmem:[#allocation4 + $0x848] sm:$0xff]
    %v608 = vld [vmem:[#allocation4 + $0x850] sm:$0xff]
    %v609 = vld [vmem:[#allocation4 + $0x858] sm:$0xff]
    %v610 = vld [vmem:[#allocation4 + $0x860] sm:$0xff]
    %v611 = vld [vmem:[#allocation4 + $0x868] sm:$0xff]
    %v612 = vld [vmem:[#allocation4 + $0x870] sm:$0xff]
    %v613 = vld [vmem:[#allocation4 + $0x878] sm:$0xff]
    %v614 = vld [vmem:[#allocation4 + $0x880] sm:$0xff]
    %v615 = vld [vmem:[#allocation4 + $0x888] sm:$0xff]
    %v616 = vld [vmem:[#allocation4 + $0x890] sm:$0xff]
    %v617 = vld [vmem:[#allocation4 + $0x898] sm:$0xff]
    %v618 = vld [vmem:[#allocation4 + $0x8a0] sm:$0xff]
    %v619 = vld [vmem:[#allocation4 + $0x8a8] sm:$0xff]
    %v620 = vld [vmem:[#allocation4 + $0x8b0] sm:$0xff]
    %v621 = vld [vmem:[#allocation4 + $0x8b8] sm:$0xff]
    %v622 = vld [vmem:[#allocation4 + $0x8c0] sm:$0xff]
    %v623 = vld [vmem:[#allocation4 + $0x8c8] sm:$0xff]
    %v624 = vld [vmem:[#allocation4 + $0x8d0] sm:$0xff]
    %v625 = vld [vmem:[#allocation4 + $0x8d8] sm:$0xff]
    %v626 = vld [vmem:[#allocation4 + $0x8e0] sm:$0xff]
    %v627 = vld [vmem:[#allocation4 + $0x8e8] sm:$0xff]
    %v628 = vld [vmem:[#allocation4 + $0x8f0] sm:$0xff]
    %v629 = vld [vmem:[#allocation4 + $0x8f8] sm:$0xff]
    %v630 = vld [vmem:[#allocation4 + $0x900] sm:$0xff]
    %v631 = vld [vmem:[#allocation4 + $0x908] sm:$0xff]
    %v632 = vld [vmem:[#allocation4 + $0x910] sm:$0xff]
    %v633 = vld [vmem:[#allocation4 + $0x918] sm:$0xff]
    %v634 = vld [vmem:[#allocation4 + $0x920] sm:$0xff]
    %v635 = vld [vmem:[#allocation4 + $0x928] sm:$0xff]
    %v636 = vld [vmem:[#allocation4 + $0x930] sm:$0xff]
    %v637 = vld [vmem:[#allocation4 + $0x938] sm:$0xff]
    %v638 = vld [vmem:[#allocation4 + $0x940] sm:$0xff]
    %v639 = vld [vmem:[#allocation4 + $0x948] sm:$0xff]
    %v640 = vld [vmem:[#allocation4 + $0x950] sm:$0xff]
    %v641 = vld [vmem:[#allocation4 + $0x958] sm:$0xff]
    %v642 = vld [vmem:[#allocation4 + $0x960] sm:$0xff]
    %v643 = vld [vmem:[#allocation4 + $0x968] sm:$0xff]
    %v644 = vld [vmem:[#allocation4 + $0x970] sm:$0xff]
    %v645 = vld [vmem:[#allocation4 + $0x978] sm:$0xff]
    %v646 = vld [vmem:[#allocation4 + $0x980] sm:$0xff]
    %v647 = vld [vmem:[#allocation4 + $0x988] sm:$0xff]
    %v648 = vld [vmem:[#allocation4 + $0x990] sm:$0xff]
    %v649 = vld [vmem:[#allocation4 + $0x998] sm:$0xff]
    %v650 = vld [vmem:[#allocation4 + $0x9a0] sm:$0xff]
    %v651 = vld [vmem:[#allocation4 + $0x9a8] sm:$0xff]
    %v652 = vld [vmem:[#allocation4 + $0x9b0] sm:$0xff]
    %v653 = vld [vmem:[#allocation4 + $0x9b8] sm:$0xff]
    %v654 = vld [vmem:[#allocation4 + $0x9c0] sm:$0xff]
    %v655 = vld [vmem:[#allocation4 + $0x9c8] sm:$0xff]
    %v656 = vld [vmem:[#allocation4 + $0x9d0] sm:$0xff]
    %v657 = vld [vmem:[#allocation4 + $0x9d8] sm:$0xff]
    %v658 = vld [vmem:[#allocation4 + $0x9e0] sm:$0xff]
    %v659 = vld [vmem:[#allocation4 + $0x9e8] sm:$0xff]
    %v660 = vld [vmem:[#allocation4 + $0x9f0] sm:$0xff]
    %v661 = vld [vmem:[#allocation4 + $0x9f8] sm:$0xff]
    %v662 = vld [vmem:[#allocation4 + $0xa00] sm:$0xff]
    %v663 = vld [vmem:[#allocation4 + $0xa08] sm:$0xff]
    %v664 = vld [vmem:[#allocation4 + $0xa10] sm:$0xff]
    %v665 = vld [vmem:[#allocation4 + $0xa18] sm:$0xff]
    %v666 = vld [vmem:[#allocation4 + $0xa20] sm:$0xff]
    %v667 = vld [vmem:[#allocation4 + $0xa28] sm:$0xff]
    %v668 = vld [vmem:[#allocation4 + $0xa30] sm:$0xff]
    %v669 = vld [vmem:[#allocation4 + $0xa38] sm:$0xff]
    %v670 = vld [vmem:[#allocation4 + $0xa40] sm:$0xff]
    %v671 = vld [vmem:[#allocation4 + $0xa48] sm:$0xff]
    %v672 = vld [vmem:[#allocation4 + $0xa50] sm:$0xff]
    %v673 = vld [vmem:[#allocation4 + $0xa58] sm:$0xff]
    %v674 = vld [vmem:[#allocation4 + $0xa60] sm:$0xff]
    %v675 = vld [vmem:[#allocation4 + $0xa68] sm:$0xff]
    %v676 = vld [vmem:[#allocation4 + $0xa70] sm:$0xff]
    %v677 = vld [vmem:[#allocation4 + $0xa78] sm:$0xff]
    %v678 = vld [vmem:[#allocation4 + $0xa80] sm:$0xff]
    %v679 = vld [vmem:[#allocation4 + $0xa88] sm:$0xff]
    %v680 = vld [vmem:[#allocation4 + $0xa90] sm:$0xff]
    %v681 = vld [vmem:[#allocation4 + $0xa98] sm:$0xff]
    %v682 = vld [vmem:[#allocation4 + $0xaa0] sm:$0xff]
    %v683 = vld [vmem:[#allocation4 + $0xaa8] sm:$0xff]
    %v684 = vld [vmem:[#allocation4 + $0xab0] sm:$0xff]
    %v685 = vld [vmem:[#allocation4 + $0xab8] sm:$0xff]
    %v686 = vld [vmem:[#allocation4 + $0xac0] sm:$0xff]
    %v687 = vld [vmem:[#allocation4 + $0xac8] sm:$0xff]
    %v688 = vld [vmem:[#allocation4 + $0xad0] sm:$0xff]
    %v689 = vld [vmem:[#allocation4 + $0xad8] sm:$0xff]
    %v690 = vld [vmem:[#allocation4 + $0xae0] sm:$0xff]
    %v691 = vld [vmem:[#allocation4 + $0xae8] sm:$0xff]
    %v692 = vld [vmem:[#allocation4 + $0xaf0] sm:$0xff]
    %v693 = vld [vmem:[#allocation4 + $0xaf8] sm:$0xff]
    %v694 = vld [vmem:[#allocation4 + $0xb00] sm:$0xff]
    %v695 = vld [vmem:[#allocation4 + $0xb08] sm:$0xff]
    %v696 = vld [vmem:[#allocation4 + $0xb10] sm:$0xff]
    %v697 = vld [vmem:[#allocation4 + $0xb18] sm:$0xff]
    %v698 = vld [vmem:[#allocation4 + $0xb20] sm:$0xff]
    %v699 = vld [vmem:[#allocation4 + $0xb28] sm:$0xff]
    %v700 = vld [vmem:[#allocation4 + $0xb30] sm:$0xff]
    %v701 = vld [vmem:[#allocation4 + $0xb38] sm:$0xff]
    %v702 = vld [vmem:[#allocation4 + $0xb40] sm:$0xff]
    %v703 = vld [vmem:[#allocation4 + $0xb48] sm:$0xff]
    %v704 = vld [vmem:[#allocation4 + $0xb50] sm:$0xff]
    %v705 = vld [vmem:[#allocation4 + $0xb58] sm:$0xff]
    %v706 = vld [vmem:[#allocation4 + $0xb60] sm:$0xff]
    %v707 = vld [vmem:[#allocation4 + $0xb68] sm:$0xff]
    %v708 = vld [vmem:[#allocation4 + $0xb70] sm:$0xff]
    %v709 = vld [vmem:[#allocation4 + $0xb78] sm:$0xff]
    %v710 = vld [vmem:[#allocation4 + $0xb80] sm:$0xff]
    %v711 = vld [vmem:[#allocation4 + $0xb88] sm:$0xff]
    %v712 = vld [vmem:[#allocation4 + $0xb90] sm:$0xff]
    %v713 = vld [vmem:[#allocation4 + $0xb98] sm:$0xff]
    %v714 = vld [vmem:[#allocation4 + $0xba0] sm:$0xff]
    %v715 = vld [vmem:[#allocation4 + $0xba8] sm:$0xff]
    %v716 = vld [vmem:[#allocation4 + $0xbb0] sm:$0xff]
    %v717 = vld [vmem:[#allocation4 + $0xbb8] sm:$0xff]
    %v718 = vld [vmem:[#allocation4 + $0xbc0] sm:$0xff]
    %v719 = vld [vmem:[#allocation4 + $0xbc8] sm:$0xff]
    %v720 = vld [vmem:[#allocation4 + $0xbd0] sm:$0xff]
    %v721 = vld [vmem:[#allocation4 + $0xbd8] sm:$0xff]
    %v722 = vld [vmem:[#allocation4 + $0xbe0] sm:$0xff]
    %v723 = vld [vmem:[#allocation4 + $0xbe8] sm:$0xff]
    %v724 = vld [vmem:[#allocation4 + $0xbf0] sm:$0xff]
    %v725 = vld [vmem:[#allocation4 + $0xbf8] sm:$0xff]
    %v726 = vld [vmem:[#allocation4 + $0xc00] sm:$0xff]
    %v727 = vld [vmem:[#allocation4 + $0xc08] sm:$0xff]
    %v728 = vld [vmem:[#allocation4 + $0xc10] sm:$0xff]
    %v729 = vld [vmem:[#allocation4 + $0xc18] sm:$0xff]
    %v730 = vld [vmem:[#allocation4 + $0xc20] sm:$0xff]
    %v731 = vld [vmem:[#allocation4 + $0xc28] sm:$0xff]
    %v732 = vld [vmem:[#allocation4 + $0xc30] sm:$0xff]
    %v733 = vld [vmem:[#allocation4 + $0xc38] sm:$0xff]
    %v734 = vld [vmem:[#allocation4 + $0xc40] sm:$0xff]
    %v735 = vld [vmem:[#allocation4 + $0xc48] sm:$0xff]
    %v736 = vld [vmem:[#allocation4 + $0xc50] sm:$0xff]
    %v737 = vld [vmem:[#allocation4 + $0xc58] sm:$0xff]
    %v738 = vld [vmem:[#allocation4 + $0xc60] sm:$0xff]
    %v739 = vld [vmem:[#allocation4 + $0xc68] sm:$0xff]
    %v740 = vld [vmem:[#allocation4 + $0xc70] sm:$0xff]
    %v741 = vld [vmem:[#allocation4 + $0xc78] sm:$0xff]
    %v1142 = vunpack.c.l.b16 %v342
    %v1143 = vunpack.c.h.b16 %v342
    %v1144 = vunpack.c.l.b16 %v343
    %v1145 = vunpack.c.h.b16 %v343
    %v1146 = vunpack.c.l.b16 %v344
    %v1147 = vunpack.c.h.b16 %v344
    %v1148 = vunpack.c.l.b16 %v345
    %v1149 = vunpack.c.h.b16 %v345
    %v1150 = vunpack.c.l.b16 %v346
    %v1151 = vunpack.c.h.b16 %v346
    %v1152 = vunpack.c.l.b16 %v347
    %v1153 = vunpack.c.h.b16 %v347
    %v1154 = vunpack.c.l.b16 %v348
    %v1155 = vunpack.c.h.b16 %v348
    %v1156 = vunpack.c.l.b16 %v349
    %v1157 = vunpack.c.h.b16 %v349
    %v1158 = vunpack.c.l.b16 %v350
    %v1159 = vunpack.c.h.b16 %v350
    %v1160 = vunpack.c.l.b16 %v351
    %v1161 = vunpack.c.h.b16 %v351
    %v1162 = vunpack.c.l.b16 %v352
    %v1163 = vunpack.c.h.b16 %v352
    %v1164 = vunpack.c.l.b16 %v353
    %v1165 = vunpack.c.h.b16 %v353
    %v1166 = vunpack.c.l.b16 %v354
    %v1167 = vunpack.c.h.b16 %v354
    %v1168 = vunpack.c.l.b16 %v355
    %v1169 = vunpack.c.h.b16 %v355
    %v1170 = vunpack.c.l.b16 %v356
    %v1171 = vunpack.c.h.b16 %v356
    %v1172 = vunpack.c.l.b16 %v357
    %v1173 = vunpack.c.h.b16 %v357
    %v1174 = vunpack.c.l.b16 %v358
    %v1175 = vunpack.c.h.b16 %v358
    %v1176 = vunpack.c.l.b16 %v359
    %v1177 = vunpack.c.h.b16 %v359
    %v1178 = vunpack.c.l.b16 %v360
    %v1179 = vunpack.c.h.b16 %v360
    %v1180 = vunpack.c.l.b16 %v361
    %v1181 = vunpack.c.h.b16 %v361
    %v1182 = vunpack.c.l.b16 %v362
    %v1183 = vunpack.c.h.b16 %v362
    %v1184 = vunpack.c.l.b16 %v363
    %v1185 = vunpack.c.h.b16 %v363
    %v1186 = vunpack.c.l.b16 %v364
    %v1187 = vunpack.c.h.b16 %v364
    %v1188 = vunpack.c.l.b16 %v365
    %v1189 = vunpack.c.h.b16 %v365
    %v1190 = vunpack.c.l.b16 %v366
    %v1191 = vunpack.c.h.b16 %v366
    %v1192 = vunpack.c.l.b16 %v367
    %v1193 = vunpack.c.h.b16 %v367
    %v1194 = vunpack.c.l.b16 %v368
    %v1195 = vunpack.c.h.b16 %v368
    %v1196 = vunpack.c.l.b16 %v369
    %v1197 = vunpack.c.h.b16 %v369
    %v1198 = vunpack.c.l.b16 %v370
    %v1199 = vunpack.c.h.b16 %v370
    %v1200 = vunpack.c.l.b16 %v371
    %v1201 = vunpack.c.h.b16 %v371
    %v1202 = vunpack.c.l.b16 %v372
    %v1203 = vunpack.c.h.b16 %v372
    %v1204 = vunpack.c.l.b16 %v373
    %v1205 = vunpack.c.h.b16 %v373
    %v1206 = vunpack.c.l.b16 %v374
    %v1207 = vunpack.c.h.b16 %v374
    %v1208 = vunpack.c.l.b16 %v375
    %v1209 = vunpack.c.h.b16 %v375
    %v1210 = vunpack.c.l.b16 %v376
    %v1211 = vunpack.c.h.b16 %v376
    %v1212 = vunpack.c.l.b16 %v377
    %v1213 = vunpack.c.h.b16 %v377
    %v1214 = vunpack.c.l.b16 %v378
    %v1215 = vunpack.c.h.b16 %v378
    %v1216 = vunpack.c.l.b16 %v379
    %v1217 = vunpack.c.h.b16 %v379
    %v1218 = vunpack.c.l.b16 %v380
    %v1219 = vunpack.c.h.b16 %v380
    %v1220 = vunpack.c.l.b16 %v381
    %v1221 = vunpack.c.h.b16 %v381
    %v1222 = vunpack.c.l.b16 %v382
    %v1223 = vunpack.c.h.b16 %v382
    %v1224 = vunpack.c.l.b16 %v383
    %v1225 = vunpack.c.h.b16 %v383
    %v1226 = vunpack.c.l.b16 %v384
    %v1227 = vunpack.c.h.b16 %v384
    %v1228 = vunpack.c.l.b16 %v385
    %v1229 = vunpack.c.h.b16 %v385
    %v1230 = vunpack.c.l.b16 %v386
    %v1231 = vunpack.c.h.b16 %v386
    %v1232 = vunpack.c.l.b16 %v387
    %v1233 = vunpack.c.h.b16 %v387
    %v1234 = vunpack.c.l.b16 %v388
    %v1235 = vunpack.c.h.b16 %v388
    %v1236 = vunpack.c.l.b16 %v389
    %v1237 = vunpack.c.h.b16 %v389
    %v1238 = vunpack.c.l.b16 %v390
    %v1239 = vunpack.c.h.b16 %v390
    %v1240 = vunpack.c.l.b16 %v391
    %v1241 = vunpack.c.h.b16 %v391
    %v1242 = vunpack.c.l.b16 %v392
    %v1243 = vunpack.c.h.b16 %v392
    %v1244 = vunpack.c.l.b16 %v393
    %v1245 = vunpack.c.h.b16 %v393
    %v1246 = vunpack.c.l.b16 %v394
    %v1247 = vunpack.c.h.b16 %v394
    %v1248 = vunpack.c.l.b16 %v395
    %v1249 = vunpack.c.h.b16 %v395
    %v1250 = vunpack.c.l.b16 %v396
    %v1251 = vunpack.c.h.b16 %v396
    %v1252 = vunpack.c.l.b16 %v397
    %v1253 = vunpack.c.h.b16 %v397
    %v1254 = vunpack.c.l.b16 %v398
    %v1255 = vunpack.c.h.b16 %v398
    %v1256 = vunpack.c.l.b16 %v399
    %v1257 = vunpack.c.h.b16 %v399
    %v1258 = vunpack.c.l.b16 %v400
    %v1259 = vunpack.c.h.b16 %v400
    %v1260 = vunpack.c.l.b16 %v401
    %v1261 = vunpack.c.h.b16 %v401
    %v1262 = vunpack.c.l.b16 %v402
    %v1263 = vunpack.c.h.b16 %v402
    %v1264 = vunpack.c.l.b16 %v403
    %v1265 = vunpack.c.h.b16 %v403
    %v1266 = vunpack.c.l.b16 %v404
    %v1267 = vunpack.c.h.b16 %v404
    %v1268 = vunpack.c.l.b16 %v405
    %v1269 = vunpack.c.h.b16 %v405
    %v1270 = vunpack.c.l.b16 %v406
    %v1271 = vunpack.c.h.b16 %v406
    %v1272 = vunpack.c.l.b16 %v407
    %v1273 = vunpack.c.h.b16 %v407
    %v1274 = vunpack.c.l.b16 %v408
    %v1275 = vunpack.c.h.b16 %v408
    %v1276 = vunpack.c.l.b16 %v409
    %v1277 = vunpack.c.h.b16 %v409
    %v1278 = vunpack.c.l.b16 %v410
    %v1279 = vunpack.c.h.b16 %v410
    %v1280 = vunpack.c.l.b16 %v411
    %v1281 = vunpack.c.h.b16 %v411
    %v1282 = vunpack.c.l.b16 %v412
    %v1283 = vunpack.c.h.b16 %v412
    %v1284 = vunpack.c.l.b16 %v413
    %v1285 = vunpack.c.h.b16 %v413
    %v1286 = vunpack.c.l.b16 %v414
    %v1287 = vunpack.c.h.b16 %v414
    %v1288 = vunpack.c.l.b16 %v415
    %v1289 = vunpack.c.h.b16 %v415
    %v1290 = vunpack.c.l.b16 %v416
    %v1291 = vunpack.c.h.b16 %v416
    %v1292 = vunpack.c.l.b16 %v417
    %v1293 = vunpack.c.h.b16 %v417
    %v1294 = vunpack.c.l.b16 %v418
    %v1295 = vunpack.c.h.b16 %v418
    %v1296 = vunpack.c.l.b16 %v419
    %v1297 = vunpack.c.h.b16 %v419
    %v1298 = vunpack.c.l.b16 %v420
    %v1299 = vunpack.c.h.b16 %v420
    %v1300 = vunpack.c.l.b16 %v421
    %v1301 = vunpack.c.h.b16 %v421
    %v1302 = vunpack.c.l.b16 %v422
    %v1303 = vunpack.c.h.b16 %v422
    %v1304 = vunpack.c.l.b16 %v423
    %v1305 = vunpack.c.h.b16 %v423
    %v1306 = vunpack.c.l.b16 %v424
    %v1307 = vunpack.c.h.b16 %v424
    %v1308 = vunpack.c.l.b16 %v425
    %v1309 = vunpack.c.h.b16 %v425
    %v1310 = vunpack.c.l.b16 %v426
    %v1311 = vunpack.c.h.b16 %v426
    %v1312 = vunpack.c.l.b16 %v427
    %v1313 = vunpack.c.h.b16 %v427
    %v1314 = vunpack.c.l.b16 %v428
    %v1315 = vunpack.c.h.b16 %v428
    %v1316 = vunpack.c.l.b16 %v429
    %v1317 = vunpack.c.h.b16 %v429
    %v1318 = vunpack.c.l.b16 %v430
    %v1319 = vunpack.c.h.b16 %v430
    %v1320 = vunpack.c.l.b16 %v431
    %v1321 = vunpack.c.h.b16 %v431
    %v1322 = vunpack.c.l.b16 %v432
    %v1323 = vunpack.c.h.b16 %v432
    %v1324 = vunpack.c.l.b16 %v433
    %v1325 = vunpack.c.h.b16 %v433
    %v1326 = vunpack.c.l.b16 %v434
    %v1327 = vunpack.c.h.b16 %v434
    %v1328 = vunpack.c.l.b16 %v435
    %v1329 = vunpack.c.h.b16 %v435
    %v1330 = vunpack.c.l.b16 %v436
    %v1331 = vunpack.c.h.b16 %v436
    %v1332 = vunpack.c.l.b16 %v437
    %v1333 = vunpack.c.h.b16 %v437
    %v1334 = vunpack.c.l.b16 %v438
    %v1335 = vunpack.c.h.b16 %v438
    %v1336 = vunpack.c.l.b16 %v439
    %v1337 = vunpack.c.h.b16 %v439
    %v1338 = vunpack.c.l.b16 %v440
    %v1339 = vunpack.c.h.b16 %v440
    %v1340 = vunpack.c.l.b16 %v441
    %v1341 = vunpack.c.h.b16 %v441
    %v1342 = vunpack.c.l.b16 %v442
    %v1343 = vunpack.c.h.b16 %v442
    %v1344 = vunpack.c.l.b16 %v443
    %v1345 = vunpack.c.h.b16 %v443
    %v1346 = vunpack.c.l.b16 %v444
    %v1347 = vunpack.c.h.b16 %v444
    %v1348 = vunpack.c.l.b16 %v445
    %v1349 = vunpack.c.h.b16 %v445
    %v1350 = vunpack.c.l.b16 %v446
    %v1351 = vunpack.c.h.b16 %v446
    %v1352 = vunpack.c.l.b16 %v447
    %v1353 = vunpack.c.h.b16 %v447
    %v1354 = vunpack.c.l.b16 %v448
    %v1355 = vunpack.c.h.b16 %v448
    %v1356 = vunpack.c.l.b16 %v449
    %v1357 = vunpack.c.h.b16 %v449
    %v1358 = vunpack.c.l.b16 %v450
    %v1359 = vunpack.c.h.b16 %v450
    %v1360 = vunpack.c.l.b16 %v451
    %v1361 = vunpack.c.h.b16 %v451
    %v1362 = vunpack.c.l.b16 %v452
    %v1363 = vunpack.c.h.b16 %v452
    %v1364 = vunpack.c.l.b16 %v453
    %v1365 = vunpack.c.h.b16 %v453
    %v1366 = vunpack.c.l.b16 %v454
    %v1367 = vunpack.c.h.b16 %v454
    %v1368 = vunpack.c.l.b16 %v455
    %v1369 = vunpack.c.h.b16 %v455
    %v1370 = vunpack.c.l.b16 %v456
    %v1371 = vunpack.c.h.b16 %v456
    %v1372 = vunpack.c.l.b16 %v457
    %v1373 = vunpack.c.h.b16 %v457
    %v1374 = vunpack.c.l.b16 %v458
    %v1375 = vunpack.c.h.b16 %v458
    %v1376 = vunpack.c.l.b16 %v459
    %v1377 = vunpack.c.h.b16 %v459
    %v1378 = vunpack.c.l.b16 %v460
    %v1379 = vunpack.c.h.b16 %v460
    %v1380 = vunpack.c.l.b16 %v461
    %v1381 = vunpack.c.h.b16 %v461
    %v1382 = vunpack.c.l.b16 %v462
    %v1383 = vunpack.c.h.b16 %v462
    %v1384 = vunpack.c.l.b16 %v463
    %v1385 = vunpack.c.h.b16 %v463
    %v1386 = vunpack.c.l.b16 %v464
    %v1387 = vunpack.c.h.b16 %v464
    %v1388 = vunpack.c.l.b16 %v465
    %v1389 = vunpack.c.h.b16 %v465
    %v1390 = vunpack.c.l.b16 %v466
    %v1391 = vunpack.c.h.b16 %v466
    %v1392 = vunpack.c.l.b16 %v467
    %v1393 = vunpack.c.h.b16 %v467
    %v1394 = vunpack.c.l.b16 %v468
    %v1395 = vunpack.c.h.b16 %v468
    %v1396 = vunpack.c.l.b16 %v469
    %v1397 = vunpack.c.h.b16 %v469
    %v1398 = vunpack.c.l.b16 %v470
    %v1399 = vunpack.c.h.b16 %v470
    %v1400 = vunpack.c.l.b16 %v471
    %v1401 = vunpack.c.h.b16 %v471
    %v1402 = vunpack.c.l.b16 %v472
    %v1403 = vunpack.c.h.b16 %v472
    %v1404 = vunpack.c.l.b16 %v473
    %v1405 = vunpack.c.h.b16 %v473
    %v1406 = vunpack.c.l.b16 %v474
    %v1407 = vunpack.c.h.b16 %v474
    %v1408 = vunpack.c.l.b16 %v475
    %v1409 = vunpack.c.h.b16 %v475
    %v1410 = vunpack.c.l.b16 %v476
    %v1411 = vunpack.c.h.b16 %v476
    %v1412 = vunpack.c.l.b16 %v477
    %v1413 = vunpack.c.h.b16 %v477
    %v1414 = vunpack.c.l.b16 %v478
    %v1415 = vunpack.c.h.b16 %v478
    %v1416 = vunpack.c.l.b16 %v479
    %v1417 = vunpack.c.h.b16 %v479
    %v1418 = vunpack.c.l.b16 %v480
    %v1419 = vunpack.c.h.b16 %v480
    %v1420 = vunpack.c.l.b16 %v481
    %v1421 = vunpack.c.h.b16 %v481
    %v1422 = vunpack.c.l.b16 %v482
    %v1423 = vunpack.c.h.b16 %v482
    %v1424 = vunpack.c.l.b16 %v483
    %v1425 = vunpack.c.h.b16 %v483
    %v1426 = vunpack.c.l.b16 %v484
    %v1427 = vunpack.c.h.b16 %v484
    %v1428 = vunpack.c.l.b16 %v485
    %v1429 = vunpack.c.h.b16 %v485
    %v1430 = vunpack.c.l.b16 %v486
    %v1431 = vunpack.c.h.b16 %v486
    %v1432 = vunpack.c.l.b16 %v487
    %v1433 = vunpack.c.h.b16 %v487
    %v1434 = vunpack.c.l.b16 %v488
    %v1435 = vunpack.c.h.b16 %v488
    %v1436 = vunpack.c.l.b16 %v489
    %v1437 = vunpack.c.h.b16 %v489
    %v1438 = vunpack.c.l.b16 %v490
    %v1439 = vunpack.c.h.b16 %v490
    %v1440 = vunpack.c.l.b16 %v491
    %v1441 = vunpack.c.h.b16 %v491
    %v1442 = vunpack.c.l.b16 %v492
    %v1443 = vunpack.c.h.b16 %v492
    %v1444 = vunpack.c.l.b16 %v493
    %v1445 = vunpack.c.h.b16 %v493
    %v1446 = vunpack.c.l.b16 %v494
    %v1447 = vunpack.c.h.b16 %v494
    %v1448 = vunpack.c.l.b16 %v495
    %v1449 = vunpack.c.h.b16 %v495
    %v1450 = vunpack.c.l.b16 %v496
    %v1451 = vunpack.c.h.b16 %v496
    %v1452 = vunpack.c.l.b16 %v497
    %v1453 = vunpack.c.h.b16 %v497
    %v1454 = vunpack.c.l.b16 %v498
    %v1455 = vunpack.c.h.b16 %v498
    %v1456 = vunpack.c.l.b16 %v499
    %v1457 = vunpack.c.h.b16 %v499
    %v1458 = vunpack.c.l.b16 %v500
    %v1459 = vunpack.c.h.b16 %v500
    %v1460 = vunpack.c.l.b16 %v501
    %v1461 = vunpack.c.h.b16 %v501
    %v1462 = vunpack.c.l.b16 %v502
    %v1463 = vunpack.c.h.b16 %v502
    %v1464 = vunpack.c.l.b16 %v503
    %v1465 = vunpack.c.h.b16 %v503
    %v1466 = vunpack.c.l.b16 %v504
    %v1467 = vunpack.c.h.b16 %v504
    %v1468 = vunpack.c.l.b16 %v505
    %v1469 = vunpack.c.h.b16 %v505
    %v1470 = vunpack.c.l.b16 %v506
    %v1471 = vunpack.c.h.b16 %v506
    %v1472 = vunpack.c.l.b16 %v507
    %v1473 = vunpack.c.h.b16 %v507
    %v1474 = vunpack.c.l.b16 %v508
    %v1475 = vunpack.c.h.b16 %v508
    %v1476 = vunpack.c.l.b16 %v509
    %v1477 = vunpack.c.h.b16 %v509
    %v1478 = vunpack.c.l.b16 %v510
    %v1479 = vunpack.c.h.b16 %v510
    %v1480 = vunpack.c.l.b16 %v511
    %v1481 = vunpack.c.h.b16 %v511
    %v1482 = vunpack.c.l.b16 %v512
    %v1483 = vunpack.c.h.b16 %v512
    %v1484 = vunpack.c.l.b16 %v513
    %v1485 = vunpack.c.h.b16 %v513
    %v1486 = vunpack.c.l.b16 %v514
    %v1487 = vunpack.c.h.b16 %v514
    %v1488 = vunpack.c.l.b16 %v515
    %v1489 = vunpack.c.h.b16 %v515
    %v1490 = vunpack.c.l.b16 %v516
    %v1491 = vunpack.c.h.b16 %v516
    %v1492 = vunpack.c.l.b16 %v517
    %v1493 = vunpack.c.h.b16 %v517
    %v1494 = vunpack.c.l.b16 %v518
    %v1495 = vunpack.c.h.b16 %v518
    %v1496 = vunpack.c.l.b16 %v519
    %v1497 = vunpack.c.h.b16 %v519
    %v1498 = vunpack.c.l.b16 %v520
    %v1499 = vunpack.c.h.b16 %v520
    %v1500 = vunpack.c.l.b16 %v521
    %v1501 = vunpack.c.h.b16 %v521
    %v1502 = vunpack.c.l.b16 %v522
    %v1503 = vunpack.c.h.b16 %v522
    %v1504 = vunpack.c.l.b16 %v523
    %v1505 = vunpack.c.h.b16 %v523
    %v1506 = vunpack.c.l.b16 %v524
    %v1507 = vunpack.c.h.b16 %v524
    %v1508 = vunpack.c.l.b16 %v525
    %v1509 = vunpack.c.h.b16 %v525
    %v1510 = vunpack.c.l.b16 %v526
    %v1511 = vunpack.c.h.b16 %v526
    %v1512 = vunpack.c.l.b16 %v527
    %v1513 = vunpack.c.h.b16 %v527
    %v1514 = vunpack.c.l.b16 %v528
    %v1515 = vunpack.c.h.b16 %v528
    %v1516 = vunpack.c.l.b16 %v529
    %v1517 = vunpack.c.h.b16 %v529
    %v1518 = vunpack.c.l.b16 %v530
    %v1519 = vunpack.c.h.b16 %v530
    %v1520 = vunpack.c.l.b16 %v531
    %v1521 = vunpack.c.h.b16 %v531
    %v1522 = vunpack.c.l.b16 %v532
    %v1523 = vunpack.c.h.b16 %v532
    %v1524 = vunpack.c.l.b16 %v533
    %v1525 = vunpack.c.h.b16 %v533
    %v1526 = vunpack.c.l.b16 %v534
    %v1527 = vunpack.c.h.b16 %v534
    %v1528 = vunpack.c.l.b16 %v535
    %v1529 = vunpack.c.h.b16 %v535
    %v1530 = vunpack.c.l.b16 %v536
    %v1531 = vunpack.c.h.b16 %v536
    %v1532 = vunpack.c.l.b16 %v537
    %v1533 = vunpack.c.h.b16 %v537
    %v1534 = vunpack.c.l.b16 %v538
    %v1535 = vunpack.c.h.b16 %v538
    %v1536 = vunpack.c.l.b16 %v539
    %v1537 = vunpack.c.h.b16 %v539
    %v1538 = vunpack.c.l.b16 %v540
    %v1539 = vunpack.c.h.b16 %v540
    %v1540 = vunpack.c.l.b16 %v541
    %v1541 = vunpack.c.h.b16 %v541
    %v1542 = vunpack.c.l.b16 %v542
    %v1543 = vunpack.c.h.b16 %v542
    %v1544 = vunpack.c.l.b16 %v543
    %v1545 = vunpack.c.h.b16 %v543
    %v1546 = vunpack.c.l.b16 %v544
    %v1547 = vunpack.c.h.b16 %v544
    %v1548 = vunpack.c.l.b16 %v545
    %v1549 = vunpack.c.h.b16 %v545
    %v1550 = vunpack.c.l.b16 %v546
    %v1551 = vunpack.c.h.b16 %v546
    %v1552 = vunpack.c.l.b16 %v547
    %v1553 = vunpack.c.h.b16 %v547
    %v1554 = vunpack.c.l.b16 %v548
    %v1555 = vunpack.c.h.b16 %v548
    %v1556 = vunpack.c.l.b16 %v549
    %v1557 = vunpack.c.h.b16 %v549
    %v1558 = vunpack.c.l.b16 %v550
    %v1559 = vunpack.c.h.b16 %v550
    %v1560 = vunpack.c.l.b16 %v551
    %v1561 = vunpack.c.h.b16 %v551
    %v1562 = vunpack.c.l.b16 %v552
    %v1563 = vunpack.c.h.b16 %v552
    %v1564 = vunpack.c.l.b16 %v553
    %v1565 = vunpack.c.h.b16 %v553
    %v1566 = vunpack.c.l.b16 %v554
    %v1567 = vunpack.c.h.b16 %v554
    %v1568 = vunpack.c.l.b16 %v555
    %v1569 = vunpack.c.h.b16 %v555
    %v1570 = vunpack.c.l.b16 %v556
    %v1571 = vunpack.c.h.b16 %v556
    %v1572 = vunpack.c.l.b16 %v557
    %v1573 = vunpack.c.h.b16 %v557
    %v1574 = vunpack.c.l.b16 %v558
    %v1575 = vunpack.c.h.b16 %v558
    %v1576 = vunpack.c.l.b16 %v559
    %v1577 = vunpack.c.h.b16 %v559
    %v1578 = vunpack.c.l.b16 %v560
    %v1579 = vunpack.c.h.b16 %v560
    %v1580 = vunpack.c.l.b16 %v561
    %v1581 = vunpack.c.h.b16 %v561
    %v1582 = vunpack.c.l.b16 %v562
    %v1583 = vunpack.c.h.b16 %v562
    %v1584 = vunpack.c.l.b16 %v563
    %v1585 = vunpack.c.h.b16 %v563
    %v1586 = vunpack.c.l.b16 %v564
    %v1587 = vunpack.c.h.b16 %v564
    %v1588 = vunpack.c.l.b16 %v565
    %v1589 = vunpack.c.h.b16 %v565
    %v1590 = vunpack.c.l.b16 %v566
    %v1591 = vunpack.c.h.b16 %v566
    %v1592 = vunpack.c.l.b16 %v567
    %v1593 = vunpack.c.h.b16 %v567
    %v1594 = vunpack.c.l.b16 %v568
    %v1595 = vunpack.c.h.b16 %v568
    %v1596 = vunpack.c.l.b16 %v569
    %v1597 = vunpack.c.h.b16 %v569
    %v1598 = vunpack.c.l.b16 %v570
    %v1599 = vunpack.c.h.b16 %v570
    %v1600 = vunpack.c.l.b16 %v571
    %v1601 = vunpack.c.h.b16 %v571
    %v1602 = vunpack.c.l.b16 %v572
    %v1603 = vunpack.c.h.b16 %v572
    %v1604 = vunpack.c.l.b16 %v573
    %v1605 = vunpack.c.h.b16 %v573
    %v1606 = vunpack.c.l.b16 %v574
    %v1607 = vunpack.c.h.b16 %v574
    %v1608 = vunpack.c.l.b16 %v575
    %v1609 = vunpack.c.h.b16 %v575
    %v1610 = vunpack.c.l.b16 %v576
    %v1611 = vunpack.c.h.b16 %v576
    %v1612 = vunpack.c.l.b16 %v577
    %v1613 = vunpack.c.h.b16 %v577
    %v1614 = vunpack.c.l.b16 %v578
    %v1615 = vunpack.c.h.b16 %v578
    %v1616 = vunpack.c.l.b16 %v579
    %v1617 = vunpack.c.h.b16 %v579
    %v1618 = vunpack.c.l.b16 %v580
    %v1619 = vunpack.c.h.b16 %v580
    %v1620 = vunpack.c.l.b16 %v581
    %v1621 = vunpack.c.h.b16 %v581
    %v1622 = vunpack.c.l.b16 %v582
    %v1623 = vunpack.c.h.b16 %v582
    %v1624 = vunpack.c.l.b16 %v583
    %v1625 = vunpack.c.h.b16 %v583
    %v1626 = vunpack.c.l.b16 %v584
    %v1627 = vunpack.c.h.b16 %v584
    %v1628 = vunpack.c.l.b16 %v585
    %v1629 = vunpack.c.h.b16 %v585
    %v1630 = vunpack.c.l.b16 %v586
    %v1631 = vunpack.c.h.b16 %v586
    %v1632 = vunpack.c.l.b16 %v587
    %v1633 = vunpack.c.h.b16 %v587
    %v1634 = vunpack.c.l.b16 %v588
    %v1635 = vunpack.c.h.b16 %v588
    %v1636 = vunpack.c.l.b16 %v589
    %v1637 = vunpack.c.h.b16 %v589
    %v1638 = vunpack.c.l.b16 %v590
    %v1639 = vunpack.c.h.b16 %v590
    %v1640 = vunpack.c.l.b16 %v591
    %v1641 = vunpack.c.h.b16 %v591
    %v1642 = vunpack.c.l.b16 %v592
    %v1643 = vunpack.c.h.b16 %v592
    %v1644 = vunpack.c.l.b16 %v593
    %v1645 = vunpack.c.h.b16 %v593
    %v1646 = vunpack.c.l.b16 %v594
    %v1647 = vunpack.c.h.b16 %v594
    %v1648 = vunpack.c.l.b16 %v595
    %v1649 = vunpack.c.h.b16 %v595
    %v1650 = vunpack.c.l.b16 %v596
    %v1651 = vunpack.c.h.b16 %v596
    %v1652 = vunpack.c.l.b16 %v597
    %v1653 = vunpack.c.h.b16 %v597
    %v1654 = vunpack.c.l.b16 %v598
    %v1655 = vunpack.c.h.b16 %v598
    %v1656 = vunpack.c.l.b16 %v599
    %v1657 = vunpack.c.h.b16 %v599
    %v1658 = vunpack.c.l.b16 %v600
    %v1659 = vunpack.c.h.b16 %v600
    %v1660 = vunpack.c.l.b16 %v601
    %v1661 = vunpack.c.h.b16 %v601
    %v1662 = vunpack.c.l.b16 %v602
    %v1663 = vunpack.c.h.b16 %v602
    %v1664 = vunpack.c.l.b16 %v603
    %v1665 = vunpack.c.h.b16 %v603
    %v1666 = vunpack.c.l.b16 %v604
    %v1667 = vunpack.c.h.b16 %v604
    %v1668 = vunpack.c.l.b16 %v605
    %v1669 = vunpack.c.h.b16 %v605
    %v1670 = vunpack.c.l.b16 %v606
    %v1671 = vunpack.c.h.b16 %v606
    %v1672 = vunpack.c.l.b16 %v607
    %v1673 = vunpack.c.h.b16 %v607
    %v1674 = vunpack.c.l.b16 %v608
    %v1675 = vunpack.c.h.b16 %v608
    %v1676 = vunpack.c.l.b16 %v609
    %v1677 = vunpack.c.h.b16 %v609
    %v1678 = vunpack.c.l.b16 %v610
    %v1679 = vunpack.c.h.b16 %v610
    %v1680 = vunpack.c.l.b16 %v611
    %v1681 = vunpack.c.h.b16 %v611
    %v1682 = vunpack.c.l.b16 %v612
    %v1683 = vunpack.c.h.b16 %v612
    %v1684 = vunpack.c.l.b16 %v613
    %v1685 = vunpack.c.h.b16 %v613
    %v1686 = vunpack.c.l.b16 %v614
    %v1687 = vunpack.c.h.b16 %v614
    %v1688 = vunpack.c.l.b16 %v615
    %v1689 = vunpack.c.h.b16 %v615
    %v1690 = vunpack.c.l.b16 %v616
    %v1691 = vunpack.c.h.b16 %v616
    %v1692 = vunpack.c.l.b16 %v617
    %v1693 = vunpack.c.h.b16 %v617
    %v1694 = vunpack.c.l.b16 %v618
    %v1695 = vunpack.c.h.b16 %v618
    %v1696 = vunpack.c.l.b16 %v619
    %v1697 = vunpack.c.h.b16 %v619
    %v1698 = vunpack.c.l.b16 %v620
    %v1699 = vunpack.c.h.b16 %v620
    %v1700 = vunpack.c.l.b16 %v621
    %v1701 = vunpack.c.h.b16 %v621
    %v1702 = vunpack.c.l.b16 %v622
    %v1703 = vunpack.c.h.b16 %v622
    %v1704 = vunpack.c.l.b16 %v623
    %v1705 = vunpack.c.h.b16 %v623
    %v1706 = vunpack.c.l.b16 %v624
    %v1707 = vunpack.c.h.b16 %v624
    %v1708 = vunpack.c.l.b16 %v625
    %v1709 = vunpack.c.h.b16 %v625
    %v1710 = vunpack.c.l.b16 %v626
    %v1711 = vunpack.c.h.b16 %v626
    %v1712 = vunpack.c.l.b16 %v627
    %v1713 = vunpack.c.h.b16 %v627
    %v1714 = vunpack.c.l.b16 %v628
    %v1715 = vunpack.c.h.b16 %v628
    %v1716 = vunpack.c.l.b16 %v629
    %v1717 = vunpack.c.h.b16 %v629
    %v1718 = vunpack.c.l.b16 %v630
    %v1719 = vunpack.c.h.b16 %v630
    %v1720 = vunpack.c.l.b16 %v631
    %v1721 = vunpack.c.h.b16 %v631
    %v1722 = vunpack.c.l.b16 %v632
    %v1723 = vunpack.c.h.b16 %v632
    %v1724 = vunpack.c.l.b16 %v633
    %v1725 = vunpack.c.h.b16 %v633
    %v1726 = vunpack.c.l.b16 %v634
    %v1727 = vunpack.c.h.b16 %v634
    %v1728 = vunpack.c.l.b16 %v635
    %v1729 = vunpack.c.h.b16 %v635
    %v1730 = vunpack.c.l.b16 %v636
    %v1731 = vunpack.c.h.b16 %v636
    %v1732 = vunpack.c.l.b16 %v637
    %v1733 = vunpack.c.h.b16 %v637
    %v1734 = vunpack.c.l.b16 %v638
    %v1735 = vunpack.c.h.b16 %v638
    %v1736 = vunpack.c.l.b16 %v639
    %v1737 = vunpack.c.h.b16 %v639
    %v1738 = vunpack.c.l.b16 %v640
    %v1739 = vunpack.c.h.b16 %v640
    %v1740 = vunpack.c.l.b16 %v641
    %v1741 = vunpack.c.h.b16 %v641
    %v1742 = vunpack.c.l.b16 %v642
    %v1743 = vunpack.c.h.b16 %v642
    %v1744 = vunpack.c.l.b16 %v643
    %v1745 = vunpack.c.h.b16 %v643
    %v1746 = vunpack.c.l.b16 %v644
    %v1747 = vunpack.c.h.b16 %v644
    %v1748 = vunpack.c.l.b16 %v645
    %v1749 = vunpack.c.h.b16 %v645
    %v1750 = vunpack.c.l.b16 %v646
    %v1751 = vunpack.c.h.b16 %v646
    %v1752 = vunpack.c.l.b16 %v647
    %v1753 = vunpack.c.h.b16 %v647
    %v1754 = vunpack.c.l.b16 %v648
    %v1755 = vunpack.c.h.b16 %v648
    %v1756 = vunpack.c.l.b16 %v649
    %v1757 = vunpack.c.h.b16 %v649
    %v1758 = vunpack.c.l.b16 %v650
    %v1759 = vunpack.c.h.b16 %v650
    %v1760 = vunpack.c.l.b16 %v651
    %v1761 = vunpack.c.h.b16 %v651
    %v1762 = vunpack.c.l.b16 %v652
    %v1763 = vunpack.c.h.b16 %v652
    %v1764 = vunpack.c.l.b16 %v653
    %v1765 = vunpack.c.h.b16 %v653
    %v1766 = vunpack.c.l.b16 %v654
    %v1767 = vunpack.c.h.b16 %v654
    %v1768 = vunpack.c.l.b16 %v655
    %v1769 = vunpack.c.h.b16 %v655
    %v1770 = vunpack.c.l.b16 %v656
    %v1771 = vunpack.c.h.b16 %v656
    %v1772 = vunpack.c.l.b16 %v657
    %v1773 = vunpack.c.h.b16 %v657
    %v1774 = vunpack.c.l.b16 %v658
    %v1775 = vunpack.c.h.b16 %v658
    %v1776 = vunpack.c.l.b16 %v659
    %v1777 = vunpack.c.h.b16 %v659
    %v1778 = vunpack.c.l.b16 %v660
    %v1779 = vunpack.c.h.b16 %v660
    %v1780 = vunpack.c.l.b16 %v661
    %v1781 = vunpack.c.h.b16 %v661
    %v1782 = vunpack.c.l.b16 %v662
    %v1783 = vunpack.c.h.b16 %v662
    %v1784 = vunpack.c.l.b16 %v663
    %v1785 = vunpack.c.h.b16 %v663
    %v1786 = vunpack.c.l.b16 %v664
    %v1787 = vunpack.c.h.b16 %v664
    %v1788 = vunpack.c.l.b16 %v665
    %v1789 = vunpack.c.h.b16 %v665
    %v1790 = vunpack.c.l.b16 %v666
    %v1791 = vunpack.c.h.b16 %v666
    %v1792 = vunpack.c.l.b16 %v667
    %v1793 = vunpack.c.h.b16 %v667
    %v1794 = vunpack.c.l.b16 %v668
    %v1795 = vunpack.c.h.b16 %v668
    %v1796 = vunpack.c.l.b16 %v669
    %v1797 = vunpack.c.h.b16 %v669
    %v1798 = vunpack.c.l.b16 %v670
    %v1799 = vunpack.c.h.b16 %v670
    %v1800 = vunpack.c.l.b16 %v671
    %v1801 = vunpack.c.h.b16 %v671
    %v1802 = vunpack.c.l.b16 %v672
    %v1803 = vunpack.c.h.b16 %v672
    %v1804 = vunpack.c.l.b16 %v673
    %v1805 = vunpack.c.h.b16 %v673
    %v1806 = vunpack.c.l.b16 %v674
    %v1807 = vunpack.c.h.b16 %v674
    %v1808 = vunpack.c.l.b16 %v675
    %v1809 = vunpack.c.h.b16 %v675
    %v1810 = vunpack.c.l.b16 %v676
    %v1811 = vunpack.c.h.b16 %v676
    %v1812 = vunpack.c.l.b16 %v677
    %v1813 = vunpack.c.h.b16 %v677
    %v1814 = vunpack.c.l.b16 %v678
    %v1815 = vunpack.c.h.b16 %v678
    %v1816 = vunpack.c.l.b16 %v679
    %v1817 = vunpack.c.h.b16 %v679
    %v1818 = vunpack.c.l.b16 %v680
    %v1819 = vunpack.c.h.b16 %v680
    %v1820 = vunpack.c.l.b16 %v681
    %v1821 = vunpack.c.h.b16 %v681
    %v1822 = vunpack.c.l.b16 %v682
    %v1823 = vunpack.c.h.b16 %v682
    %v1824 = vunpack.c.l.b16 %v683
    %v1825 = vunpack.c.h.b16 %v683
    %v1826 = vunpack.c.l.b16 %v684
    %v1827 = vunpack.c.h.b16 %v684
    %v1828 = vunpack.c.l.b16 %v685
    %v1829 = vunpack.c.h.b16 %v685
    %v1830 = vunpack.c.l.b16 %v686
    %v1831 = vunpack.c.h.b16 %v686
    %v1832 = vunpack.c.l.b16 %v687
    %v1833 = vunpack.c.h.b16 %v687
    %v1834 = vunpack.c.l.b16 %v688
    %v1835 = vunpack.c.h.b16 %v688
    %v1836 = vunpack.c.l.b16 %v689
    %v1837 = vunpack.c.h.b16 %v689
    %v1838 = vunpack.c.l.b16 %v690
    %v1839 = vunpack.c.h.b16 %v690
    %v1840 = vunpack.c.l.b16 %v691
    %v1841 = vunpack.c.h.b16 %v691
    %v1842 = vunpack.c.l.b16 %v692
    %v1843 = vunpack.c.h.b16 %v692
    %v1844 = vunpack.c.l.b16 %v693
    %v1845 = vunpack.c.h.b16 %v693
    %v1846 = vunpack.c.l.b16 %v694
    %v1847 = vunpack.c.h.b16 %v694
    %v1848 = vunpack.c.l.b16 %v695
    %v1849 = vunpack.c.h.b16 %v695
    %v1850 = vunpack.c.l.b16 %v696
    %v1851 = vunpack.c.h.b16 %v696
    %v1852 = vunpack.c.l.b16 %v697
    %v1853 = vunpack.c.h.b16 %v697
    %v1854 = vunpack.c.l.b16 %v698
    %v1855 = vunpack.c.h.b16 %v698
    %v1856 = vunpack.c.l.b16 %v699
    %v1857 = vunpack.c.h.b16 %v699
    %v1858 = vunpack.c.l.b16 %v700
    %v1859 = vunpack.c.h.b16 %v700
    %v1860 = vunpack.c.l.b16 %v701
    %v1861 = vunpack.c.h.b16 %v701
    %v1862 = vunpack.c.l.b16 %v702
    %v1863 = vunpack.c.h.b16 %v702
    %v1864 = vunpack.c.l.b16 %v703
    %v1865 = vunpack.c.h.b16 %v703
    %v1866 = vunpack.c.l.b16 %v704
    %v1867 = vunpack.c.h.b16 %v704
    %v1868 = vunpack.c.l.b16 %v705
    %v1869 = vunpack.c.h.b16 %v705
    %v1870 = vunpack.c.l.b16 %v706
    %v1871 = vunpack.c.h.b16 %v706
    %v1872 = vunpack.c.l.b16 %v707
    %v1873 = vunpack.c.h.b16 %v707
    %v1874 = vunpack.c.l.b16 %v708
    %v1875 = vunpack.c.h.b16 %v708
    %v1876 = vunpack.c.l.b16 %v709
    %v1877 = vunpack.c.h.b16 %v709
    %v1878 = vunpack.c.l.b16 %v710
    %v1879 = vunpack.c.h.b16 %v710
    %v1880 = vunpack.c.l.b16 %v711
    %v1881 = vunpack.c.h.b16 %v711
    %v1882 = vunpack.c.l.b16 %v712
    %v1883 = vunpack.c.h.b16 %v712
    %v1884 = vunpack.c.l.b16 %v713
    %v1885 = vunpack.c.h.b16 %v713
    %v1886 = vunpack.c.l.b16 %v714
    %v1887 = vunpack.c.h.b16 %v714
    %v1888 = vunpack.c.l.b16 %v715
    %v1889 = vunpack.c.h.b16 %v715
    %v1890 = vunpack.c.l.b16 %v716
    %v1891 = vunpack.c.h.b16 %v716
    %v1892 = vunpack.c.l.b16 %v717
    %v1893 = vunpack.c.h.b16 %v717
    %v1894 = vunpack.c.l.b16 %v718
    %v1895 = vunpack.c.h.b16 %v718
    %v1896 = vunpack.c.l.b16 %v719
    %v1897 = vunpack.c.h.b16 %v719
    %v1898 = vunpack.c.l.b16 %v720
    %v1899 = vunpack.c.h.b16 %v720
    %v1900 = vunpack.c.l.b16 %v721
    %v1901 = vunpack.c.h.b16 %v721
    %v1902 = vunpack.c.l.b16 %v722
    %v1903 = vunpack.c.h.b16 %v722
    %v1904 = vunpack.c.l.b16 %v723
    %v1905 = vunpack.c.h.b16 %v723
    %v1906 = vunpack.c.l.b16 %v724
    %v1907 = vunpack.c.h.b16 %v724
    %v1908 = vunpack.c.l.b16 %v725
    %v1909 = vunpack.c.h.b16 %v725
    %v1910 = vunpack.c.l.b16 %v726
    %v1911 = vunpack.c.h.b16 %v726
    %v1912 = vunpack.c.l.b16 %v727
    %v1913 = vunpack.c.h.b16 %v727
    %v1914 = vunpack.c.l.b16 %v728
    %v1915 = vunpack.c.h.b16 %v728
    %v1916 = vunpack.c.l.b16 %v729
    %v1917 = vunpack.c.h.b16 %v729
    %v1918 = vunpack.c.l.b16 %v730
    %v1919 = vunpack.c.h.b16 %v730
    %v1920 = vunpack.c.l.b16 %v731
    %v1921 = vunpack.c.h.b16 %v731
    %v1922 = vunpack.c.l.b16 %v732
    %v1923 = vunpack.c.h.b16 %v732
    %v1924 = vunpack.c.l.b16 %v733
    %v1925 = vunpack.c.h.b16 %v733
    %v1926 = vunpack.c.l.b16 %v734
    %v1927 = vunpack.c.h.b16 %v734
    %v1928 = vunpack.c.l.b16 %v735
    %v1929 = vunpack.c.h.b16 %v735
    %v1930 = vunpack.c.l.b16 %v736
    %v1931 = vunpack.c.h.b16 %v736
    %v1932 = vunpack.c.l.b16 %v737
    %v1933 = vunpack.c.h.b16 %v737
    %v1934 = vunpack.c.l.b16 %v738
    %v1935 = vunpack.c.h.b16 %v738
    %v1936 = vunpack.c.l.b16 %v739
    %v1937 = vunpack.c.h.b16 %v739
    %v1938 = vunpack.c.l.b16 %v740
    %v1939 = vunpack.c.h.b16 %v740
    %v1940 = vunpack.c.l.b16 %v741
    %v1941 = vunpack.c.h.b16 %v741
    %v1942 = vpack.c.b16 %v1152, %v1142
    %v1943 = vpack.c.b16 %v1153, %v1143
    %v1944 = vpack.c.b16 %v1154, %v1144
    %v1945 = vpack.c.b16 %v1155, %v1145
    %v1946 = vpack.c.b16 %v1156, %v1146
    %v1947 = vpack.c.b16 %v1157, %v1147
    %v1948 = vpack.c.b16 %v1158, %v1148
    %v1949 = vpack.c.b16 %v1159, %v1149
    %v1950 = vpack.c.b16 %v1160, %v1150
    %v1951 = vpack.c.b16 %v1161, %v1151
    %v1952 = vpack.c.b16 %v1172, %v1162
    %v1953 = vpack.c.b16 %v1173, %v1163
    %v1954 = vpack.c.b16 %v1174, %v1164
    %v1955 = vpack.c.b16 %v1175, %v1165
    %v1956 = vpack.c.b16 %v1176, %v1166
    %v1957 = vpack.c.b16 %v1177, %v1167
    %v1958 = vpack.c.b16 %v1178, %v1168
    %v1959 = vpack.c.b16 %v1179, %v1169
    %v1960 = vpack.c.b16 %v1180, %v1170
    %v1961 = vpack.c.b16 %v1181, %v1171
    %v1962 = vpack.c.b16 %v1192, %v1182
    %v1963 = vpack.c.b16 %v1193, %v1183
    %v1964 = vpack.c.b16 %v1194, %v1184
    %v1965 = vpack.c.b16 %v1195, %v1185
    %v1966 = vpack.c.b16 %v1196, %v1186
    %v1967 = vpack.c.b16 %v1197, %v1187
    %v1968 = vpack.c.b16 %v1198, %v1188
    %v1969 = vpack.c.b16 %v1199, %v1189
    %v1970 = vpack.c.b16 %v1200, %v1190
    %v1971 = vpack.c.b16 %v1201, %v1191
    %v1972 = vpack.c.b16 %v1212, %v1202
    %v1973 = vpack.c.b16 %v1213, %v1203
    %v1974 = vpack.c.b16 %v1214, %v1204
    %v1975 = vpack.c.b16 %v1215, %v1205
    %v1976 = vpack.c.b16 %v1216, %v1206
    %v1977 = vpack.c.b16 %v1217, %v1207
    %v1978 = vpack.c.b16 %v1218, %v1208
    %v1979 = vpack.c.b16 %v1219, %v1209
    %v1980 = vpack.c.b16 %v1220, %v1210
    %v1981 = vpack.c.b16 %v1221, %v1211
    %v1982 = vpack.c.b16 %v1232, %v1222
    %v1983 = vpack.c.b16 %v1233, %v1223
    %v1984 = vpack.c.b16 %v1234, %v1224
    %v1985 = vpack.c.b16 %v1235, %v1225
    %v1986 = vpack.c.b16 %v1236, %v1226
    %v1987 = vpack.c.b16 %v1237, %v1227
    %v1988 = vpack.c.b16 %v1238, %v1228
    %v1989 = vpack.c.b16 %v1239, %v1229
    %v1990 = vpack.c.b16 %v1240, %v1230
    %v1991 = vpack.c.b16 %v1241, %v1231
    %v1992 = vpack.c.b16 %v1252, %v1242
    %v1993 = vpack.c.b16 %v1253, %v1243
    %v1994 = vpack.c.b16 %v1254, %v1244
    %v1995 = vpack.c.b16 %v1255, %v1245
    %v1996 = vpack.c.b16 %v1256, %v1246
    %v1997 = vpack.c.b16 %v1257, %v1247
    %v1998 = vpack.c.b16 %v1258, %v1248
    %v1999 = vpack.c.b16 %v1259, %v1249
    %v2000 = vpack.c.b16 %v1260, %v1250
    %v2001 = vpack.c.b16 %v1261, %v1251
    %v2002 = vpack.c.b16 %v1272, %v1262
    %v2003 = vpack.c.b16 %v1273, %v1263
    %v2004 = vpack.c.b16 %v1274, %v1264
    %v2005 = vpack.c.b16 %v1275, %v1265
    %v2006 = vpack.c.b16 %v1276, %v1266
    %v2007 = vpack.c.b16 %v1277, %v1267
    %v2008 = vpack.c.b16 %v1278, %v1268
    %v2009 = vpack.c.b16 %v1279, %v1269
    %v2010 = vpack.c.b16 %v1280, %v1270
    %v2011 = vpack.c.b16 %v1281, %v1271
    %v2012 = vpack.c.b16 %v1292, %v1282
    %v2013 = vpack.c.b16 %v1293, %v1283
    %v2014 = vpack.c.b16 %v1294, %v1284
    %v2015 = vpack.c.b16 %v1295, %v1285
    %v2016 = vpack.c.b16 %v1296, %v1286
    %v2017 = vpack.c.b16 %v1297, %v1287
    %v2018 = vpack.c.b16 %v1298, %v1288
    %v2019 = vpack.c.b16 %v1299, %v1289
    %v2020 = vpack.c.b16 %v1300, %v1290
    %v2021 = vpack.c.b16 %v1301, %v1291
    %v2022 = vpack.c.b16 %v1312, %v1302
    %v2023 = vpack.c.b16 %v1313, %v1303
    %v2024 = vpack.c.b16 %v1314, %v1304
    %v2025 = vpack.c.b16 %v1315, %v1305
    %v2026 = vpack.c.b16 %v1316, %v1306
    %v2027 = vpack.c.b16 %v1317, %v1307
    %v2028 = vpack.c.b16 %v1318, %v1308
    %v2029 = vpack.c.b16 %v1319, %v1309
    %v2030 = vpack.c.b16 %v1320, %v1310
    %v2031 = vpack.c.b16 %v1321, %v1311
    %v2032 = vpack.c.b16 %v1332, %v1322
    %v2033 = vpack.c.b16 %v1333, %v1323
    %v2034 = vpack.c.b16 %v1334, %v1324
    %v2035 = vpack.c.b16 %v1335, %v1325
    %v2036 = vpack.c.b16 %v1336, %v1326
    %v2037 = vpack.c.b16 %v1337, %v1327
    %v2038 = vpack.c.b16 %v1338, %v1328
    %v2039 = vpack.c.b16 %v1339, %v1329
    %v2040 = vpack.c.b16 %v1340, %v1330
    %v2041 = vpack.c.b16 %v1341, %v1331
    %v2042 = vpack.c.b16 %v1352, %v1342
    %v2043 = vpack.c.b16 %v1353, %v1343
    %v2044 = vpack.c.b16 %v1354, %v1344
    %v2045 = vpack.c.b16 %v1355, %v1345
    %v2046 = vpack.c.b16 %v1356, %v1346
    %v2047 = vpack.c.b16 %v1357, %v1347
    %v2048 = vpack.c.b16 %v1358, %v1348
    %v2049 = vpack.c.b16 %v1359, %v1349
    %v2050 = vpack.c.b16 %v1360, %v1350
    %v2051 = vpack.c.b16 %v1361, %v1351
    %v2052 = vpack.c.b16 %v1372, %v1362
    %v2053 = vpack.c.b16 %v1373, %v1363
    %v2054 = vpack.c.b16 %v1374, %v1364
    %v2055 = vpack.c.b16 %v1375, %v1365
    %v2056 = vpack.c.b16 %v1376, %v1366
    %v2057 = vpack.c.b16 %v1377, %v1367
    %v2058 = vpack.c.b16 %v1378, %v1368
    %v2059 = vpack.c.b16 %v1379, %v1369
    %v2060 = vpack.c.b16 %v1380, %v1370
    %v2061 = vpack.c.b16 %v1381, %v1371
    %v2062 = vpack.c.b16 %v1392, %v1382
    %v2063 = vpack.c.b16 %v1393, %v1383
    %v2064 = vpack.c.b16 %v1394, %v1384
    %v2065 = vpack.c.b16 %v1395, %v1385
    %v2066 = vpack.c.b16 %v1396, %v1386
    %v2067 = vpack.c.b16 %v1397, %v1387
    %v2068 = vpack.c.b16 %v1398, %v1388
    %v2069 = vpack.c.b16 %v1399, %v1389
    %v2070 = vpack.c.b16 %v1400, %v1390
    %v2071 = vpack.c.b16 %v1401, %v1391
    %v2072 = vpack.c.b16 %v1412, %v1402
    %v2073 = vpack.c.b16 %v1413, %v1403
    %v2074 = vpack.c.b16 %v1414, %v1404
    %v2075 = vpack.c.b16 %v1415, %v1405
    %v2076 = vpack.c.b16 %v1416, %v1406
    %v2077 = vpack.c.b16 %v1417, %v1407
    %v2078 = vpack.c.b16 %v1418, %v1408
    %v2079 = vpack.c.b16 %v1419, %v1409
    %v2080 = vpack.c.b16 %v1420, %v1410
    %v2081 = vpack.c.b16 %v1421, %v1411
    %v2082 = vpack.c.b16 %v1432, %v1422
    %v2083 = vpack.c.b16 %v1433, %v1423
    %v2084 = vpack.c.b16 %v1434, %v1424
    %v2085 = vpack.c.b16 %v1435, %v1425
    %v2086 = vpack.c.b16 %v1436, %v1426
    %v2087 = vpack.c.b16 %v1437, %v1427
    %v2088 = vpack.c.b16 %v1438, %v1428
    %v2089 = vpack.c.b16 %v1439, %v1429
    %v2090 = vpack.c.b16 %v1440, %v1430
    %v2091 = vpack.c.b16 %v1441, %v1431
    %v2092 = vpack.c.b16 %v1452, %v1442
    %v2093 = vpack.c.b16 %v1453, %v1443
    %v2094 = vpack.c.b16 %v1454, %v1444
    %v2095 = vpack.c.b16 %v1455, %v1445
    %v2096 = vpack.c.b16 %v1456, %v1446
    %v2097 = vpack.c.b16 %v1457, %v1447
    %v2098 = vpack.c.b16 %v1458, %v1448
    %v2099 = vpack.c.b16 %v1459, %v1449
    %v2100 = vpack.c.b16 %v1460, %v1450
    %v2101 = vpack.c.b16 %v1461, %v1451
    %v2102 = vpack.c.b16 %v1472, %v1462
    %v2103 = vpack.c.b16 %v1473, %v1463
    %v2104 = vpack.c.b16 %v1474, %v1464
    %v2105 = vpack.c.b16 %v1475, %v1465
    %v2106 = vpack.c.b16 %v1476, %v1466
    %v2107 = vpack.c.b16 %v1477, %v1467
    %v2108 = vpack.c.b16 %v1478, %v1468
    %v2109 = vpack.c.b16 %v1479, %v1469
    %v2110 = vpack.c.b16 %v1480, %v1470
    %v2111 = vpack.c.b16 %v1481, %v1471
    %v2112 = vpack.c.b16 %v1492, %v1482
    %v2113 = vpack.c.b16 %v1493, %v1483
    %v2114 = vpack.c.b16 %v1494, %v1484
    %v2115 = vpack.c.b16 %v1495, %v1485
    %v2116 = vpack.c.b16 %v1496, %v1486
    %v2117 = vpack.c.b16 %v1497, %v1487
    %v2118 = vpack.c.b16 %v1498, %v1488
    %v2119 = vpack.c.b16 %v1499, %v1489
    %v2120 = vpack.c.b16 %v1500, %v1490
    %v2121 = vpack.c.b16 %v1501, %v1491
    %v2122 = vpack.c.b16 %v1512, %v1502
    %v2123 = vpack.c.b16 %v1513, %v1503
    %v2124 = vpack.c.b16 %v1514, %v1504
    %v2125 = vpack.c.b16 %v1515, %v1505
    %v2126 = vpack.c.b16 %v1516, %v1506
    %v2127 = vpack.c.b16 %v1517, %v1507
    %v2128 = vpack.c.b16 %v1518, %v1508
    %v2129 = vpack.c.b16 %v1519, %v1509
    %v2130 = vpack.c.b16 %v1520, %v1510
    %v2131 = vpack.c.b16 %v1521, %v1511
    %v2132 = vpack.c.b16 %v1532, %v1522
    %v2133 = vpack.c.b16 %v1533, %v1523
    %v2134 = vpack.c.b16 %v1534, %v1524
    %v2135 = vpack.c.b16 %v1535, %v1525
    %v2136 = vpack.c.b16 %v1536, %v1526
    %v2137 = vpack.c.b16 %v1537, %v1527
    %v2138 = vpack.c.b16 %v1538, %v1528
    %v2139 = vpack.c.b16 %v1539, %v1529
    %v2140 = vpack.c.b16 %v1540, %v1530
    %v2141 = vpack.c.b16 %v1541, %v1531
    %v2142 = vpack.c.b16 %v1552, %v1542
    %v2143 = vpack.c.b16 %v1553, %v1543
    %v2144 = vpack.c.b16 %v1554, %v1544
    %v2145 = vpack.c.b16 %v1555, %v1545
    %v2146 = vpack.c.b16 %v1556, %v1546
    %v2147 = vpack.c.b16 %v1557, %v1547
    %v2148 = vpack.c.b16 %v1558, %v1548
    %v2149 = vpack.c.b16 %v1559, %v1549
    %v2150 = vpack.c.b16 %v1560, %v1550
    %v2151 = vpack.c.b16 %v1561, %v1551
    %v2152 = vpack.c.b16 %v1572, %v1562
    %v2153 = vpack.c.b16 %v1573, %v1563
    %v2154 = vpack.c.b16 %v1574, %v1564
    %v2155 = vpack.c.b16 %v1575, %v1565
    %v2156 = vpack.c.b16 %v1576, %v1566
    %v2157 = vpack.c.b16 %v1577, %v1567
    %v2158 = vpack.c.b16 %v1578, %v1568
    %v2159 = vpack.c.b16 %v1579, %v1569
    %v2160 = vpack.c.b16 %v1580, %v1570
    %v2161 = vpack.c.b16 %v1581, %v1571
    %v2162 = vpack.c.b16 %v1592, %v1582
    %v2163 = vpack.c.b16 %v1593, %v1583
    %v2164 = vpack.c.b16 %v1594, %v1584
    %v2165 = vpack.c.b16 %v1595, %v1585
    %v2166 = vpack.c.b16 %v1596, %v1586
    %v2167 = vpack.c.b16 %v1597, %v1587
    %v2168 = vpack.c.b16 %v1598, %v1588
    %v2169 = vpack.c.b16 %v1599, %v1589
    %v2170 = vpack.c.b16 %v1600, %v1590
    %v2171 = vpack.c.b16 %v1601, %v1591
    %v2172 = vpack.c.b16 %v1612, %v1602
    %v2173 = vpack.c.b16 %v1613, %v1603
    %v2174 = vpack.c.b16 %v1614, %v1604
    %v2175 = vpack.c.b16 %v1615, %v1605
    %v2176 = vpack.c.b16 %v1616, %v1606
    %v2177 = vpack.c.b16 %v1617, %v1607
    %v2178 = vpack.c.b16 %v1618, %v1608
    %v2179 = vpack.c.b16 %v1619, %v1609
    %v2180 = vpack.c.b16 %v1620, %v1610
    %v2181 = vpack.c.b16 %v1621, %v1611
    %v2182 = vpack.c.b16 %v1632, %v1622
    %v2183 = vpack.c.b16 %v1633, %v1623
    %v2184 = vpack.c.b16 %v1634, %v1624
    %v2185 = vpack.c.b16 %v1635, %v1625
    %v2186 = vpack.c.b16 %v1636, %v1626
    %v2187 = vpack.c.b16 %v1637, %v1627
    %v2188 = vpack.c.b16 %v1638, %v1628
    %v2189 = vpack.c.b16 %v1639, %v1629
    %v2190 = vpack.c.b16 %v1640, %v1630
    %v2191 = vpack.c.b16 %v1641, %v1631
    %v2192 = vpack.c.b16 %v1652, %v1642
    %v2193 = vpack.c.b16 %v1653, %v1643
    %v2194 = vpack.c.b16 %v1654, %v1644
    %v2195 = vpack.c.b16 %v1655, %v1645
    %v2196 = vpack.c.b16 %v1656, %v1646
    %v2197 = vpack.c.b16 %v1657, %v1647
    %v2198 = vpack.c.b16 %v1658, %v1648
    %v2199 = vpack.c.b16 %v1659, %v1649
    %v2200 = vpack.c.b16 %v1660, %v1650
    %v2201 = vpack.c.b16 %v1661, %v1651
    %v2202 = vpack.c.b16 %v1672, %v1662
    %v2203 = vpack.c.b16 %v1673, %v1663
    %v2204 = vpack.c.b16 %v1674, %v1664
    %v2205 = vpack.c.b16 %v1675, %v1665
    %v2206 = vpack.c.b16 %v1676, %v1666
    %v2207 = vpack.c.b16 %v1677, %v1667
    %v2208 = vpack.c.b16 %v1678, %v1668
    %v2209 = vpack.c.b16 %v1679, %v1669
    %v2210 = vpack.c.b16 %v1680, %v1670
    %v2211 = vpack.c.b16 %v1681, %v1671
    %v2212 = vpack.c.b16 %v1692, %v1682
    %v2213 = vpack.c.b16 %v1693, %v1683
    %v2214 = vpack.c.b16 %v1694, %v1684
    %v2215 = vpack.c.b16 %v1695, %v1685
    %v2216 = vpack.c.b16 %v1696, %v1686
    %v2217 = vpack.c.b16 %v1697, %v1687
    %v2218 = vpack.c.b16 %v1698, %v1688
    %v2219 = vpack.c.b16 %v1699, %v1689
    %v2220 = vpack.c.b16 %v1700, %v1690
    %v2221 = vpack.c.b16 %v1701, %v1691
    %v2222 = vpack.c.b16 %v1712, %v1702
    %v2223 = vpack.c.b16 %v1713, %v1703
    %v2224 = vpack.c.b16 %v1714, %v1704
    %v2225 = vpack.c.b16 %v1715, %v1705
    %v2226 = vpack.c.b16 %v1716, %v1706
    %v2227 = vpack.c.b16 %v1717, %v1707
    %v2228 = vpack.c.b16 %v1718, %v1708
    %v2229 = vpack.c.b16 %v1719, %v1709
    %v2230 = vpack.c.b16 %v1720, %v1710
    %v2231 = vpack.c.b16 %v1721, %v1711
    %v2232 = vpack.c.b16 %v1732, %v1722
    %v2233 = vpack.c.b16 %v1733, %v1723
    %v2234 = vpack.c.b16 %v1734, %v1724
    %v2235 = vpack.c.b16 %v1735, %v1725
    %v2236 = vpack.c.b16 %v1736, %v1726
    %v2237 = vpack.c.b16 %v1737, %v1727
    %v2238 = vpack.c.b16 %v1738, %v1728
    %v2239 = vpack.c.b16 %v1739, %v1729
    %v2240 = vpack.c.b16 %v1740, %v1730
    %v2241 = vpack.c.b16 %v1741, %v1731
    %v2242 = vpack.c.b16 %v1752, %v1742
    %v2243 = vpack.c.b16 %v1753, %v1743
    %v2244 = vpack.c.b16 %v1754, %v1744
    %v2245 = vpack.c.b16 %v1755, %v1745
    %v2246 = vpack.c.b16 %v1756, %v1746
    %v2247 = vpack.c.b16 %v1757, %v1747
    %v2248 = vpack.c.b16 %v1758, %v1748
    %v2249 = vpack.c.b16 %v1759, %v1749
    %v2250 = vpack.c.b16 %v1760, %v1750
    %v2251 = vpack.c.b16 %v1761, %v1751
    %v2252 = vpack.c.b16 %v1772, %v1762
    %v2253 = vpack.c.b16 %v1773, %v1763
    %v2254 = vpack.c.b16 %v1774, %v1764
    %v2255 = vpack.c.b16 %v1775, %v1765
    %v2256 = vpack.c.b16 %v1776, %v1766
    %v2257 = vpack.c.b16 %v1777, %v1767
    %v2258 = vpack.c.b16 %v1778, %v1768
    %v2259 = vpack.c.b16 %v1779, %v1769
    %v2260 = vpack.c.b16 %v1780, %v1770
    %v2261 = vpack.c.b16 %v1781, %v1771
    %v2262 = vpack.c.b16 %v1792, %v1782
    %v2263 = vpack.c.b16 %v1793, %v1783
    %v2264 = vpack.c.b16 %v1794, %v1784
    %v2265 = vpack.c.b16 %v1795, %v1785
    %v2266 = vpack.c.b16 %v1796, %v1786
    %v2267 = vpack.c.b16 %v1797, %v1787
    %v2268 = vpack.c.b16 %v1798, %v1788
    %v2269 = vpack.c.b16 %v1799, %v1789
    %v2270 = vpack.c.b16 %v1800, %v1790
    %v2271 = vpack.c.b16 %v1801, %v1791
    %v2272 = vpack.c.b16 %v1812, %v1802
    %v2273 = vpack.c.b16 %v1813, %v1803
    %v2274 = vpack.c.b16 %v1814, %v1804
    %v2275 = vpack.c.b16 %v1815, %v1805
    %v2276 = vpack.c.b16 %v1816, %v1806
    %v2277 = vpack.c.b16 %v1817, %v1807
    %v2278 = vpack.c.b16 %v1818, %v1808
    %v2279 = vpack.c.b16 %v1819, %v1809
    %v2280 = vpack.c.b16 %v1820, %v1810
    %v2281 = vpack.c.b16 %v1821, %v1811
    %v2282 = vpack.c.b16 %v1832, %v1822
    %v2283 = vpack.c.b16 %v1833, %v1823
    %v2284 = vpack.c.b16 %v1834, %v1824
    %v2285 = vpack.c.b16 %v1835, %v1825
    %v2286 = vpack.c.b16 %v1836, %v1826
    %v2287 = vpack.c.b16 %v1837, %v1827
    %v2288 = vpack.c.b16 %v1838, %v1828
    %v2289 = vpack.c.b16 %v1839, %v1829
    %v2290 = vpack.c.b16 %v1840, %v1830
    %v2291 = vpack.c.b16 %v1841, %v1831
    %v2292 = vpack.c.b16 %v1852, %v1842
    %v2293 = vpack.c.b16 %v1853, %v1843
    %v2294 = vpack.c.b16 %v1854, %v1844
    %v2295 = vpack.c.b16 %v1855, %v1845
    %v2296 = vpack.c.b16 %v1856, %v1846
    %v2297 = vpack.c.b16 %v1857, %v1847
    %v2298 = vpack.c.b16 %v1858, %v1848
    %v2299 = vpack.c.b16 %v1859, %v1849
    %v2300 = vpack.c.b16 %v1860, %v1850
    %v2301 = vpack.c.b16 %v1861, %v1851
    %v2302 = vpack.c.b16 %v1872, %v1862
    %v2303 = vpack.c.b16 %v1873, %v1863
    %v2304 = vpack.c.b16 %v1874, %v1864
    %v2305 = vpack.c.b16 %v1875, %v1865
    %v2306 = vpack.c.b16 %v1876, %v1866
    %v2307 = vpack.c.b16 %v1877, %v1867
    %v2308 = vpack.c.b16 %v1878, %v1868
    %v2309 = vpack.c.b16 %v1879, %v1869
    %v2310 = vpack.c.b16 %v1880, %v1870
    %v2311 = vpack.c.b16 %v1881, %v1871
    %v2312 = vpack.c.b16 %v1892, %v1882
    %v2313 = vpack.c.b16 %v1893, %v1883
    %v2314 = vpack.c.b16 %v1894, %v1884
    %v2315 = vpack.c.b16 %v1895, %v1885
    %v2316 = vpack.c.b16 %v1896, %v1886
    %v2317 = vpack.c.b16 %v1897, %v1887
    %v2318 = vpack.c.b16 %v1898, %v1888
    %v2319 = vpack.c.b16 %v1899, %v1889
    %v2320 = vpack.c.b16 %v1900, %v1890
    %v2321 = vpack.c.b16 %v1901, %v1891
    %v2322 = vpack.c.b16 %v1912, %v1902
    %v2323 = vpack.c.b16 %v1913, %v1903
    %v2324 = vpack.c.b16 %v1914, %v1904
    %v2325 = vpack.c.b16 %v1915, %v1905
    %v2326 = vpack.c.b16 %v1916, %v1906
    %v2327 = vpack.c.b16 %v1917, %v1907
    %v2328 = vpack.c.b16 %v1918, %v1908
    %v2329 = vpack.c.b16 %v1919, %v1909
    %v2330 = vpack.c.b16 %v1920, %v1910
    %v2331 = vpack.c.b16 %v1921, %v1911
    %v2332 = vpack.c.b16 %v1932, %v1922
    %v2333 = vpack.c.b16 %v1933, %v1923
    %v2334 = vpack.c.b16 %v1934, %v1924
    %v2335 = vpack.c.b16 %v1935, %v1925
    %v2336 = vpack.c.b16 %v1936, %v1926
    %v2337 = vpack.c.b16 %v1937, %v1927
    %v2338 = vpack.c.b16 %v1938, %v1928
    %v2339 = vpack.c.b16 %v1939, %v1929
    %v2340 = vpack.c.b16 %v1940, %v1930
    %v2341 = vpack.c.b16 %v1941, %v1931
    %2742 = vmatprep.subr.bf16.mxu0 %v1943
    %2743 = vmatpush1.bf16.msra.mxu0 %v1942
    %2744 = vmatprep.subr.bf16.mxu0 %v1953
    %2745 = vmatpush1.bf16.msra.mxu0 %v1952
    %2746 = vmatprep.subr.bf16.mxu0 %v1963
    %2747 = vmatpush1.bf16.msra.mxu0 %v1962
    %2748 = vmatprep.subr.bf16.mxu0 %v1973
    %2749 = vmatpush1.bf16.msra.mxu0 %v1972
    %2750 = vmatprep.subr.bf16.mxu0 %v1983
    %2751 = vmatpush1.bf16.msra.mxu0 %v1982
    %2752 = vmatprep.subr.bf16.mxu0 %v1993
    %2753 = vmatpush1.bf16.msra.mxu0 %v1992
    %2754 = vmatprep.subr.bf16.mxu0 %v2003
    %2755 = vmatpush1.bf16.msra.mxu0 %v2002
    %2756 = vmatprep.subr.bf16.mxu0 %v2013
    %2757 = vmatpush1.bf16.msra.mxu0 %v2012
    %2758 = vmatprep.subr.bf16.mxu0 %v2023
    %2759 = vmatpush1.bf16.msra.mxu0 %v2022
    %2760 = vmatprep.subr.bf16.mxu0 %v2033
    %2761 = vmatpush1.bf16.msra.mxu0 %v2032
    %2762 = vmatprep.subr.bf16.mxu0 %v2043
    %2763 = vmatpush1.bf16.msra.mxu0 %v2042
    %2764 = vmatprep.subr.bf16.mxu0 %v2053
    %2765 = vmatpush1.bf16.msra.mxu0 %v2052
    %2766 = vmatprep.subr.bf16.mxu0 %v2063
    %2767 = vmatpush1.bf16.msra.mxu0 %v2062
    %2768 = vmatprep.subr.bf16.mxu0 %v2073
    %2769 = vmatpush1.bf16.msra.mxu0 %v2072
    %2770 = vmatprep.subr.bf16.mxu0 %v2083
    %2771 = vmatpush1.bf16.msra.mxu0 %v2082
    %2772 = vmatprep.subr.bf16.mxu0 %v2093
    %2773 = vmatpush1.bf16.msra.mxu0 %v2092
    %2774 = vmatprep.mubr.bf16.mxu0 %v338
    %2775 = vmatmul.mubr.bf16.gmra.mrb[0].mxu0 %v337
    %v2776 = vpop.f32.mrb[0].mxu0
    %v2777 = vadd.f32 0.0, %v2776
    %v2778 = vpop.f32.mrb[0].mxu0
    %v2779 = vadd.f32 0.0, %v2778
    %v2780 = vpop.f32.mrb[0].mxu0
    %v2781 = vadd.f32 0.0, %v2780
    %v2782 = vpop.f32.mrb[0].mxu0
    %v2783 = vadd.f32 0.0, %v2782
    %2784 = vdwg.mxu0
    %2785 = vmatprep.subr.bf16.mxu0 %v2103
    %2786 = vmatpush1.bf16.msra.mxu0 %v2102
    %2787 = vmatprep.subr.bf16.mxu0 %v2113
    %2788 = vmatpush1.bf16.msra.mxu0 %v2112
    %2789 = vmatprep.subr.bf16.mxu0 %v2123
    %2790 = vmatpush1.bf16.msra.mxu0 %v2122
    %2791 = vmatprep.subr.bf16.mxu0 %v2133
    %2792 = vmatpush1.bf16.msra.mxu0 %v2132
    %2793 = vmatprep.subr.bf16.mxu0 %v2143
    %2794 = vmatpush1.bf16.msra.mxu0 %v2142
    %2795 = vmatprep.subr.bf16.mxu0 %v2153
    %2796 = vmatpush1.bf16.msra.mxu0 %v2152
    %2797 = vmatprep.subr.bf16.mxu0 %v2163
    %2798 = vmatpush1.bf16.msra.mxu0 %v2162
    %2799 = vmatprep.subr.bf16.mxu0 %v2173
    %2800 = vmatpush1.bf16.msra.mxu0 %v2172
    %2801 = vmatprep.subr.bf16.mxu0 %v2183
    %2802 = vmatpush1.bf16.msra.mxu0 %v2182
    %2803 = vmatprep.subr.bf16.mxu0 %v2193
    %2804 = vmatpush1.bf16.msra.mxu0 %v2192
    %2805 = vmatprep.subr.bf16.mxu0 %v2203
    %2806 = vmatpush1.bf16.msra.mxu0 %v2202
    %2807 = vmatprep.subr.bf16.mxu0 %v2213
    %2808 = vmatpush1.bf16.msra.mxu0 %v2212
    %2809 = vmatprep.subr.bf16.mxu0 %v2223
    %2810 = vmatpush1.bf16.msra.mxu0 %v2222
    %2811 = vmatprep.subr.bf16.mxu0 %v2233
    %2812 = vmatpush1.bf16.msra.mxu0 %v2232
    %2813 = vmatprep.subr.bf16.mxu0 %v2243
    %2814 = vmatpush1.bf16.msra.mxu0 %v2242
    %2815 = vmatprep.subr.bf16.mxu0 %v2253
    %2816 = vmatpush1.bf16.msra.mxu0 %v2252
    %2817 = vmatprep.mubr.bf16.mxu0 %v340
    %2818 = vmatmul.mubr.bf16.gmra.mrb[0].mxu0 %v339
    %v2819 = vpop.f32.mrb[0].mxu0
    %v2820 = vadd.f32 %v2777, %v2819
    %v2821 = vpop.f32.mrb[0].mxu0
    %v2822 = vadd.f32 %v2779, %v2821
    %v2823 = vpop.f32.mrb[0].mxu0
    %v2824 = vadd.f32 %v2781, %v2823
    %v2825 = vpop.f32.mrb[0].mxu0
    %v2826 = vadd.f32 %v2783, %v2825
    %2827 = vdwg.mxu0
    %2828 = vmatprep.subr.bf16.mxu0 %v2263
    %2829 = vmatpush1.bf16.msra.mxu0 %v2262
    %2830 = vmatprep.subr.bf16.mxu0 %v2273
    %2831 = vmatpush1.bf16.msra.mxu0 %v2272
    %2832 = vmatprep.subr.bf16.mxu0 %v2283
    %2833 = vmatpush1.bf16.msra.mxu0 %v2282
    %2834 = vmatprep.subr.bf16.mxu0 %v2293
    %2835 = vmatpush1.bf16.msra.mxu0 %v2292
    %2836 = vmatprep.subr.bf16.mxu0 %v2303
    %2837 = vmatpush1.bf16.msra.mxu0 %v2302
    %2838 = vmatprep.subr.bf16.mxu0 %v2313
    %2839 = vmatpush1.bf16.msra.mxu0 %v2312
    %2840 = vmatprep.subr.bf16.mxu0 %v2323
    %2841 = vmatpush1.bf16.msra.mxu0 %v2322
    %2842 = vmatprep.subr.bf16.mxu0 %v2333
    %2843 = vmatpush1.bf16.msra.mxu0 %v2332
    %2844 = vmatprep.subr.bf16.mxu0 0
    %2845 = vmatpush1.bf16.msra.mxu0 0
    %2846 = vmatprep.subr.bf16.mxu0 0
    %2847 = vmatpush1.bf16.msra.mxu0 0
    %2848 = vmatprep.subr.bf16.mxu0 0
    %2849 = vmatpush1.bf16.msra.mxu0 0
    %2850 = vmatprep.subr.bf16.mxu0 0
    %2851 = vmatpush1.bf16.msra.mxu0 0
    %2852 = vmatprep.subr.bf16.mxu0 0
    %2853 = vmatpush1.bf16.msra.mxu0 0
    %2854 = vmatprep.subr.bf16.mxu0 0
    %2855 = vmatpush1.bf16.msra.mxu0 0
    %2856 = vmatprep.subr.bf16.mxu0 0
    %2857 = vmatpush1.bf16.msra.mxu0 0
    %2858 = vmatprep.subr.bf16.mxu0 0
    %2859 = vmatpush1.bf16.msra.mxu0 0
    %2860 = vmatprep.mubr.bf16.mxu0 0
    %2861 = vmatmul.mubr.bf16.gmra.mrb[0].mxu0 %v341
    %v2862 = vpop.f32.mrb[0].mxu0
    %v2863 = vadd.f32 %v2820, %v2862
    %v2864 = vpop.f32.mrb[0].mxu0
    %v2865 = vadd.f32 %v2822, %v2864
    %v2866 = vpop.f32.mrb[0].mxu0
    %v2867 = vadd.f32 %v2824, %v2866
    %v2868 = vpop.f32.mrb[0].mxu0
    %v2869 = vadd.f32 %v2826, %v2868
    %2870 = vdwg.mxu0
    %2871 = vmatprep.subr.bf16.mxu0 %v1945
    %2872 = vmatpush1.bf16.msra.mxu0 %v1944
    %2873 = vmatprep.subr.bf16.mxu0 %v1955
    %2874 = vmatpush1.bf16.msra.mxu0 %v1954
    %2875 = vmatprep.subr.bf16.mxu0 %v1965
    %2876 = vmatpush1.bf16.msra.mxu0 %v1964
    %2877 = vmatprep.subr.bf16.mxu0 %v1975
    %2878 = vmatpush1.bf16.msra.mxu0 %v1974
    %2879 = vmatprep.subr.bf16.mxu0 %v1985
    %2880 = vmatpush1.bf16.msra.mxu0 %v1984
    %2881 = vmatprep.subr.bf16.mxu0 %v1995
    %2882 = vmatpush1.bf16.msra.mxu0 %v1994
    %2883 = vmatprep.subr.bf16.mxu0 %v2005
    %2884 = vmatpush1.bf16.msra.mxu0 %v2004
    %2885 = vmatprep.subr.bf16.mxu0 %v2015
    %2886 = vmatpush1.bf16.msra.mxu0 %v2014
    %2887 = vmatprep.subr.bf16.mxu0 %v2025
    %2888 = vmatpush1.bf16.msra.mxu0 %v2024
    %2889 = vmatprep.subr.bf16.mxu0 %v2035
    %2890 = vmatpush1.bf16.msra.mxu0 %v2034
    %2891 = vmatprep.subr.bf16.mxu0 %v2045
    %2892 = vmatpush1.bf16.msra.mxu0 %v2044
    %2893 = vmatprep.subr.bf16.mxu0 %v2055
    %2894 = vmatpush1.bf16.msra.mxu0 %v2054
    %2895 = vmatprep.subr.bf16.mxu0 %v2065
    %2896 = vmatpush1.bf16.msra.mxu0 %v2064
    %2897 = vmatprep.subr.bf16.mxu0 %v2075
    %2898 = vmatpush1.bf16.msra.mxu0 %v2074
    %2899 = vmatprep.subr.bf16.mxu0 %v2085
    %2900 = vmatpush1.bf16.msra.mxu0 %v2084
    %2901 = vmatprep.subr.bf16.mxu0 %v2095
    %2902 = vmatpush1.bf16.msra.mxu0 %v2094
    %2903 = vmatprep.mubr.bf16.mxu0 %v338
    %2904 = vmatmul.mubr.bf16.gmra.mrb[0].mxu0 %v337
    %v2905 = vpop.f32.mrb[0].mxu0
    %v2906 = vadd.f32 0.0, %v2905
    %v2907 = vpop.f32.mrb[0].mxu0
    %v2908 = vadd.f32 0.0, %v2907
    %v2909 = vpop.f32.mrb[0].mxu0
    %v2910 = vadd.f32 0.0, %v2909
    %v2911 = vpop.f32.mrb[0].mxu0
    %v2912 = vadd.f32 0.0, %v2911
    %2913 = vdwg.mxu0
    %2914 = vmatprep.subr.bf16.mxu0 %v2105
    %2915 = vmatpush1.bf16.msra.mxu0 %v2104
    %2916 = vmatprep.subr.bf16.mxu0 %v2115
    %2917 = vmatpush1.bf16.msra.mxu0 %v2114
    %2918 = vmatprep.subr.bf16.mxu0 %v2125
    %2919 = vmatpush1.bf16.msra.mxu0 %v2124
    %2920 = vmatprep.subr.bf16.mxu0 %v2135
    %2921 = vmatpush1.bf16.msra.mxu0 %v2134
    %2922 = vmatprep.subr.bf16.mxu0 %v2145
    %2923 = vmatpush1.bf16.msra.mxu0 %v2144
    %2924 = vmatprep.subr.bf16.mxu0 %v2155
    %2925 = vmatpush1.bf16.msra.mxu0 %v2154
    %2926 = vmatprep.subr.bf16.mxu0 %v2165
    %2927 = vmatpush1.bf16.msra.mxu0 %v2164
    %2928 = vmatprep.subr.bf16.mxu0 %v2175
    %2929 = vmatpush1.bf16.msra.mxu0 %v2174
    %2930 = vmatprep.subr.bf16.mxu0 %v2185
    %2931 = vmatpush1.bf16.msra.mxu0 %v2184
    %2932 = vmatprep.subr.bf16.mxu0 %v2195
    %2933 = vmatpush1.bf16.msra.mxu0 %v2194
    %2934 = vmatprep.subr.bf16.mxu0 %v2205
    %2935 = vmatpush1.bf16.msra.mxu0 %v2204
    %2936 = vmatprep.subr.bf16.mxu0 %v2215
    %2937 = vmatpush1.bf16.msra.mxu0 %v2214
    %2938 = vmatprep.subr.bf16.mxu0 %v2225
    %2939 = vmatpush1.bf16.msra.mxu0 %v2224
    %2940 = vmatprep.subr.bf16.mxu0 %v2235
    %2941 = vmatpush1.bf16.msra.mxu0 %v2234
    %2942 = vmatprep.subr.bf16.mxu0 %v2245
    %2943 = vmatpush1.bf16.msra.mxu0 %v2244
    %2944 = vmatprep.subr.bf16.mxu0 %v2255
    %2945 = vmatpush1.bf16.msra.mxu0 %v2254
    %2946 = vmatprep.mubr.bf16.mxu0 %v340
    %2947 = vmatmul.mubr.bf16.gmra.mrb[0].mxu0 %v339
    %v2948 = vpop.f32.mrb[0].mxu0
    %v2949 = vadd.f32 %v2906, %v2948
    %v2950 = vpop.f32.mrb[0].mxu0
    %v2951 = vadd.f32 %v2908, %v2950
    %v2952 = vpop.f32.mrb[0].mxu0
    %v2953 = vadd.f32 %v2910, %v2952
    %v2954 = vpop.f32.mrb[0].mxu0
    %v2955 = vadd.f32 %v2912, %v2954
    %2956 = vdwg.mxu0
    %2957 = vmatprep.subr.bf16.mxu0 %v2265
    %2958 = vmatpush1.bf16.msra.mxu0 %v2264
    %2959 = vmatprep.subr.bf16.mxu0 %v2275
    %2960 = vmatpush1.bf16.msra.mxu0 %v2274
    %2961 = vmatprep.subr.bf16.mxu0 %v2285
    %2962 = vmatpush1.bf16.msra.mxu0 %v2284
    %2963 = vmatprep.subr.bf16.mxu0 %v2295
    %2964 = vmatpush1.bf16.msra.mxu0 %v2294
    %2965 = vmatprep.subr.bf16.mxu0 %v2305
    %2966 = vmatpush1.bf16.msra.mxu0 %v2304
    %2967 = vmatprep.subr.bf16.mxu0 %v2315
    %2968 = vmatpush1.bf16.msra.mxu0 %v2314
    %2969 = vmatprep.subr.bf16.mxu0 %v2325
    %2970 = vmatpush1.bf16.msra.mxu0 %v2324
    %2971 = vmatprep.subr.bf16.mxu0 %v2335
    %2972 = vmatpush1.bf16.msra.mxu0 %v2334
    %2973 = vmatprep.subr.bf16.mxu0 0
    %2974 = vmatpush1.bf16.msra.mxu0 0
    %2975 = vmatprep.subr.bf16.mxu0 0
    %2976 = vmatpush1.bf16.msra.mxu0 0
    %2977 = vmatprep.subr.bf16.mxu0 0
    %2978 = vmatpush1.bf16.msra.mxu0 0
    %2979 = vmatprep.subr.bf16.mxu0 0
    %2980 = vmatpush1.bf16.msra.mxu0 0
    %2981 = vmatprep.subr.bf16.mxu0 0
    %2982 = vmatpush1.bf16.msra.mxu0 0
    %2983 = vmatprep.subr.bf16.mxu0 0
    %2984 = vmatpush1.bf16.msra.mxu0 0
    %2985 = vmatprep.subr.bf16.mxu0 0
    %2986 = vmatpush1.bf16.msra.mxu0 0
    %2987 = vmatprep.subr.bf16.mxu0 0
    %2988 = vmatpush1.bf16.msra.mxu0 0
    %2989 = vmatprep.mubr.bf16.mxu0 0
    %2990 = vmatmul.mubr.bf16.gmra.mrb[0].mxu0 %v341
    %v2991 = vpop.f32.mrb[0].mxu0
    %v2992 = vadd.f32 %v2949, %v2991
    %v2993 = vpop.f32.mrb[0].mxu0
    %v2994 = vadd.f32 %v2951, %v2993
    %v2995 = vpop.f32.mrb[0].mxu0
    %v2996 = vadd.f32 %v2953, %v2995
    %v2997 = vpop.f32.mrb[0].mxu0
    %v2998 = vadd.f32 %v2955, %v2997
    %2999 = vdwg.mxu0
    %3000 = vmatprep.subr.bf16.mxu0 %v1947
    %3001 = vmatpush1.bf16.msra.mxu0 %v1946
    %3002 = vmatprep.subr.bf16.mxu0 %v1957
    %3003 = vmatpush1.bf16.msra.mxu0 %v1956
    %3004 = vmatprep.subr.bf16.mxu0 %v1967
    %3005 = vmatpush1.bf16.msra.mxu0 %v1966
    %3006 = vmatprep.subr.bf16.mxu0 %v1977
    %3007 = vmatpush1.bf16.msra.mxu0 %v1976
    %3008 = vmatprep.subr.bf16.mxu0 %v1987
    %3009 = vmatpush1.bf16.msra.mxu0 %v1986
    %3010 = vmatprep.subr.bf16.mxu0 %v1997
    %3011 = vmatpush1.bf16.msra.mxu0 %v1996
    %3012 = vmatprep.subr.bf16.mxu0 %v2007
    %3013 = vmatpush1.bf16.msra.mxu0 %v2006
    %3014 = vmatprep.subr.bf16.mxu0 %v2017
    %3015 = vmatpush1.bf16.msra.mxu0 %v2016
    %3016 = vmatprep.subr.bf16.mxu0 %v2027
    %3017 = vmatpush1.bf16.msra.mxu0 %v2026
    %3018 = vmatprep.subr.bf16.mxu0 %v2037
    %3019 = vmatpush1.bf16.msra.mxu0 %v2036
    %3020 = vmatprep.subr.bf16.mxu0 %v2047
    %3021 = vmatpush1.bf16.msra.mxu0 %v2046
    %3022 = vmatprep.subr.bf16.mxu0 %v2057
    %3023 = vmatpush1.bf16.msra.mxu0 %v2056
    %3024 = vmatprep.subr.bf16.mxu0 %v2067
    %3025 = vmatpush1.bf16.msra.mxu0 %v2066
    %3026 = vmatprep.subr.bf16.mxu0 %v2077
    %3027 = vmatpush1.bf16.msra.mxu0 %v2076
    %3028 = vmatprep.subr.bf16.mxu0 %v2087
    %3029 = vmatpush1.bf16.msra.mxu0 %v2086
    %3030 = vmatprep.subr.bf16.mxu0 %v2097
    %3031 = vmatpush1.bf16.msra.mxu0 %v2096
    %3032 = vmatprep.mubr.bf16.mxu0 %v338
    %3033 = vmatmul.mubr.bf16.gmra.mrb[0].mxu0 %v337
    %v3034 = vpop.f32.mrb[0].mxu0
    %v3035 = vadd.f32 0.0, %v3034
    %v3036 = vpop.f32.mrb[0].mxu0
    %v3037 = vadd.f32 0.0, %v3036
    %v3038 = vpop.f32.mrb[0].mxu0
    %v3039 = vadd.f32 0.0, %v3038
    %v3040 = vpop.f32.mrb[0].mxu0
    %v3041 = vadd.f32 0.0, %v3040
    %3042 = vdwg.mxu0
    %3043 = vmatprep.subr.bf16.mxu0 %v2107
    %3044 = vmatpush1.bf16.msra.mxu0 %v2106
    %3045 = vmatprep.subr.bf16.mxu0 %v2117
    %3046 = vmatpush1.bf16.msra.mxu0 %v2116
    %3047 = vmatprep.subr.bf16.mxu0 %v2127
    %3048 = vmatpush1.bf16.msra.mxu0 %v2126
    %3049 = vmatprep.subr.bf16.mxu0 %v2137
    %3050 = vmatpush1.bf16.msra.mxu0 %v2136
    %3051 = vmatprep.subr.bf16.mxu0 %v2147
    %3052 = vmatpush1.bf16.msra.mxu0 %v2146
    %3053 = vmatprep.subr.bf16.mxu0 %v2157
    %3054 = vmatpush1.bf16.msra.mxu0 %v2156
    %3055 = vmatprep.subr.bf16.mxu0 %v2167
    %3056 = vmatpush1.bf16.msra.mxu0 %v2166
    %3057 = vmatprep.subr.bf16.mxu0 %v2177
    %3058 = vmatpush1.bf16.msra.mxu0 %v2176
    %3059 = vmatprep.subr.bf16.mxu0 %v2187
    %3060 = vmatpush1.bf16.msra.mxu0 %v2186
    %3061 = vmatprep.subr.bf16.mxu0 %v2197
    %3062 = vmatpush1.bf16.msra.mxu0 %v2196
    %3063 = vmatprep.subr.bf16.mxu0 %v2207
    %3064 = vmatpush1.bf16.msra.mxu0 %v2206
    %3065 = vmatprep.subr.bf16.mxu0 %v2217
    %3066 = vmatpush1.bf16.msra.mxu0 %v2216
    %3067 = vmatprep.subr.bf16.mxu0 %v2227
    %3068 = vmatpush1.bf16.msra.mxu0 %v2226
    %3069 = vmatprep.subr.bf16.mxu0 %v2237
    %3070 = vmatpush1.bf16.msra.mxu0 %v2236
    %3071 = vmatprep.subr.bf16.mxu0 %v2247
    %3072 = vmatpush1.bf16.msra.mxu0 %v2246
    %3073 = vmatprep.subr.bf16.mxu0 %v2257
    %3074 = vmatpush1.bf16.msra.mxu0 %v2256
    %3075 = vmatprep.mubr.bf16.mxu0 %v340
    %3076 = vmatmul.mubr.bf16.gmra.mrb[0].mxu0 %v339
    %v3077 = vpop.f32.mrb[0].mxu0
    %v3078 = vadd.f32 %v3035, %v3077
    %v3079 = vpop.f32.mrb[0].mxu0
    %v3080 = vadd.f32 %v3037, %v3079
    %v3081 = vpop.f32.mrb[0].mxu0
    %v3082 = vadd.f32 %v3039, %v3081
    %v3083 = vpop.f32.mrb[0].mxu0
    %v3084 = vadd.f32 %v3041, %v3083
    %3085 = vdwg.mxu0
    %3086 = vmatprep.subr.bf16.mxu0 %v2267
    %3087 = vmatpush1.bf16.msra.mxu0 %v2266
    %3088 = vmatprep.subr.bf16.mxu0 %v2277
    %3089 = vmatpush1.bf16.msra.mxu0 %v2276
    %3090 = vmatprep.subr.bf16.mxu0 %v2287
    %3091 = vmatpush1.bf16.msra.mxu0 %v2286
    %3092 = vmatprep.subr.bf16.mxu0 %v2297
    %3093 = vmatpush1.bf16.msra.mxu0 %v2296
    %3094 = vmatprep.subr.bf16.mxu0 %v2307
    %3095 = vmatpush1.bf16.msra.mxu0 %v2306
    %3096 = vmatprep.subr.bf16.mxu0 %v2317
    %3097 = vmatpush1.bf16.msra.mxu0 %v2316
    %3098 = vmatprep.subr.bf16.mxu0 %v2327
    %3099 = vmatpush1.bf16.msra.mxu0 %v2326
    %3100 = vmatprep.subr.bf16.mxu0 %v2337
    %3101 = vmatpush1.bf16.msra.mxu0 %v2336
    %3102 = vmatprep.subr.bf16.mxu0 0
    %3103 = vmatpush1.bf16.msra.mxu0 0
    %3104 = vmatprep.subr.bf16.mxu0 0
    %3105 = vmatpush1.bf16.msra.mxu0 0
    %3106 = vmatprep.subr.bf16.mxu0 0
    %3107 = vmatpush1.bf16.msra.mxu0 0
    %3108 = vmatprep.subr.bf16.mxu0 0
    %3109 = vmatpush1.bf16.msra.mxu0 0
    %3110 = vmatprep.subr.bf16.mxu0 0
    %3111 = vmatpush1.bf16.msra.mxu0 0
    %3112 = vmatprep.subr.bf16.mxu0 0
    %3113 = vmatpush1.bf16.msra.mxu0 0
    %3114 = vmatprep.subr.bf16.mxu0 0
    %3115 = vmatpush1.bf16.msra.mxu0 0
    %3116 = vmatprep.subr.bf16.mxu0 0
    %3117 = vmatpush1.bf16.msra.mxu0 0
    %3118 = vmatprep.mubr.bf16.mxu0 0
    %3119 = vmatmul.mubr.bf16.gmra.mrb[0].mxu0 %v341
    %v3120 = vpop.f32.mrb[0].mxu0
    %v3121 = vadd.f32 %v3078, %v3120
    %v3122 = vpop.f32.mrb[0].mxu0
    %v3123 = vadd.f32 %v3080, %v3122
    %v3124 = vpop.f32.mrb[0].mxu0
    %v3125 = vadd.f32 %v3082, %v3124
    %v3126 = vpop.f32.mrb[0].mxu0
    %v3127 = vadd.f32 %v3084, %v3126
    %3128 = vdwg.mxu0
    %3129 = vmatprep.subr.bf16.mxu0 %v1949
    %3130 = vmatpush1.bf16.msra.mxu0 %v1948
    %3131 = vmatprep.subr.bf16.mxu0 %v1959
    %3132 = vmatpush1.bf16.msra.mxu0 %v1958
    %3133 = vmatprep.subr.bf16.mxu0 %v1969
    %3134 = vmatpush1.bf16.msra.mxu0 %v1968
    %3135 = vmatprep.subr.bf16.mxu0 %v1979
    %3136 = vmatpush1.bf16.msra.mxu0 %v1978
    %3137 = vmatprep.subr.bf16.mxu0 %v1989
    %3138 = vmatpush1.bf16.msra.mxu0 %v1988
    %3139 = vmatprep.subr.bf16.mxu0 %v1999
    %3140 = vmatpush1.bf16.msra.mxu0 %v1998
    %3141 = vmatprep.subr.bf16.mxu0 %v2009
    %3142 = vmatpush1.bf16.msra.mxu0 %v2008
    %3143 = vmatprep.subr.bf16.mxu0 %v2019
    %3144 = vmatpush1.bf16.msra.mxu0 %v2018
    %3145 = vmatprep.subr.bf16.mxu0 %v2029
    %3146 = vmatpush1.bf16.msra.mxu0 %v2028
    %3147 = vmatprep.subr.bf16.mxu0 %v2039
    %3148 = vmatpush1.bf16.msra.mxu0 %v2038
    %3149 = vmatprep.subr.bf16.mxu0 %v2049
    %3150 = vmatpush1.bf16.msra.mxu0 %v2048
    %3151 = vmatprep.subr.bf16.mxu0 %v2059
    %3152 = vmatpush1.bf16.msra.mxu0 %v2058
    %3153 = vmatprep.subr.bf16.mxu0 %v2069
    %3154 = vmatpush1.bf16.msra.mxu0 %v2068
    %3155 = vmatprep.subr.bf16.mxu0 %v2079
    %3156 = vmatpush1.bf16.msra.mxu0 %v2078
    %3157 = vmatprep.subr.bf16.mxu0 %v2089
    %3158 = vmatpush1.bf16.msra.mxu0 %v2088
    %3159 = vmatprep.subr.bf16.mxu0 %v2099
    %3160 = vmatpush1.bf16.msra.mxu0 %v2098
    %3161 = vmatprep.mubr.bf16.mxu0 %v338
    %3162 = vmatmul.mubr.bf16.gmra.mrb[0].mxu0 %v337
    %v3163 = vpop.f32.mrb[0].mxu0
    %v3164 = vadd.f32 0.0, %v3163
    %v3165 = vpop.f32.mrb[0].mxu0
    %v3166 = vadd.f32 0.0, %v3165
    %v3167 = vpop.f32.mrb[0].mxu0
    %v3168 = vadd.f32 0.0, %v3167
    %v3169 = vpop.f32.mrb[0].mxu0
    %v3170 = vadd.f32 0.0, %v3169
    %3171 = vdwg.mxu0
    %3172 = vmatprep.subr.bf16.mxu0 %v2109
    %3173 = vmatpush1.bf16.msra.mxu0 %v2108
    %3174 = vmatprep.subr.bf16.mxu0 %v2119
    %3175 = vmatpush1.bf16.msra.mxu0 %v2118
    %3176 = vmatprep.subr.bf16.mxu0 %v2129
    %3177 = vmatpush1.bf16.msra.mxu0 %v2128
    %3178 = vmatprep.subr.bf16.mxu0 %v2139
    %3179 = vmatpush1.bf16.msra.mxu0 %v2138
    %3180 = vmatprep.subr.bf16.mxu0 %v2149
    %3181 = vmatpush1.bf16.msra.mxu0 %v2148
    %3182 = vmatprep.subr.bf16.mxu0 %v2159
    %3183 = vmatpush1.bf16.msra.mxu0 %v2158
    %3184 = vmatprep.subr.bf16.mxu0 %v2169
    %3185 = vmatpush1.bf16.msra.mxu0 %v2168
    %3186 = vmatprep.subr.bf16.mxu0 %v2179
    %3187 = vmatpush1.bf16.msra.mxu0 %v2178
    %3188 = vmatprep.subr.bf16.mxu0 %v2189
    %3189 = vmatpush1.bf16.msra.mxu0 %v2188
    %3190 = vmatprep.subr.bf16.mxu0 %v2199
    %3191 = vmatpush1.bf16.msra.mxu0 %v2198
    %3192 = vmatprep.subr.bf16.mxu0 %v2209
    %3193 = vmatpush1.bf16.msra.mxu0 %v2208
    %3194 = vmatprep.subr.bf16.mxu0 %v2219
    %3195 = vmatpush1.bf16.msra.mxu0 %v2218
    %3196 = vmatprep.subr.bf16.mxu0 %v2229
    %3197 = vmatpush1.bf16.msra.mxu0 %v2228
    %3198 = vmatprep.subr.bf16.mxu0 %v2239
    %3199 = vmatpush1.bf16.msra.mxu0 %v2238
    %3200 = vmatprep.subr.bf16.mxu0 %v2249
    %3201 = vmatpush1.bf16.msra.mxu0 %v2248
    %3202 = vmatprep.subr.bf16.mxu0 %v2259
    %3203 = vmatpush1.bf16.msra.mxu0 %v2258
    %3204 = vmatprep.mubr.bf16.mxu0 %v340
    %3205 = vmatmul.mubr.bf16.gmra.mrb[0].mxu0 %v339
    %v3206 = vpop.f32.mrb[0].mxu0
    %v3207 = vadd.f32 %v3164, %v3206
    %v3208 = vpop.f32.mrb[0].mxu0
    %v3209 = vadd.f32 %v3166, %v3208
    %v3210 = vpop.f32.mrb[0].mxu0
    %v3211 = vadd.f32 %v3168, %v3210
    %v3212 = vpop.f32.mrb[0].mxu0
    %v3213 = vadd.f32 %v3170, %v3212
    %3214 = vdwg.mxu0
    %3215 = vmatprep.subr.bf16.mxu0 %v2269
    %3216 = vmatpush1.bf16.msra.mxu0 %v2268
    %3217 = vmatprep.subr.bf16.mxu0 %v2279
    %3218 = vmatpush1.bf16.msra.mxu0 %v2278
    %3219 = vmatprep.subr.bf16.mxu0 %v2289
    %3220 = vmatpush1.bf16.msra.mxu0 %v2288
    %3221 = vmatprep.subr.bf16.mxu0 %v2299
    %3222 = vmatpush1.bf16.msra.mxu0 %v2298
    %3223 = vmatprep.subr.bf16.mxu0 %v2309
    %3224 = vmatpush1.bf16.msra.mxu0 %v2308
    %3225 = vmatprep.subr.bf16.mxu0 %v2319
    %3226 = vmatpush1.bf16.msra.mxu0 %v2318
    %3227 = vmatprep.subr.bf16.mxu0 %v2329
    %3228 = vmatpush1.bf16.msra.mxu0 %v2328
    %3229 = vmatprep.subr.bf16.mxu0 %v2339
    %3230 = vmatpush1.bf16.msra.mxu0 %v2338
    %3231 = vmatprep.subr.bf16.mxu0 0
    %3232 = vmatpush1.bf16.msra.mxu0 0
    %3233 = vmatprep.subr.bf16.mxu0 0
    %3234 = vmatpush1.bf16.msra.mxu0 0
    %3235 = vmatprep.subr.bf16.mxu0 0
    %3236 = vmatpush1.bf16.msra.mxu0 0
    %3237 = vmatprep.subr.bf16.mxu0 0
    %3238 = vmatpush1.bf16.msra.mxu0 0
    %3239 = vmatprep.subr.bf16.mxu0 0
    %3240 = vmatpush1.bf16.msra.mxu0 0
    %3241 = vmatprep.subr.bf16.mxu0 0
    %3242 = vmatpush1.bf16.msra.mxu0 0
    %3243 = vmatprep.subr.bf16.mxu0 0
    %3244 = vmatpush1.bf16.msra.mxu0 0
    %3245 = vmatprep.subr.bf16.mxu0 0
    %3246 = vmatpush1.bf16.msra.mxu0 0
    %3247 = vmatprep.mubr.bf16.mxu0 0
    %3248 = vmatmul.mubr.bf16.gmra.mrb[0].mxu0 %v341
    %v3249 = vpop.f32.mrb[0].mxu0
    %v3250 = vadd.f32 %v3207, %v3249
    %v3251 = vpop.f32.mrb[0].mxu0
    %v3252 = vadd.f32 %v3209, %v3251
    %v3253 = vpop.f32.mrb[0].mxu0
    %v3254 = vadd.f32 %v3211, %v3253
    %v3255 = vpop.f32.mrb[0].mxu0
    %v3256 = vadd.f32 %v3213, %v3255
    %3257 = vdwg.mxu0
    %3258 = vmatprep.subr.bf16.mxu0 %v1951
    %3259 = vmatpush1.bf16.msra.mxu0 %v1950
    %3260 = vmatprep.subr.bf16.mxu0 %v1961
    %3261 = vmatpush1.bf16.msra.mxu0 %v1960
    %3262 = vmatprep.subr.bf16.mxu0 %v1971
    %3263 = vmatpush1.bf16.msra.mxu0 %v1970
    %3264 = vmatprep.subr.bf16.mxu0 %v1981
    %3265 = vmatpush1.bf16.msra.mxu0 %v1980
    %3266 = vmatprep.subr.bf16.mxu0 %v1991
    %3267 = vmatpush1.bf16.msra.mxu0 %v1990
    %3268 = vmatprep.subr.bf16.mxu0 %v2001
    %3269 = vmatpush1.bf16.msra.mxu0 %v2000
    %3270 = vmatprep.subr.bf16.mxu0 %v2011
    %3271 = vmatpush1.bf16.msra.mxu0 %v2010
    %3272 = vmatprep.subr.bf16.mxu0 %v2021
    %3273 = vmatpush1.bf16.msra.mxu0 %v2020
    %3274 = vmatprep.subr.bf16.mxu0 %v2031
    %3275 = vmatpush1.bf16.msra.mxu0 %v2030
    %3276 = vmatprep.subr.bf16.mxu0 %v2041
    %3277 = vmatpush1.bf16.msra.mxu0 %v2040
    %3278 = vmatprep.subr.bf16.mxu0 %v2051
    %3279 = vmatpush1.bf16.msra.mxu0 %v2050
    %3280 = vmatprep.subr.bf16.mxu0 %v2061
    %3281 = vmatpush1.bf16.msra.mxu0 %v2060
    %3282 = vmatprep.subr.bf16.mxu0 %v2071
    %3283 = vmatpush1.bf16.msra.mxu0 %v2070
    %3284 = vmatprep.subr.bf16.mxu0 %v2081
    %3285 = vmatpush1.bf16.msra.mxu0 %v2080
    %3286 = vmatprep.subr.bf16.mxu0 %v2091
    %3287 = vmatpush1.bf16.msra.mxu0 %v2090
    %3288 = vmatprep.subr.bf16.mxu0 %v2101
    %3289 = vmatpush1.bf16.msra.mxu0 %v2100
    %3290 = vmatprep.mubr.bf16.mxu0 %v338
    %3291 = vmatmul.mubr.bf16.gmra.mrb[0].mxu0 %v337
    %v3292 = vpop.f32.mrb[0].mxu0
    %v3293 = vadd.f32 0.0, %v3292
    %v3294 = vpop.f32.mrb[0].mxu0
    %v3295 = vadd.f32 0.0, %v3294
    %v3296 = vpop.f32.mrb[0].mxu0
    %v3297 = vadd.f32 0.0, %v3296
    %v3298 = vpop.f32.mrb[0].mxu0
    %v3299 = vadd.f32 0.0, %v3298
    %3300 = vdwg.mxu0
    %3301 = vmatprep.subr.bf16.mxu0 %v2111
    %3302 = vmatpush1.bf16.msra.mxu0 %v2110
    %3303 = vmatprep.subr.bf16.mxu0 %v2121
    %3304 = vmatpush1.bf16.msra.mxu0 %v2120
    %3305 = vmatprep.subr.bf16.mxu0 %v2131
    %3306 = vmatpush1.bf16.msra.mxu0 %v2130
    %3307 = vmatprep.subr.bf16.mxu0 %v2141
    %3308 = vmatpush1.bf16.msra.mxu0 %v2140
    %3309 = vmatprep.subr.bf16.mxu0 %v2151
    %3310 = vmatpush1.bf16.msra.mxu0 %v2150
    %3311 = vmatprep.subr.bf16.mxu0 %v2161
    %3312 = vmatpush1.bf16.msra.mxu0 %v2160
    %3313 = vmatprep.subr.bf16.mxu0 %v2171
    %3314 = vmatpush1.bf16.msra.mxu0 %v2170
    %3315 = vmatprep.subr.bf16.mxu0 %v2181
    %3316 = vmatpush1.bf16.msra.mxu0 %v2180
    %3317 = vmatprep.subr.bf16.mxu0 %v2191
    %3318 = vmatpush1.bf16.msra.mxu0 %v2190
    %3319 = vmatprep.subr.bf16.mxu0 %v2201
    %3320 = vmatpush1.bf16.msra.mxu0 %v2200
    %3321 = vmatprep.subr.bf16.mxu0 %v2211
    %3322 = vmatpush1.bf16.msra.mxu0 %v2210
    %3323 = vmatprep.subr.bf16.mxu0 %v2221
    %3324 = vmatpush1.bf16.msra.mxu0 %v2220
    %3325 = vmatprep.subr.bf16.mxu0 %v2231
    %3326 = vmatpush1.bf16.msra.mxu0 %v2230
    %3327 = vmatprep.subr.bf16.mxu0 %v2241
    %3328 = vmatpush1.bf16.msra.mxu0 %v2240
    %3329 = vmatprep.subr.bf16.mxu0 %v2251
    %3330 = vmatpush1.bf16.msra.mxu0 %v2250
    %3331 = vmatprep.subr.bf16.mxu0 %v2261
    %3332 = vmatpush1.bf16.msra.mxu0 %v2260
    %3333 = vmatprep.mubr.bf16.mxu0 %v340
    %3334 = vmatmul.mubr.bf16.gmra.mrb[0].mxu0 %v339
    %v3335 = vpop.f32.mrb[0].mxu0
    %v3336 = vadd.f32 %v3293, %v3335
    %v3337 = vpop.f32.mrb[0].mxu0
    %v3338 = vadd.f32 %v3295, %v3337
    %v3339 = vpop.f32.mrb[0].mxu0
    %v3340 = vadd.f32 %v3297, %v3339
    %v3341 = vpop.f32.mrb[0].mxu0
    %v3342 = vadd.f32 %v3299, %v3341
    %3343 = vdwg.mxu0
    %3344 = vmatprep.subr.bf16.mxu0 %v2271
    %3345 = vmatpush1.bf16.msra.mxu0 %v2270
    %3346 = vmatprep.subr.bf16.mxu0 %v2281
    %3347 = vmatpush1.bf16.msra.mxu0 %v2280
    %3348 = vmatprep.subr.bf16.mxu0 %v2291
    %3349 = vmatpush1.bf16.msra.mxu0 %v2290
    %3350 = vmatprep.subr.bf16.mxu0 %v2301
    %3351 = vmatpush1.bf16.msra.mxu0 %v2300
    %3352 = vmatprep.subr.bf16.mxu0 %v2311
    %3353 = vmatpush1.bf16.msra.mxu0 %v2310
    %3354 = vmatprep.subr.bf16.mxu0 %v2321
    %3355 = vmatpush1.bf16.msra.mxu0 %v2320
    %3356 = vmatprep.subr.bf16.mxu0 %v2331
    %3357 = vmatpush1.bf16.msra.mxu0 %v2330
    %3358 = vmatprep.subr.bf16.mxu0 %v2341
    %3359 = vmatpush1.bf16.msra.mxu0 %v2340
    %3360 = vmatprep.subr.bf16.mxu0 0
    %3361 = vmatpush1.bf16.msra.mxu0 0
    %3362 = vmatprep.subr.bf16.mxu0 0
    %3363 = vmatpush1.bf16.msra.mxu0 0
    %3364 = vmatprep.subr.bf16.mxu0 0
    %3365 = vmatpush1.bf16.msra.mxu0 0
    %3366 = vmatprep.subr.bf16.mxu0 0
    %3367 = vmatpush1.bf16.msra.mxu0 0
    %3368 = vmatprep.subr.bf16.mxu0 0
    %3369 = vmatpush1.bf16.msra.mxu0 0
    %3370 = vmatprep.subr.bf16.mxu0 0
    %3371 = vmatpush1.bf16.msra.mxu0 0
    %3372 = vmatprep.subr.bf16.mxu0 0
    %3373 = vmatpush1.bf16.msra.mxu0 0
    %3374 = vmatprep.subr.bf16.mxu0 0
    %3375 = vmatpush1.bf16.msra.mxu0 0
    %3376 = vmatprep.mubr.bf16.mxu0 0
    %3377 = vmatmul.mubr.bf16.gmra.mrb[0].mxu0 %v341
    %v3378 = vpop.f32.mrb[0].mxu0
    %v3379 = vadd.f32 %v3336, %v3378
    %v3380 = vpop.f32.mrb[0].mxu0
    %v3381 = vadd.f32 %v3338, %v3380
    %v3382 = vpop.f32.mrb[0].mxu0
    %v3383 = vadd.f32 %v3340, %v3382
    %v3384 = vpop.f32.mrb[0].mxu0
    %v3385 = vadd.f32 %v3342, %v3384
    %3386 = vdwg.mxu0
    %v3387 = vlaneseq
    %v3388 = vshrl.u32 %v3387, 7
    %v3389 = vadd.s32 %v3388, 8
    %s3390 = smul.u32 0, 16
    %v3391 = vstv %s3390
    %v3392 = vadd.s32 %v3388, %v3391
    %v3393 = vadd.s32 %v3389, %v3391
    %vm3394 = vcmp.lt.s32.totalorder %v3392, 2
    %vm3395 = vcmp.lt.s32.totalorder %v3393, 2
    %v3396 = vsel %vm3394, 1, 0
    %v3397 = vsel %vm3395, 1, 0
    %vm3398 = vcmp.eq.s32.totalorder %v3396, 1
    %vm3399 = vcmp.eq.s32.totalorder %v3397, 1
    %v3400 = vsel %vm3398, %v2863, 0.0
    %v3401 = vsel %vm3398, %v2865, 0.0
    %v3402 = vsel %vm3398, %v2992, 0.0
    %v3403 = vsel %vm3398, %v2994, 0.0
    %v3404 = vsel %vm3398, %v3121, 0.0
    %v3405 = vsel %vm3398, %v3123, 0.0
    %v3406 = vsel %vm3398, %v3250, 0.0
    %v3407 = vsel %vm3398, %v3252, 0.0
    %v3408 = vsel %vm3398, %v3379, 0.0
    %v3409 = vsel %vm3398, %v3381, 0.0
    %v3410 = vsel %vm3399, %v2867, 0.0
    %v3411 = vsel %vm3399, %v2869, 0.0
    %v3412 = vsel %vm3399, %v2996, 0.0
    %v3413 = vsel %vm3399, %v2998, 0.0
    %v3414 = vsel %vm3399, %v3125, 0.0
    %v3415 = vsel %vm3399, %v3127, 0.0
    %v3416 = vsel %vm3399, %v3254, 0.0
    %v3417 = vsel %vm3399, %v3256, 0.0
    %v3418 = vsel %vm3399, %v3383, 0.0
    %v3419 = vsel %vm3399, %v3385, 0.0
    %v3420 = vadd.f32 %v3400, %v3410
    %v3421 = vrot.slane %v3420, 4
    %v3422 = vadd.f32 %v3420, %v3421
    %v3423 = vrot.slane %v3422, 2
    %v3424 = vadd.f32 %v3422, %v3423
    %v3425 = vrot.slane %v3424, 1
    %v3426 = vadd.f32 %v3424, %v3425
    %v3427 = vadd.f32 %v3401, %v3411
    %v3428 = vrot.slane %v3427, 4
    %v3429 = vadd.f32 %v3427, %v3428
    %v3430 = vrot.slane %v3429, 2
    %v3431 = vadd.f32 %v3429, %v3430
    %v3432 = vrot.slane %v3431, 1
    %v3433 = vadd.f32 %v3431, %v3432
    %v3434 = vadd.f32 %v3402, %v3412
    %v3435 = vrot.slane %v3434, 4
    %v3436 = vadd.f32 %v3434, %v3435
    %v3437 = vrot.slane %v3436, 2
    %v3438 = vadd.f32 %v3436, %v3437
    %v3439 = vrot.slane %v3438, 1
    %v3440 = vadd.f32 %v3438, %v3439
    %v3441 = vadd.f32 %v3403, %v3413
    %v3442 = vrot.slane %v3441, 4
    %v3443 = vadd.f32 %v3441, %v3442
    %v3444 = vrot.slane %v3443, 2
    %v3445 = vadd.f32 %v3443, %v3444
    %v3446 = vrot.slane %v3445, 1
    %v3447 = vadd.f32 %v3445, %v3446
    %v3448 = vadd.f32 %v3404, %v3414
    %v3449 = vrot.slane %v3448, 4
    %v3450 = vadd.f32 %v3448, %v3449
    %v3451 = vrot.slane %v3450, 2
    %v3452 = vadd.f32 %v3450, %v3451
    %v3453 = vrot.slane %v3452, 1
    %v3454 = vadd.f32 %v3452, %v3453
    %v3455 = vadd.f32 %v3405, %v3415
    %v3456 = vrot.slane %v3455, 4
    %v3457 = vadd.f32 %v3455, %v3456
    %v3458 = vrot.slane %v3457, 2
    %v3459 = vadd.f32 %v3457, %v3458
    %v3460 = vrot.slane %v3459, 1
    %v3461 = vadd.f32 %v3459, %v3460
    %v3462 = vadd.f32 %v3406, %v3416
    %v3463 = vrot.slane %v3462, 4
    %v3464 = vadd.f32 %v3462, %v3463
    %v3465 = vrot.slane %v3464, 2
    %v3466 = vadd.f32 %v3464, %v3465
    %v3467 = vrot.slane %v3466, 1
    %v3468 = vadd.f32 %v3466, %v3467
    %v3469 = vadd.f32 %v3407, %v3417
    %v3470 = vrot.slane %v3469, 4
    %v3471 = vadd.f32 %v3469, %v3470
    %v3472 = vrot.slane %v3471, 2
    %v3473 = vadd.f32 %v3471, %v3472
    %v3474 = vrot.slane %v3473, 1
    %v3475 = vadd.f32 %v3473, %v3474
    %v3476 = vadd.f32 %v3408, %v3418
    %v3477 = vrot.slane %v3476, 4
    %v3478 = vadd.f32 %v3476, %v3477
    %v3479 = vrot.slane %v3478, 2
    %v3480 = vadd.f32 %v3478, %v3479
    %v3481 = vrot.slane %v3480, 1
    %v3482 = vadd.f32 %v3480, %v3481
    %v3483 = vadd.f32 %v3409, %v3419
    %v3484 = vrot.slane %v3483, 4
    %v3485 = vadd.f32 %v3483, %v3484
    %v3486 = vrot.slane %v3485, 2
    %v3487 = vadd.f32 %v3485, %v3486
    %v3488 = vrot.slane %v3487, 1
    %v3489 = vadd.f32 %v3487, %v3488
    %v3490 = vmul.f32 %v3400, %v3400
    %v3491 = vmul.f32 %v3401, %v3401
    %v3492 = vmul.f32 %v3402, %v3402
    %v3493 = vmul.f32 %v3403, %v3403
    %v3494 = vmul.f32 %v3404, %v3404
    %v3495 = vmul.f32 %v3405, %v3405
    %v3496 = vmul.f32 %v3406, %v3406
    %v3497 = vmul.f32 %v3407, %v3407
    %v3498 = vmul.f32 %v3408, %v3408
    %v3499 = vmul.f32 %v3409, %v3409
    %v3500 = vmul.f32 %v3410, %v3410
    %v3501 = vmul.f32 %v3411, %v3411
    %v3502 = vmul.f32 %v3412, %v3412
    %v3503 = vmul.f32 %v3413, %v3413
    %v3504 = vmul.f32 %v3414, %v3414
    %v3505 = vmul.f32 %v3415, %v3415
    %v3506 = vmul.f32 %v3416, %v3416
    %v3507 = vmul.f32 %v3417, %v3417
    %v3508 = vmul.f32 %v3418, %v3418
    %v3509 = vmul.f32 %v3419, %v3419
    %v3510 = vadd.f32 %v3490, %v3500
    %v3511 = vrot.slane %v3510, 4
    %v3512 = vadd.f32 %v3510, %v3511
    %v3513 = vrot.slane %v3512, 2
    %v3514 = vadd.f32 %v3512, %v3513
    %v3515 = vrot.slane %v3514, 1
    %v3516 = vadd.f32 %v3514, %v3515
    %v3517 = vadd.f32 %v3491, %v3501
    %v3518 = vrot.slane %v3517, 4
    %v3519 = vadd.f32 %v3517, %v3518
    %v3520 = vrot.slane %v3519, 2
    %v3521 = vadd.f32 %v3519, %v3520
    %v3522 = vrot.slane %v3521, 1
    %v3523 = vadd.f32 %v3521, %v3522
    %v3524 = vadd.f32 %v3492, %v3502
    %v3525 = vrot.slane %v3524, 4
    %v3526 = vadd.f32 %v3524, %v3525
    %v3527 = vrot.slane %v3526, 2
    %v3528 = vadd.f32 %v3526, %v3527
    %v3529 = vrot.slane %v3528, 1
    %v3530 = vadd.f32 %v3528, %v3529
    %v3531 = vadd.f32 %v3493, %v3503
    %v3532 = vrot.slane %v3531, 4
    %v3533 = vadd.f32 %v3531, %v3532
    %v3534 = vrot.slane %v3533, 2
    %v3535 = vadd.f32 %v3533, %v3534
    %v3536 = vrot.slane %v3535, 1
    %v3537 = vadd.f32 %v3535, %v3536
    %v3538 = vadd.f32 %v3494, %v3504
    %v3539 = vrot.slane %v3538, 4
    %v3540 = vadd.f32 %v3538, %v3539
    %v3541 = vrot.slane %v3540, 2
    %v3542 = vadd.f32 %v3540, %v3541
    %v3543 = vrot.slane %v3542, 1
    %v3544 = vadd.f32 %v3542, %v3543
    %v3545 = vadd.f32 %v3495, %v3505
    %v3546 = vrot.slane %v3545, 4
    %v3547 = vadd.f32 %v3545, %v3546
    %v3548 = vrot.slane %v3547, 2
    %v3549 = vadd.f32 %v3547, %v3548
    %v3550 = vrot.slane %v3549, 1
    %v3551 = vadd.f32 %v3549, %v3550
    %v3552 = vadd.f32 %v3496, %v3506
    %v3553 = vrot.slane %v3552, 4
    %v3554 = vadd.f32 %v3552, %v3553
    %v3555 = vrot.slane %v3554, 2
    %v3556 = vadd.f32 %v3554, %v3555
    %v3557 = vrot.slane %v3556, 1
    %v3558 = vadd.f32 %v3556, %v3557
    %v3559 = vadd.f32 %v3497, %v3507
    %v3560 = vrot.slane %v3559, 4
    %v3561 = vadd.f32 %v3559, %v3560
    %v3562 = vrot.slane %v3561, 2
    %v3563 = vadd.f32 %v3561, %v3562
    %v3564 = vrot.slane %v3563, 1
    %v3565 = vadd.f32 %v3563, %v3564
    %v3566 = vadd.f32 %v3498, %v3508
    %v3567 = vrot.slane %v3566, 4
    %v3568 = vadd.f32 %v3566, %v3567
    %v3569 = vrot.slane %v3568, 2
    %v3570 = vadd.f32 %v3568, %v3569
    %v3571 = vrot.slane %v3570, 1
    %v3572 = vadd.f32 %v3570, %v3571
    %v3573 = vadd.f32 %v3499, %v3509
    %v3574 = vrot.slane %v3573, 4
    %v3575 = vadd.f32 %v3573, %v3574
    %v3576 = vrot.slane %v3575, 2
    %v3577 = vadd.f32 %v3575, %v3576
    %v3578 = vrot.slane %v3577, 1
    %v3579 = vadd.f32 %v3577, %v3578
    %vm3580 = vcmask 1040384
    %v3581 = vsel %vm3580, %v3426, %v3516
    %v3582 = vsel %vm3580, %v3433, %v3523
    %v3583 = vsel %vm3580, %v3440, %v3530
    %v3584 = vsel %vm3580, %v3447, %v3537
    %v3585 = vsel %vm3580, %v3454, %v3544
    %v3586 = vsel %vm3580, %v3461, %v3551
    %v3587 = vsel %vm3580, %v3468, %v3558
    %v3588 = vsel %vm3580, %v3475, %v3565
    %v3589 = vsel %vm3580, %v3482, %v3572
    %v3590 = vsel %vm3580, %v3489, %v3579
    %v3601 = vcombine.low %v3581, %v3582
    %v3602 = vcombine.low %v3583, %v3584
    %v3604 = vunpack.c.l.s4 1983009808
    %v3605 = vunpack.c.0.s8 %v3604
    %v3606 = vlaneseq
    %v3607 = vshrl.u32 %v3606, 7
    %v3608 = vsub.s32 %v3605, %v3607
    %v3609 = vrot.slane %v3601, %v3608
    %v3611 = vunpack.c.l.s4 1983009808
    %v3612 = vunpack.c.0.s8 %v3611
    %v3613 = vlaneseq
    %v3614 = vshrl.u32 %v3613, 7
    %v3615 = vsub.s32 %v3612, %v3614
    %v3616 = vrot.slane %v3602, %v3615
    %v3617 = vcombine.low %v3609, %v3616
    %v3618 = vcombine.low %v3585, %v3586
    %v3619 = vcombine.low %v3587, %v3588
    %v3621 = vunpack.c.l.s4 1983009808
    %v3622 = vunpack.c.0.s8 %v3621
    %v3623 = vlaneseq
    %v3624 = vshrl.u32 %v3623, 7
    %v3625 = vsub.s32 %v3622, %v3624
    %v3626 = vrot.slane %v3618, %v3625
    %v3628 = vunpack.c.l.s4 1983009808
    %v3629 = vunpack.c.0.s8 %v3628
    %v3630 = vlaneseq
    %v3631 = vshrl.u32 %v3630, 7
    %v3632 = vsub.s32 %v3629, %v3631
    %v3633 = vrot.slane %v3619, %v3632
    %v3634 = vcombine.low %v3626, %v3633
    %v3635 = vcombine.low %v3589, %v3590
    %v3637 = vunpack.c.l.s4 1983009808
    %v3638 = vunpack.c.0.s8 %v3637
    %v3639 = vlaneseq
    %v3640 = vshrl.u32 %v3639, 7
    %v3641 = vsub.s32 %v3638, %v3640
    %v3642 = vrot.slane %v3635, %v3641
    %3646 = vst [vmem:[%s5] sm:$0xff] %v3617
    %3647 = vst [vmem:[%s5 + $0x8] sm:$0xff] %v3634
    %3648 = vst [vmem:[%s5 + $0x10] sm:$0xf] %v3642
    %v3649 = vpack.c.bf16 %v2867, %v2863
    %v3650 = vpack.c.bf16 %v2869, %v2865
    %v3651 = vpack.c.bf16 %v2996, %v2992
    %v3652 = vpack.c.bf16 %v2998, %v2994
    %v3653 = vpack.c.bf16 %v3125, %v3121
    %v3654 = vpack.c.bf16 %v3127, %v3123
    %v3655 = vpack.c.bf16 %v3254, %v3250
    %v3656 = vpack.c.bf16 %v3256, %v3252
    %v3657 = vpack.c.bf16 %v3383, %v3379
    %v3658 = vpack.c.bf16 %v3385, %v3381
    %v3669 = vunpack.c.l.b16 %v3649
    %v3670 = vunpack.c.l.b16 %v3650
    %v3671 = vunpack.c.l.b16 %v3651
    %v3672 = vunpack.c.l.b16 %v3652
    %v3673 = vunpack.c.l.b16 %v3653
    %v3674 = vunpack.c.l.b16 %v3654
    %v3675 = vunpack.c.l.b16 %v3655
    %v3676 = vunpack.c.l.b16 %v3656
    %v3677 = vunpack.c.l.b16 %v3657
    %v3678 = vunpack.c.l.b16 %v3658
    %v3679 = vunpack.c.h.b16 %v3649
    %v3680 = vunpack.c.h.b16 %v3650
    %v3681 = vunpack.c.h.b16 %v3651
    %v3682 = vunpack.c.h.b16 %v3652
    %v3683 = vunpack.c.h.b16 %v3653
    %v3684 = vunpack.c.h.b16 %v3654
    %v3685 = vunpack.c.h.b16 %v3655
    %v3686 = vunpack.c.h.b16 %v3656
    %v3687 = vunpack.c.h.b16 %v3657
    %v3688 = vunpack.c.h.b16 %v3658
    %v3689 = vpack.c.b16 %v3670, %v3669
    %v3690 = vpack.c.b16 %v3672, %v3671
    %v3691 = vpack.c.b16 %v3674, %v3673
    %v3692 = vpack.c.b16 %v3676, %v3675
    %v3693 = vpack.c.b16 %v3678, %v3677
    %v3694 = vpack.c.b16 %v3680, %v3679
    %v3695 = vpack.c.b16 %v3682, %v3681
    %v3696 = vpack.c.b16 %v3684, %v3683
    %v3697 = vpack.c.b16 %v3686, %v3685
    %v3698 = vpack.c.b16 %v3688, %v3687
    %3709 = vst [vmem:[%s6] sm:$0xff] %v3689
    %3710 = vst [vmem:[%s6 + $0x8] sm:$0xff] %v3690
    %3711 = vst [vmem:[%s6 + $0x10] sm:$0xff] %v3691
    %3712 = vst [vmem:[%s6 + $0x18] sm:$0xff] %v3692
    %3713 = vst [vmem:[%s6 + $0x20] sm:$0xff] %v3693
    %3714 = vst [vmem:[%s6 + $0x28] sm:$0xff] %v3694
    %3715 = vst [vmem:[%s6 + $0x30] sm:$0xff] %v3695
    %3716 = vst [vmem:[%s6 + $0x38] sm:$0xff] %v3696
    %3717 = vst [vmem:[%s6 + $0x40] sm:$0xff] %v3697
    %3718 = vst [vmem:[%s6 + $0x48] sm:$0xff] %v3698
    // Predicated region
    $region30: #{micro_chess_forward.4} parent=1 // pred_check
      _
    $region31: #{micro_chess_forward.4} parent=1 // pred_check_branch
      %3720 = sbr.rel (0) target = $region33
    $region32: #{micro_chess_forward.4} parent=1 // pred_region
      _
    $region33: #{micro_chess_forward.4} parent=1 // pred_fallthru
      _
    // Predicated region
    $region34: #{micro_chess_forward.4} parent=1 // pred_check
      _
    $region35: #{micro_chess_forward.4} parent=1 // pred_check_branch
      %3722 = sbr.rel (0) target = $region37
    $region36: #{micro_chess_forward.4} parent=1 // pred_region
      _
    $region37: #{micro_chess_forward.4} parent=1 // pred_fallthru
      _
    // Predicated region
    $region38: #{micro_chess_forward.4} parent=1 // pred_check
      _
    $region39: #{micro_chess_forward.4} parent=1 // pred_check_branch
      %3724 = sbr.rel (0) target = $region41
    $region40: #{micro_chess_forward.4} parent=1 // pred_region
      _
    $region41: #{micro_chess_forward.4} parent=1 // pred_fallthru
      _
    // Predicated region
    $region42: #{micro_chess_forward.4} parent=1 // pred_check
      _
    $region43: #{micro_chess_forward.4} parent=1 // pred_check_branch
      %3726 = sbr.rel (0) target = $region45
    $region44: #{micro_chess_forward.4} parent=1 // pred_region
      _
    $region45: #{micro_chess_forward.4} parent=1 // pred_fallthru
      _
    %3727 = vsyncpa [#allocation3], 1
    %3728 = vsyncpa [#allocation5], 1

</llo_original>
